<compile_context>
chip_gen: v7x
topology: tpu7x:2x2x1
jax: 0.10.0
libtpu: 0.0.40
codegen_flags: <defaults>
</compile_context>

<pallas_src>
import functools

import jax
import jax.numpy as jnp
from jax.experimental import pallas as pl
from jax.experimental.pallas import tpu as pltpu

_BN_EPS = 1e-5
_HALO = 2            # two 3x3 / pad-1 layers -> +-2 rows of context per strip
_LRELU_SLOPE = 0.1   # nn.LeakyReLU(0.1)


def _shift_lanes(v, off):
    """y[..., p] = v[..., (p + off) % L] for a static integer offset.

    On lane-aligned widths this is a single XLU rotate (pltpu.roll, free slot);
    otherwise fall back to two static lane slices + a minor-dim concatenate,
    which Mosaic lowers for arbitrary static shapes.
    """
    L = v.shape[-1]
    k = off % L
    if k == 0:
        return v
    if L % 128 == 0:
        return pltpu.roll(v, shift=L - k, axis=v.ndim - 1)
    return jnp.concatenate([v[..., k:], v[..., :k]], axis=-1)


# ---------------------------------------------------------------------------
# Fused kernel: 5 x (conv + folded-BN + LeakyReLU) for one (image, row strip).
# ---------------------------------------------------------------------------

def _top_down_fused_kernel(x_ref, rowm_ref, colm_ref,
                           w1, s1, b1, w2, s2, b2, w3, s3, b3,
                           w4, s4, b4, w5, s5, b5,
                           o_ref, *, W, rows_out):
    dt = w1.dtype                       # MXU operand dtype (f32 or bf16)

    # Hoisted once per grid step, shared by both 3x3 layers.
    rowmask = rowm_ref[0]               # (1, Lp) f32: 1 on in-image rows, 0 on halo pad
    colmask = colm_ref[...]             # (2, Lp) dt : [0] valid for dx=-1, [1] for dx=+1
    cm_left, cm_right = colmask[0:1], colmask[1:2]

    def bn_lrelu(y, s_ref, b_ref):      # float32 epilogue on every chip generation
        y = y * s_ref[...] + b_ref[...]
        return jnp.where(y > 0, y, _LRELU_SLOPE * y)

    def conv1x1(h_dt, w_ref, s_ref, b_ref):
        y = jnp.dot(w_ref[...], h_dt, preferred_element_type=jnp.float32)
        return bn_lrelu(y, s_ref, b_ref)

    def conv3x3(h_f32, w_ref, s_ref, b_ref):
        # Zero the out-of-image rows first (the reference zero-pads each 3x3
        # layer's *input*), then cast ONCE to the MXU dtype before building the
        # taps.  The 3x3 is 9 accumulated K=Cin dots -- the (9*Cin, HW) im2col
        # stack of the previous version is never materialized.  (On v5e, if
        # Cin < 128, a fused K=9*Cin dot keeps the MXU deeper; K=Cin already
        # fills the 256-deep v6e/v7x MXU at production channel counts.)
        h_dt = (h_f32 * rowmask).astype(dt)
        acc = None
        t = 0
        for dy in (-1, 0, 1):           # tap order (ky, kx) must match the
            for dx in (-1, 0, 1):       # (9, Cout, Cin) weight reshape below.
                tap = _shift_lanes(h_dt, dy * W + dx)
                if dx == -1:
                    tap = tap * cm_left
                elif dx == 1:
                    tap = tap * cm_right
                part = jnp.dot(w_ref[t], tap, preferred_element_type=jnp.float32)
                acc = part if acc is None else acc + part
                t += 1
        return bn_lrelu(acc, s_ref, b_ref)

    h = conv1x1(x_ref[0, 0], w1, s1, b1)          # Cin -> C    (Cx, Lp)
    h = conv3x3(h, w2, s2, b2)                    # C   -> 2C
    h = conv1x1(h.astype(dt), w3, s3, b3)         # 2C  -> C
    h = conv3x3(h, w4, s4, b4)                    # C   -> 2C
    h = conv1x1(h.astype(dt), w5, s5, b5)         # 2C  -> C
    # Keep only the interior rows of the strip (drop the +-2-row halo).
    o_ref[0] = h[:, _HALO * W:(_HALO + rows_out) * W].astype(o_ref.dtype)


# ---------------------------------------------------------------------------
# Wrapper
# ---------------------------------------------------------------------------

@functools.partial(jax.jit, static_argnames=("rows_per_strip", "matmul_dtype"))
def top_down_forward_nchw(x_nchw, params, *, rows_per_strip=None,
                          matmul_dtype=jnp.float32):
    """x_nchw: (N, Cin, H, W) -> (N, C, H, W); params: list of 5 layer dicts.

    rows_per_strip: rows per grid step (must divide H; rows_per_strip*W must be
    a multiple of 128 or the full image so the output stays lane-dense).
    matmul_dtype: MXU operand dtype; use jnp.bfloat16 on v6e/v7x for the native
    fast path (accumulation and the BN/LeakyReLU epilogue stay float32).
    """
    N, Cin, H, W = x_nchw.shape
    C = params[-1]["w"].shape[0]
    R = rows_per_strip if rows_per_strip is not None else H
    assert H % R == 0, "rows_per_strip must divide H"
    assert (R * W) % 128 == 0 or R == H, "output strip must be lane-dense"
    S = H // R
    Rp = R + 2 * _HALO
    Lp = Rp * W

    # Overlapping row strips with a +-2-row halo, zero padded at the image
    # top/bottom, built once in HBM so the kernel sees plain non-overlapping
    # blocks (auto-pipelined / double-buffered by BlockSpec).
    xp = jnp.pad(x_nchw, ((0, 0), (0, 0), (_HALO, _HALO), (0, 0)))
    row_idx = (jnp.arange(S, dtype=jnp.int32) * R)[:, None] + \
        jnp.arange(Rp, dtype=jnp.int32)[None, :]                       # (S, Rp)
    x_strips = jnp.take(xp, row_idx.reshape(-1), axis=2)               # (N,Cin,S*Rp,W)
    x_strips = x_strips.reshape(N, Cin, S, Rp, W)
    x_strips = jnp.transpose(x_strips, (0, 2, 1, 3, 4)).reshape(N, S, Cin, Lp)
    x_strips = x_strips.astype(matmul_dtype)

    # Precomputed halo masks (review: avoid per-step iota // % on the VPU).
    col = jnp.arange(Lp, dtype=jnp.int32) % W
    colmask = jnp.stack([(col >= 1), (col <= W - 2)]).astype(matmul_dtype)  # (2, Lp)
    brow = jnp.arange(Lp, dtype=jnp.int32) // W
    absrow = (jnp.arange(S, dtype=jnp.int32) * R)[:, None] - _HALO + brow[None, :]
    rowmask = ((absrow >= 0) & (absrow < H)).astype(jnp.float32)
    rowmask = rowmask.reshape(S, 1, Lp)                                 # (S, 1, Lp)

    # Flatten / fold the parameters once (weights pre-cast to the MXU dtype,
    # BN scale/bias kept float32 for the epilogue).
    flat = []
    for p in params:
        w = p["w"]
        if w.ndim == 4:   # (Cout, Cin, 3, 3) -> (9, Cout, Cin), tap index = ky*3+kx
            co, ci = w.shape[0], w.shape[1]
            w = jnp.transpose(w, (2, 3, 0, 1)).reshape(9, co, ci)
        flat.append(w.astype(matmul_dtype))
        flat.append(p["scale"].reshape(-1, 1).astype(jnp.float32))
        flat.append(p["bias"].reshape(-1, 1).astype(jnp.float32))

    def _const_spec(shape):
        nd = len(shape)
        return pl.BlockSpec(shape, lambda n, s: (0,) * nd)

    in_specs = [
        pl.BlockSpec((1, 1, Cin, Lp), lambda n, s: (n, s, 0, 0)),   # strip
        pl.BlockSpec((1, 1, Lp), lambda n, s: (s, 0, 0)),           # row mask
        _const_spec((2, Lp)),                                       # col masks
    ]
    # Constant index maps -> weights/scale/bias stay VMEM-resident across the
    # grid (at production sizes, single-buffer them with pl.Buffered(1)).
    in_specs += [_const_spec(tuple(a.shape)) for a in flat]

    out = pl.pallas_call(
        functools.partial(_top_down_fused_kernel, W=W, rows_out=R),
        out_shape=jax.ShapeDtypeStruct((N, C, H * W), jnp.float32),
        grid=(N, S),
        in_specs=in_specs,
        out_specs=pl.BlockSpec((1, C, R * W), lambda n, s: (n, 0, s)),
        compiler_params=pltpu.CompilerParams(
            dimension_semantics=("parallel", "parallel"),  # both v7x TCs busy
            vmem_limit_bytes=64 * 1024 * 1024),
    )(x_strips, rowmask, colmask, *flat)
    return out.reshape(N, C, H, W)


# ---------------------------------------------------------------------------
# Parameter construction (deterministic, synthetic; PyTorch layouts).
# NOTE: BatchNorm is folded to its inference form.  Here running_mean=0 and
# running_var=1; real checkpoints must fold:
#   scale = gamma / sqrt(running_var + eps);  bias = beta - running_mean * scale
# ---------------------------------------------------------------------------

def _make_basic_conv_params(key, cin, cout, ksize):
    kw, kg, kb = jax.random.split(key, 3)
    fan_in = cin * ksize * ksize
    std = (2.0 / fan_in) ** 0.5
    if ksize == 1:
        w = jax.random.normal(kw, (cout, cin), jnp.float32) * std
    else:
        w = jax.random.normal(kw, (cout, cin, ksize, ksize), jnp.float32) * std
    gamma = 1.0 + 0.1 * jax.random.normal(kg, (cout,), jnp.float32)
    beta = 0.1 * jax.random.normal(kb, (cout,), jnp.float32)
    running_mean = jnp.zeros((cout,), jnp.float32)
    running_var = jnp.ones((cout,), jnp.float32)
    scale = gamma / jnp.sqrt(running_var + _BN_EPS)
    bias = beta - running_mean * scale
    return dict(w=w, scale=scale, bias=bias)


def make_top_down_params(key, in_channels, out_channels):
    keys = jax.random.split(key, 5)
    specs = [
        (in_channels, out_channels, 1),
        (out_channels, out_channels * 2, 3),
        (out_channels * 2, out_channels, 1),
        (out_channels, out_channels * 2, 3),
        (out_channels * 2, out_channels, 1),
    ]
    return [_make_basic_conv_params(k, ci, co, ks)
            for k, (ci, co, ks) in zip(keys, specs)]


# Pure-JAX reference (NCHW / OIHW, like the PyTorch module) for correctness.
def _ref_forward_nchw(x_nchw, params):
    x = x_nchw
    for p in params:
        w = p["w"]
        if w.ndim == 2:
            w = w[:, :, None, None]
        pad = "VALID" if w.shape[2] == 1 else ((1, 1), (1, 1))
        y = jax.lax.conv_general_dilated(
            x, w, window_strides=(1, 1), padding=pad,
            dimension_numbers=("NCHW", "OIHW", "NCHW"),
            precision=jax.lax.Precision.HIGHEST)
        y = y * p["scale"][None, :, None, None] + p["bias"][None, :, None, None]
        x = jnp.where(y > 0, y, _LRELU_SLOPE * y)
    return x


if __name__ == "__main__":
    key = jax.random.PRNGKey(0)
    k_x, k_p = jax.random.split(key)

    # Small shapes consistent with Top_Down(in_channels=4, out_channels=8).
    N, Cin, H, W = 2, 4, 16, 16
    Cout = 8
    x = jax.random.normal(k_x, (N, Cin, H, W), jnp.float32)
    params = make_top_down_params(k_p, Cin, Cout)

    ref = jax.block_until_ready(_ref_forward_nchw(x, params))

    # float32 MXU path, 2 row strips per image -> grid (2, 2), both "parallel".
    out = jax.block_until_ready(
        top_down_forward_nchw(x, params, rows_per_strip=8))
    assert out.shape == (N, Cout, H, W), out.shape
    err = float(jnp.max(jnp.abs(out - ref)))
    assert jnp.allclose(out, ref, atol=2e-3, rtol=2e-3), f"f32 max abs err {err}"

    # bfloat16 MXU operand path (native fast path on v6e/v7x), whole-image strip.
    out_bf16 = jax.block_until_ready(
        top_down_forward_nchw(x, params, rows_per_strip=None,
                              matmul_dtype=jnp.bfloat16))
    err_bf16 = float(jnp.max(jnp.abs(out_bf16 - ref)))
    assert jnp.allclose(out_bf16, ref, atol=6e-2, rtol=6e-2), \
        f"bf16 max abs err {err_bf16}"

    print("KERNEL_OK")
</pallas_src>

<mosaic_0001>
module attributes {stable_mosaic.version = 11 : i64} {
  func.func @_top_down_fused_kernel(%arg0: i32, %arg1: i32, %arg2: memref<1x1x4x192xf32, #tpu.memory_space<vmem>>, %arg3: memref<1x1x192xf32, #tpu.memory_space<vmem>>, %arg4: memref<2x192xf32, #tpu.memory_space<vmem>>, %arg5: memref<8x4xf32, #tpu.memory_space<vmem>>, %arg6: memref<8x1xf32, #tpu.memory_space<vmem>>, %arg7: memref<8x1xf32, #tpu.memory_space<vmem>>, %arg8: memref<9x16x8xf32, #tpu.memory_space<vmem>>, %arg9: memref<16x1xf32, #tpu.memory_space<vmem>>, %arg10: memref<16x1xf32, #tpu.memory_space<vmem>>, %arg11: memref<8x16xf32, #tpu.memory_space<vmem>>, %arg12: memref<8x1xf32, #tpu.memory_space<vmem>>, %arg13: memref<8x1xf32, #tpu.memory_space<vmem>>, %arg14: memref<9x16x8xf32, #tpu.memory_space<vmem>>, %arg15: memref<16x1xf32, #tpu.memory_space<vmem>>, %arg16: memref<16x1xf32, #tpu.memory_space<vmem>>, %arg17: memref<8x16xf32, #tpu.memory_space<vmem>>, %arg18: memref<8x1xf32, #tpu.memory_space<vmem>>, %arg19: memref<8x1xf32, #tpu.memory_space<vmem>>, %arg20: memref<1x8x128xf32, #tpu.memory_space<vmem>>) attributes {dimension_semantics = [#tpu.dimension_semantics<parallel>, #tpu.dimension_semantics<parallel>], iteration_bounds = array<i64: 2, 2>, scalar_prefetch = 0 : i64, scratch_operands = 0 : i64, tpu.core_type = #tpu.core_type<tc>, window_params = [{transform_indices = @transform_0, window_bounds = array<i64: 1, 1, 4, 192>}, {transform_indices = @transform_1, window_bounds = array<i64: 1, 1, 192>}, {pipeline_mode = #tpu.pipeline_mode<synchronous>, transform_indices = @transform_2, window_bounds = array<i64: 2, 192>}, {pipeline_mode = #tpu.pipeline_mode<synchronous>, transform_indices = @transform_3, window_bounds = array<i64: 8, 4>}, {pipeline_mode = #tpu.pipeline_mode<synchronous>, transform_indices = @transform_4, window_bounds = array<i64: 8, 1>}, {pipeline_mode = #tpu.pipeline_mode<synchronous>, transform_indices = @transform_5, window_bounds = array<i64: 8, 1>}, {pipeline_mode = #tpu.pipeline_mode<synchronous>, transform_indices = @transform_6, window_bounds = array<i64: 9, 16, 8>}, {pipeline_mode = #tpu.pipeline_mode<synchronous>, transform_indices = @transform_7, window_bounds = array<i64: 16, 1>}, {pipeline_mode = #tpu.pipeline_mode<synchronous>, transform_indices = @transform_8, window_bounds = array<i64: 16, 1>}, {pipeline_mode = #tpu.pipeline_mode<synchronous>, transform_indices = @transform_9, window_bounds = array<i64: 8, 16>}, {pipeline_mode = #tpu.pipeline_mode<synchronous>, transform_indices = @transform_10, window_bounds = array<i64: 8, 1>}, {pipeline_mode = #tpu.pipeline_mode<synchronous>, transform_indices = @transform_11, window_bounds = array<i64: 8, 1>}, {pipeline_mode = #tpu.pipeline_mode<synchronous>, transform_indices = @transform_12, window_bounds = array<i64: 9, 16, 8>}, {pipeline_mode = #tpu.pipeline_mode<synchronous>, transform_indices = @transform_13, window_bounds = array<i64: 16, 1>}, {pipeline_mode = #tpu.pipeline_mode<synchronous>, transform_indices = @transform_14, window_bounds = array<i64: 16, 1>}, {pipeline_mode = #tpu.pipeline_mode<synchronous>, transform_indices = @transform_15, window_bounds = array<i64: 8, 16>}, {pipeline_mode = #tpu.pipeline_mode<synchronous>, transform_indices = @transform_16, window_bounds = array<i64: 8, 1>}, {pipeline_mode = #tpu.pipeline_mode<synchronous>, transform_indices = @transform_17, window_bounds = array<i64: 8, 1>}, {transform_indices = @transform_18, window_bounds = array<i64: 1, 8, 128>}]} {
    %c0 = arith.constant 0 : index
    %c0_0 = arith.constant 0 : index
    %c0_1 = arith.constant 0 : index
    %0 = vector.load %arg3[%c0, %c0_0, %c0_1] : memref<1x1x192xf32, #tpu.memory_space<vmem>>, vector<1x1x192xf32>
    %1 = vector.shape_cast %0 : vector<1x1x192xf32> to vector<1x192xf32>
    %c0_2 = arith.constant 0 : index
    %c0_3 = arith.constant 0 : index
    %2 = vector.load %arg4[%c0_2, %c0_3] : memref<2x192xf32, #tpu.memory_space<vmem>>, vector<2x192xf32>
    %3 = vector.extract_strided_slice %2 {offsets = [0, 0], sizes = [1, 192], strides = [1, 1]} : vector<2x192xf32> to vector<1x192xf32>
    %4 = vector.extract_strided_slice %2 {offsets = [1, 0], sizes = [1, 192], strides = [1, 1]} : vector<2x192xf32> to vector<1x192xf32>
    %c0_4 = arith.constant 0 : index
    %c0_5 = arith.constant 0 : index
    %c0_6 = arith.constant 0 : index
    %c0_7 = arith.constant 0 : index
    %5 = vector.load %arg2[%c0_4, %c0_5, %c0_6, %c0_7] : memref<1x1x4x192xf32, #tpu.memory_space<vmem>>, vector<1x1x4x192xf32>
    %6 = vector.shape_cast %5 : vector<1x1x4x192xf32> to vector<4x192xf32>
    %c0_8 = arith.constant 0 : index
    %c0_9 = arith.constant 0 : index
    %7 = vector.load %arg5[%c0_8, %c0_9] : memref<8x4xf32, #tpu.memory_space<vmem>>, vector<8x4xf32>
    %cst = arith.constant dense<0.000000e+00> : vector<8x192xf32>
    %8 = tpu.matmul %7, %6, %cst {dimension_numbers = #tpu.dot_dimension_numbers<[1], [0], [0], [1], [0, 0, 1, 1], [], []>} : vector<8x4xf32>, vector<4x192xf32>, vector<8x192xf32> -> vector<8x192xf32>
    %c0_10 = arith.constant 0 : index
    %c0_11 = arith.constant 0 : index
    %9 = vector.load %arg6[%c0_10, %c0_11] : memref<8x1xf32, #tpu.memory_space<vmem>>, vector<8x1xf32>
    %10 = vector.broadcast %9 : vector<8x1xf32> to vector<8x192xf32>
    %11 = arith.mulf %8, %10 : vector<8x192xf32>
    %c0_12 = arith.constant 0 : index
    %c0_13 = arith.constant 0 : index
    %12 = vector.load %arg7[%c0_12, %c0_13] : memref<8x1xf32, #tpu.memory_space<vmem>>, vector<8x1xf32>
    %13 = vector.broadcast %12 : vector<8x1xf32> to vector<8x192xf32>
    %14 = arith.addf %11, %13 : vector<8x192xf32>
    %cst_14 = arith.constant 0.000000e+00 : f32
    %15 = vector.broadcast %cst_14 : f32 to vector<8x192xf32>
    %16 = arith.cmpf ogt, %14, %15 : vector<8x192xf32>
    %cst_15 = arith.constant 1.000000e-01 : f32
    %17 = vector.broadcast %cst_15 : f32 to vector<8x192xf32>
    %18 = arith.mulf %17, %14 : vector<8x192xf32>
    %19 = arith.select %16, %14, %18 : vector<8x192xi1>, vector<8x192xf32>
    %20 = vector.broadcast %1 : vector<1x192xf32> to vector<8x192xf32>
    %21 = arith.mulf %19, %20 : vector<8x192xf32>
    %22 = vector.extract_strided_slice %21 {offsets = [0, 175], sizes = [8, 17], strides = [1, 1]} : vector<8x192xf32> to vector<8x17xf32>
    %23 = vector.extract_strided_slice %21 {offsets = [0, 0], sizes = [8, 175], strides = [1, 1]} : vector<8x192xf32> to vector<8x175xf32>
    %24 = tpu.concatenate %22, %23 in 1 : vector<8x17xf32>, vector<8x175xf32> -> vector<8x192xf32>
    %25 = vector.broadcast %3 : vector<1x192xf32> to vector<8x192xf32>
    %26 = arith.mulf %24, %25 : vector<8x192xf32>
    %c0_16 = arith.constant 0 : index
    %c0_17 = arith.constant 0 : index
    %c0_18 = arith.constant 0 : index
    %27 = vector.load %arg8[%c0_16, %c0_17, %c0_18] : memref<9x16x8xf32, #tpu.memory_space<vmem>>, vector<1x16x8xf32>
    %28 = vector.shape_cast %27 : vector<1x16x8xf32> to vector<16x8xf32>
    %cst_19 = arith.constant dense<0.000000e+00> : vector<16x192xf32>
    %29 = tpu.matmul %28, %26, %cst_19 {dimension_numbers = #tpu.dot_dimension_numbers<[1], [0], [0], [1], [0, 0, 1, 1], [], []>} : vector<16x8xf32>, vector<8x192xf32>, vector<16x192xf32> -> vector<16x192xf32>
    %30 = vector.extract_strided_slice %21 {offsets = [0, 176], sizes = [8, 16], strides = [1, 1]} : vector<8x192xf32> to vector<8x16xf32>
    %31 = vector.extract_strided_slice %21 {offsets = [0, 0], sizes = [8, 176], strides = [1, 1]} : vector<8x192xf32> to vector<8x176xf32>
    %32 = tpu.concatenate %30, %31 in 1 : vector<8x16xf32>, vector<8x176xf32> -> vector<8x192xf32>
    %c1 = arith.constant 1 : index
    %c0_20 = arith.constant 0 : index
    %c0_21 = arith.constant 0 : index
    %33 = vector.load %arg8[%c1, %c0_20, %c0_21] : memref<9x16x8xf32, #tpu.memory_space<vmem>>, vector<1x16x8xf32>
    %34 = vector.shape_cast %33 : vector<1x16x8xf32> to vector<16x8xf32>
    %cst_22 = arith.constant dense<0.000000e+00> : vector<16x192xf32>
    %35 = tpu.matmul %34, %32, %cst_22 {dimension_numbers = #tpu.dot_dimension_numbers<[1], [0], [0], [1], [0, 0, 1, 1], [], []>} : vector<16x8xf32>, vector<8x192xf32>, vector<16x192xf32> -> vector<16x192xf32>
    %36 = arith.addf %29, %35 : vector<16x192xf32>
    %37 = vector.extract_strided_slice %21 {offsets = [0, 177], sizes = [8, 15], strides = [1, 1]} : vector<8x192xf32> to vector<8x15xf32>
    %38 = vector.extract_strided_slice %21 {offsets = [0, 0], sizes = [8, 177], strides = [1, 1]} : vector<8x192xf32> to vector<8x177xf32>
    %39 = tpu.concatenate %37, %38 in 1 : vector<8x15xf32>, vector<8x177xf32> -> vector<8x192xf32>
    %40 = vector.broadcast %4 : vector<1x192xf32> to vector<8x192xf32>
    %41 = arith.mulf %39, %40 : vector<8x192xf32>
    %c2 = arith.constant 2 : index
    %c0_23 = arith.constant 0 : index
    %c0_24 = arith.constant 0 : index
    %42 = vector.load %arg8[%c2, %c0_23, %c0_24] : memref<9x16x8xf32, #tpu.memory_space<vmem>>, vector<1x16x8xf32>
    %43 = vector.shape_cast %42 : vector<1x16x8xf32> to vector<16x8xf32>
    %cst_25 = arith.constant dense<0.000000e+00> : vector<16x192xf32>
    %44 = tpu.matmul %43, %41, %cst_25 {dimension_numbers = #tpu.dot_dimension_numbers<[1], [0], [0], [1], [0, 0, 1, 1], [], []>} : vector<16x8xf32>, vector<8x192xf32>, vector<16x192xf32> -> vector<16x192xf32>
    %45 = arith.addf %36, %44 : vector<16x192xf32>
    %46 = vector.extract_strided_slice %21 {offsets = [0, 191], sizes = [8, 1], strides = [1, 1]} : vector<8x192xf32> to vector<8x1xf32>
    %47 = vector.extract_strided_slice %21 {offsets = [0, 0], sizes = [8, 191], strides = [1, 1]} : vector<8x192xf32> to vector<8x191xf32>
    %48 = tpu.concatenate %46, %47 in 1 : vector<8x1xf32>, vector<8x191xf32> -> vector<8x192xf32>
    %49 = vector.broadcast %3 : vector<1x192xf32> to vector<8x192xf32>
    %50 = arith.mulf %48, %49 : vector<8x192xf32>
    %c3 = arith.constant 3 : index
    %c0_26 = arith.constant 0 : index
    %c0_27 = arith.constant 0 : index
    %51 = vector.load %arg8[%c3, %c0_26, %c0_27] : memref<9x16x8xf32, #tpu.memory_space<vmem>>, vector<1x16x8xf32>
    %52 = vector.shape_cast %51 : vector<1x16x8xf32> to vector<16x8xf32>
    %cst_28 = arith.constant dense<0.000000e+00> : vector<16x192xf32>
    %53 = tpu.matmul %52, %50, %cst_28 {dimension_numbers = #tpu.dot_dimension_numbers<[1], [0], [0], [1], [0, 0, 1, 1], [], []>} : vector<16x8xf32>, vector<8x192xf32>, vector<16x192xf32> -> vector<16x192xf32>
    %54 = arith.addf %45, %53 : vector<16x192xf32>
    %c4 = arith.constant 4 : index
    %c0_29 = arith.constant 0 : index
    %c0_30 = arith.constant 0 : index
    %55 = vector.load %arg8[%c4, %c0_29, %c0_30] : memref<9x16x8xf32, #tpu.memory_space<vmem>>, vector<1x16x8xf32>
    %56 = vector.shape_cast %55 : vector<1x16x8xf32> to vector<16x8xf32>
    %cst_31 = arith.constant dense<0.000000e+00> : vector<16x192xf32>
    %57 = tpu.matmul %56, %21, %cst_31 {dimension_numbers = #tpu.dot_dimension_numbers<[1], [0], [0], [1], [0, 0, 1, 1], [], []>} : vector<16x8xf32>, vector<8x192xf32>, vector<16x192xf32> -> vector<16x192xf32>
    %58 = arith.addf %54, %57 : vector<16x192xf32>
    %59 = vector.extract_strided_slice %21 {offsets = [0, 1], sizes = [8, 191], strides = [1, 1]} : vector<8x192xf32> to vector<8x191xf32>
    %60 = vector.extract_strided_slice %21 {offsets = [0, 0], sizes = [8, 1], strides = [1, 1]} : vector<8x192xf32> to vector<8x1xf32>
    %61 = tpu.concatenate %59, %60 in 1 : vector<8x191xf32>, vector<8x1xf32> -> vector<8x192xf32>
    %62 = vector.broadcast %4 : vector<1x192xf32> to vector<8x192xf32>
    %63 = arith.mulf %61, %62 : vector<8x192xf32>
    %c5 = arith.constant 5 : index
    %c0_32 = arith.constant 0 : index
    %c0_33 = arith.constant 0 : index
    %64 = vector.load %arg8[%c5, %c0_32, %c0_33] : memref<9x16x8xf32, #tpu.memory_space<vmem>>, vector<1x16x8xf32>
    %65 = vector.shape_cast %64 : vector<1x16x8xf32> to vector<16x8xf32>
    %cst_34 = arith.constant dense<0.000000e+00> : vector<16x192xf32>
    %66 = tpu.matmul %65, %63, %cst_34 {dimension_numbers = #tpu.dot_dimension_numbers<[1], [0], [0], [1], [0, 0, 1, 1], [], []>} : vector<16x8xf32>, vector<8x192xf32>, vector<16x192xf32> -> vector<16x192xf32>
    %67 = arith.addf %58, %66 : vector<16x192xf32>
    %68 = vector.extract_strided_slice %21 {offsets = [0, 15], sizes = [8, 177], strides = [1, 1]} : vector<8x192xf32> to vector<8x177xf32>
    %69 = vector.extract_strided_slice %21 {offsets = [0, 0], sizes = [8, 15], strides = [1, 1]} : vector<8x192xf32> to vector<8x15xf32>
    %70 = tpu.concatenate %68, %69 in 1 : vector<8x177xf32>, vector<8x15xf32> -> vector<8x192xf32>
    %71 = vector.broadcast %3 : vector<1x192xf32> to vector<8x192xf32>
    %72 = arith.mulf %70, %71 : vector<8x192xf32>
    %c6 = arith.constant 6 : index
    %c0_35 = arith.constant 0 : index
    %c0_36 = arith.constant 0 : index
    %73 = vector.load %arg8[%c6, %c0_35, %c0_36] : memref<9x16x8xf32, #tpu.memory_space<vmem>>, vector<1x16x8xf32>
    %74 = vector.shape_cast %73 : vector<1x16x8xf32> to vector<16x8xf32>
    %cst_37 = arith.constant dense<0.000000e+00> : vector<16x192xf32>
    %75 = tpu.matmul %74, %72, %cst_37 {dimension_numbers = #tpu.dot_dimension_numbers<[1], [0], [0], [1], [0, 0, 1, 1], [], []>} : vector<16x8xf32>, vector<8x192xf32>, vector<16x192xf32> -> vector<16x192xf32>
    %76 = arith.addf %67, %75 : vector<16x192xf32>
    %77 = vector.extract_strided_slice %21 {offsets = [0, 16], sizes = [8, 176], strides = [1, 1]} : vector<8x192xf32> to vector<8x176xf32>
    %78 = vector.extract_strided_slice %21 {offsets = [0, 0], sizes = [8, 16], strides = [1, 1]} : vector<8x192xf32> to vector<8x16xf32>
    %79 = tpu.concatenate %77, %78 in 1 : vector<8x176xf32>, vector<8x16xf32> -> vector<8x192xf32>
    %c7 = arith.constant 7 : index
    %c0_38 = arith.constant 0 : index
    %c0_39 = arith.constant 0 : index
    %80 = vector.load %arg8[%c7, %c0_38, %c0_39] : memref<9x16x8xf32, #tpu.memory_space<vmem>>, vector<1x16x8xf32>
    %81 = vector.shape_cast %80 : vector<1x16x8xf32> to vector<16x8xf32>
    %cst_40 = arith.constant dense<0.000000e+00> : vector<16x192xf32>
    %82 = tpu.matmul %81, %79, %cst_40 {dimension_numbers = #tpu.dot_dimension_numbers<[1], [0], [0], [1], [0, 0, 1, 1], [], []>} : vector<16x8xf32>, vector<8x192xf32>, vector<16x192xf32> -> vector<16x192xf32>
    %83 = arith.addf %76, %82 : vector<16x192xf32>
    %84 = vector.extract_strided_slice %21 {offsets = [0, 17], sizes = [8, 175], strides = [1, 1]} : vector<8x192xf32> to vector<8x175xf32>
    %85 = vector.extract_strided_slice %21 {offsets = [0, 0], sizes = [8, 17], strides = [1, 1]} : vector<8x192xf32> to vector<8x17xf32>
    %86 = tpu.concatenate %84, %85 in 1 : vector<8x175xf32>, vector<8x17xf32> -> vector<8x192xf32>
    %87 = vector.broadcast %4 : vector<1x192xf32> to vector<8x192xf32>
    %88 = arith.mulf %86, %87 : vector<8x192xf32>
    %c8 = arith.constant 8 : index
    %c0_41 = arith.constant 0 : index
    %c0_42 = arith.constant 0 : index
    %89 = vector.load %arg8[%c8, %c0_41, %c0_42] : memref<9x16x8xf32, #tpu.memory_space<vmem>>, vector<1x16x8xf32>
    %90 = vector.shape_cast %89 : vector<1x16x8xf32> to vector<16x8xf32>
    %cst_43 = arith.constant dense<0.000000e+00> : vector<16x192xf32>
    %91 = tpu.matmul %90, %88, %cst_43 {dimension_numbers = #tpu.dot_dimension_numbers<[1], [0], [0], [1], [0, 0, 1, 1], [], []>} : vector<16x8xf32>, vector<8x192xf32>, vector<16x192xf32> -> vector<16x192xf32>
    %92 = arith.addf %83, %91 : vector<16x192xf32>
    %c0_44 = arith.constant 0 : index
    %c0_45 = arith.constant 0 : index
    %93 = vector.load %arg9[%c0_44, %c0_45] : memref<16x1xf32, #tpu.memory_space<vmem>>, vector<16x1xf32>
    %94 = vector.broadcast %93 : vector<16x1xf32> to vector<16x192xf32>
    %95 = arith.mulf %92, %94 : vector<16x192xf32>
    %c0_46 = arith.constant 0 : index
    %c0_47 = arith.constant 0 : index
    %96 = vector.load %arg10[%c0_46, %c0_47] : memref<16x1xf32, #tpu.memory_space<vmem>>, vector<16x1xf32>
    %97 = vector.broadcast %96 : vector<16x1xf32> to vector<16x192xf32>
    %98 = arith.addf %95, %97 : vector<16x192xf32>
    %cst_48 = arith.constant 0.000000e+00 : f32
    %99 = vector.broadcast %cst_48 : f32 to vector<16x192xf32>
    %100 = arith.cmpf ogt, %98, %99 : vector<16x192xf32>
    %cst_49 = arith.constant 1.000000e-01 : f32
    %101 = vector.broadcast %cst_49 : f32 to vector<16x192xf32>
    %102 = arith.mulf %101, %98 : vector<16x192xf32>
    %103 = arith.select %100, %98, %102 : vector<16x192xi1>, vector<16x192xf32>
    %c0_50 = arith.constant 0 : index
    %c0_51 = arith.constant 0 : index
    %104 = vector.load %arg11[%c0_50, %c0_51] : memref<8x16xf32, #tpu.memory_space<vmem>>, vector<8x16xf32>
    %cst_52 = arith.constant dense<0.000000e+00> : vector<8x192xf32>
    %105 = tpu.matmul %104, %103, %cst_52 {dimension_numbers = #tpu.dot_dimension_numbers<[1], [0], [0], [1], [0, 0, 1, 1], [], []>} : vector<8x16xf32>, vector<16x192xf32>, vector<8x192xf32> -> vector<8x192xf32>
    %c0_53 = arith.constant 0 : index
    %c0_54 = arith.constant 0 : index
    %106 = vector.load %arg12[%c0_53, %c0_54] : memref<8x1xf32, #tpu.memory_space<vmem>>, vector<8x1xf32>
    %107 = vector.broadcast %106 : vector<8x1xf32> to vector<8x192xf32>
    %108 = arith.mulf %105, %107 : vector<8x192xf32>
    %c0_55 = arith.constant 0 : index
    %c0_56 = arith.constant 0 : index
    %109 = vector.load %arg13[%c0_55, %c0_56] : memref<8x1xf32, #tpu.memory_space<vmem>>, vector<8x1xf32>
    %110 = vector.broadcast %109 : vector<8x1xf32> to vector<8x192xf32>
    %111 = arith.addf %108, %110 : vector<8x192xf32>
    %cst_57 = arith.constant 0.000000e+00 : f32
    %112 = vector.broadcast %cst_57 : f32 to vector<8x192xf32>
    %113 = arith.cmpf ogt, %111, %112 : vector<8x192xf32>
    %cst_58 = arith.constant 1.000000e-01 : f32
    %114 = vector.broadcast %cst_58 : f32 to vector<8x192xf32>
    %115 = arith.mulf %114, %111 : vector<8x192xf32>
    %116 = arith.select %113, %111, %115 : vector<8x192xi1>, vector<8x192xf32>
    %117 = vector.broadcast %1 : vector<1x192xf32> to vector<8x192xf32>
    %118 = arith.mulf %116, %117 : vector<8x192xf32>
    %119 = vector.extract_strided_slice %118 {offsets = [0, 175], sizes = [8, 17], strides = [1, 1]} : vector<8x192xf32> to vector<8x17xf32>
    %120 = vector.extract_strided_slice %118 {offsets = [0, 0], sizes = [8, 175], strides = [1, 1]} : vector<8x192xf32> to vector<8x175xf32>
    %121 = tpu.concatenate %119, %120 in 1 : vector<8x17xf32>, vector<8x175xf32> -> vector<8x192xf32>
    %122 = vector.broadcast %3 : vector<1x192xf32> to vector<8x192xf32>
    %123 = arith.mulf %121, %122 : vector<8x192xf32>
    %c0_59 = arith.constant 0 : index
    %c0_60 = arith.constant 0 : index
    %c0_61 = arith.constant 0 : index
    %124 = vector.load %arg14[%c0_59, %c0_60, %c0_61] : memref<9x16x8xf32, #tpu.memory_space<vmem>>, vector<1x16x8xf32>
    %125 = vector.shape_cast %124 : vector<1x16x8xf32> to vector<16x8xf32>
    %cst_62 = arith.constant dense<0.000000e+00> : vector<16x192xf32>
    %126 = tpu.matmul %125, %123, %cst_62 {dimension_numbers = #tpu.dot_dimension_numbers<[1], [0], [0], [1], [0, 0, 1, 1], [], []>} : vector<16x8xf32>, vector<8x192xf32>, vector<16x192xf32> -> vector<16x192xf32>
    %127 = vector.extract_strided_slice %118 {offsets = [0, 176], sizes = [8, 16], strides = [1, 1]} : vector<8x192xf32> to vector<8x16xf32>
    %128 = vector.extract_strided_slice %118 {offsets = [0, 0], sizes = [8, 176], strides = [1, 1]} : vector<8x192xf32> to vector<8x176xf32>
    %129 = tpu.concatenate %127, %128 in 1 : vector<8x16xf32>, vector<8x176xf32> -> vector<8x192xf32>
    %c1_63 = arith.constant 1 : index
    %c0_64 = arith.constant 0 : index
    %c0_65 = arith.constant 0 : index
    %130 = vector.load %arg14[%c1_63, %c0_64, %c0_65] : memref<9x16x8xf32, #tpu.memory_space<vmem>>, vector<1x16x8xf32>
    %131 = vector.shape_cast %130 : vector<1x16x8xf32> to vector<16x8xf32>
    %cst_66 = arith.constant dense<0.000000e+00> : vector<16x192xf32>
    %132 = tpu.matmul %131, %129, %cst_66 {dimension_numbers = #tpu.dot_dimension_numbers<[1], [0], [0], [1], [0, 0, 1, 1], [], []>} : vector<16x8xf32>, vector<8x192xf32>, vector<16x192xf32> -> vector<16x192xf32>
    %133 = arith.addf %126, %132 : vector<16x192xf32>
    %134 = vector.extract_strided_slice %118 {offsets = [0, 177], sizes = [8, 15], strides = [1, 1]} : vector<8x192xf32> to vector<8x15xf32>
    %135 = vector.extract_strided_slice %118 {offsets = [0, 0], sizes = [8, 177], strides = [1, 1]} : vector<8x192xf32> to vector<8x177xf32>
    %136 = tpu.concatenate %134, %135 in 1 : vector<8x15xf32>, vector<8x177xf32> -> vector<8x192xf32>
    %137 = vector.broadcast %4 : vector<1x192xf32> to vector<8x192xf32>
    %138 = arith.mulf %136, %137 : vector<8x192xf32>
    %c2_67 = arith.constant 2 : index
    %c0_68 = arith.constant 0 : index
    %c0_69 = arith.constant 0 : index
    %139 = vector.load %arg14[%c2_67, %c0_68, %c0_69] : memref<9x16x8xf32, #tpu.memory_space<vmem>>, vector<1x16x8xf32>
    %140 = vector.shape_cast %139 : vector<1x16x8xf32> to vector<16x8xf32>
    %cst_70 = arith.constant dense<0.000000e+00> : vector<16x192xf32>
    %141 = tpu.matmul %140, %138, %cst_70 {dimension_numbers = #tpu.dot_dimension_numbers<[1], [0], [0], [1], [0, 0, 1, 1], [], []>} : vector<16x8xf32>, vector<8x192xf32>, vector<16x192xf32> -> vector<16x192xf32>
    %142 = arith.addf %133, %141 : vector<16x192xf32>
    %143 = vector.extract_strided_slice %118 {offsets = [0, 191], sizes = [8, 1], strides = [1, 1]} : vector<8x192xf32> to vector<8x1xf32>
    %144 = vector.extract_strided_slice %118 {offsets = [0, 0], sizes = [8, 191], strides = [1, 1]} : vector<8x192xf32> to vector<8x191xf32>
    %145 = tpu.concatenate %143, %144 in 1 : vector<8x1xf32>, vector<8x191xf32> -> vector<8x192xf32>
    %146 = vector.broadcast %3 : vector<1x192xf32> to vector<8x192xf32>
    %147 = arith.mulf %145, %146 : vector<8x192xf32>
    %c3_71 = arith.constant 3 : index
    %c0_72 = arith.constant 0 : index
    %c0_73 = arith.constant 0 : index
    %148 = vector.load %arg14[%c3_71, %c0_72, %c0_73] : memref<9x16x8xf32, #tpu.memory_space<vmem>>, vector<1x16x8xf32>
    %149 = vector.shape_cast %148 : vector<1x16x8xf32> to vector<16x8xf32>
    %cst_74 = arith.constant dense<0.000000e+00> : vector<16x192xf32>
    %150 = tpu.matmul %149, %147, %cst_74 {dimension_numbers = #tpu.dot_dimension_numbers<[1], [0], [0], [1], [0, 0, 1, 1], [], []>} : vector<16x8xf32>, vector<8x192xf32>, vector<16x192xf32> -> vector<16x192xf32>
    %151 = arith.addf %142, %150 : vector<16x192xf32>
    %c4_75 = arith.constant 4 : index
    %c0_76 = arith.constant 0 : index
    %c0_77 = arith.constant 0 : index
    %152 = vector.load %arg14[%c4_75, %c0_76, %c0_77] : memref<9x16x8xf32, #tpu.memory_space<vmem>>, vector<1x16x8xf32>
    %153 = vector.shape_cast %152 : vector<1x16x8xf32> to vector<16x8xf32>
    %cst_78 = arith.constant dense<0.000000e+00> : vector<16x192xf32>
    %154 = tpu.matmul %153, %118, %cst_78 {dimension_numbers = #tpu.dot_dimension_numbers<[1], [0], [0], [1], [0, 0, 1, 1], [], []>} : vector<16x8xf32>, vector<8x192xf32>, vector<16x192xf32> -> vector<16x192xf32>
    %155 = arith.addf %151, %154 : vector<16x192xf32>
    %156 = vector.extract_strided_slice %118 {offsets = [0, 1], sizes = [8, 191], strides = [1, 1]} : vector<8x192xf32> to vector<8x191xf32>
    %157 = vector.extract_strided_slice %118 {offsets = [0, 0], sizes = [8, 1], strides = [1, 1]} : vector<8x192xf32> to vector<8x1xf32>
    %158 = tpu.concatenate %156, %157 in 1 : vector<8x191xf32>, vector<8x1xf32> -> vector<8x192xf32>
    %159 = vector.broadcast %4 : vector<1x192xf32> to vector<8x192xf32>
    %160 = arith.mulf %158, %159 : vector<8x192xf32>
    %c5_79 = arith.constant 5 : index
    %c0_80 = arith.constant 0 : index
    %c0_81 = arith.constant 0 : index
    %161 = vector.load %arg14[%c5_79, %c0_80, %c0_81] : memref<9x16x8xf32, #tpu.memory_space<vmem>>, vector<1x16x8xf32>
    %162 = vector.shape_cast %161 : vector<1x16x8xf32> to vector<16x8xf32>
    %cst_82 = arith.constant dense<0.000000e+00> : vector<16x192xf32>
    %163 = tpu.matmul %162, %160, %cst_82 {dimension_numbers = #tpu.dot_dimension_numbers<[1], [0], [0], [1], [0, 0, 1, 1], [], []>} : vector<16x8xf32>, vector<8x192xf32>, vector<16x192xf32> -> vector<16x192xf32>
    %164 = arith.addf %155, %163 : vector<16x192xf32>
    %165 = vector.extract_strided_slice %118 {offsets = [0, 15], sizes = [8, 177], strides = [1, 1]} : vector<8x192xf32> to vector<8x177xf32>
    %166 = vector.extract_strided_slice %118 {offsets = [0, 0], sizes = [8, 15], strides = [1, 1]} : vector<8x192xf32> to vector<8x15xf32>
    %167 = tpu.concatenate %165, %166 in 1 : vector<8x177xf32>, vector<8x15xf32> -> vector<8x192xf32>
    %168 = vector.broadcast %3 : vector<1x192xf32> to vector<8x192xf32>
    %169 = arith.mulf %167, %168 : vector<8x192xf32>
    %c6_83 = arith.constant 6 : index
    %c0_84 = arith.constant 0 : index
    %c0_85 = arith.constant 0 : index
    %170 = vector.load %arg14[%c6_83, %c0_84, %c0_85] : memref<9x16x8xf32, #tpu.memory_space<vmem>>, vector<1x16x8xf32>
    %171 = vector.shape_cast %170 : vector<1x16x8xf32> to vector<16x8xf32>
    %cst_86 = arith.constant dense<0.000000e+00> : vector<16x192xf32>
    %172 = tpu.matmul %171, %169, %cst_86 {dimension_numbers = #tpu.dot_dimension_numbers<[1], [0], [0], [1], [0, 0, 1, 1], [], []>} : vector<16x8xf32>, vector<8x192xf32>, vector<16x192xf32> -> vector<16x192xf32>
    %173 = arith.addf %164, %172 : vector<16x192xf32>
    %174 = vector.extract_strided_slice %118 {offsets = [0, 16], sizes = [8, 176], strides = [1, 1]} : vector<8x192xf32> to vector<8x176xf32>
    %175 = vector.extract_strided_slice %118 {offsets = [0, 0], sizes = [8, 16], strides = [1, 1]} : vector<8x192xf32> to vector<8x16xf32>
    %176 = tpu.concatenate %174, %175 in 1 : vector<8x176xf32>, vector<8x16xf32> -> vector<8x192xf32>
    %c7_87 = arith.constant 7 : index
    %c0_88 = arith.constant 0 : index
    %c0_89 = arith.constant 0 : index
    %177 = vector.load %arg14[%c7_87, %c0_88, %c0_89] : memref<9x16x8xf32, #tpu.memory_space<vmem>>, vector<1x16x8xf32>
    %178 = vector.shape_cast %177 : vector<1x16x8xf32> to vector<16x8xf32>
    %cst_90 = arith.constant dense<0.000000e+00> : vector<16x192xf32>
    %179 = tpu.matmul %178, %176, %cst_90 {dimension_numbers = #tpu.dot_dimension_numbers<[1], [0], [0], [1], [0, 0, 1, 1], [], []>} : vector<16x8xf32>, vector<8x192xf32>, vector<16x192xf32> -> vector<16x192xf32>
    %180 = arith.addf %173, %179 : vector<16x192xf32>
    %181 = vector.extract_strided_slice %118 {offsets = [0, 17], sizes = [8, 175], strides = [1, 1]} : vector<8x192xf32> to vector<8x175xf32>
    %182 = vector.extract_strided_slice %118 {offsets = [0, 0], sizes = [8, 17], strides = [1, 1]} : vector<8x192xf32> to vector<8x17xf32>
    %183 = tpu.concatenate %181, %182 in 1 : vector<8x175xf32>, vector<8x17xf32> -> vector<8x192xf32>
    %184 = vector.broadcast %4 : vector<1x192xf32> to vector<8x192xf32>
    %185 = arith.mulf %183, %184 : vector<8x192xf32>
    %c8_91 = arith.constant 8 : index
    %c0_92 = arith.constant 0 : index
    %c0_93 = arith.constant 0 : index
    %186 = vector.load %arg14[%c8_91, %c0_92, %c0_93] : memref<9x16x8xf32, #tpu.memory_space<vmem>>, vector<1x16x8xf32>
    %187 = vector.shape_cast %186 : vector<1x16x8xf32> to vector<16x8xf32>
    %cst_94 = arith.constant dense<0.000000e+00> : vector<16x192xf32>
    %188 = tpu.matmul %187, %185, %cst_94 {dimension_numbers = #tpu.dot_dimension_numbers<[1], [0], [0], [1], [0, 0, 1, 1], [], []>} : vector<16x8xf32>, vector<8x192xf32>, vector<16x192xf32> -> vector<16x192xf32>
    %189 = arith.addf %180, %188 : vector<16x192xf32>
    %c0_95 = arith.constant 0 : index
    %c0_96 = arith.constant 0 : index
    %190 = vector.load %arg15[%c0_95, %c0_96] : memref<16x1xf32, #tpu.memory_space<vmem>>, vector<16x1xf32>
    %191 = vector.broadcast %190 : vector<16x1xf32> to vector<16x192xf32>
    %192 = arith.mulf %189, %191 : vector<16x192xf32>
    %c0_97 = arith.constant 0 : index
    %c0_98 = arith.constant 0 : index
    %193 = vector.load %arg16[%c0_97, %c0_98] : memref<16x1xf32, #tpu.memory_space<vmem>>, vector<16x1xf32>
    %194 = vector.broadcast %193 : vector<16x1xf32> to vector<16x192xf32>
    %195 = arith.addf %192, %194 : vector<16x192xf32>
    %cst_99 = arith.constant 0.000000e+00 : f32
    %196 = vector.broadcast %cst_99 : f32 to vector<16x192xf32>
    %197 = arith.cmpf ogt, %195, %196 : vector<16x192xf32>
    %cst_100 = arith.constant 1.000000e-01 : f32
    %198 = vector.broadcast %cst_100 : f32 to vector<16x192xf32>
    %199 = arith.mulf %198, %195 : vector<16x192xf32>
    %200 = arith.select %197, %195, %199 : vector<16x192xi1>, vector<16x192xf32>
    %c0_101 = arith.constant 0 : index
    %c0_102 = arith.constant 0 : index
    %201 = vector.load %arg17[%c0_101, %c0_102] : memref<8x16xf32, #tpu.memory_space<vmem>>, vector<8x16xf32>
    %cst_103 = arith.constant dense<0.000000e+00> : vector<8x192xf32>
    %202 = tpu.matmul %201, %200, %cst_103 {dimension_numbers = #tpu.dot_dimension_numbers<[1], [0], [0], [1], [0, 0, 1, 1], [], []>} : vector<8x16xf32>, vector<16x192xf32>, vector<8x192xf32> -> vector<8x192xf32>
    %c0_104 = arith.constant 0 : index
    %c0_105 = arith.constant 0 : index
    %203 = vector.load %arg18[%c0_104, %c0_105] : memref<8x1xf32, #tpu.memory_space<vmem>>, vector<8x1xf32>
    %204 = vector.broadcast %203 : vector<8x1xf32> to vector<8x192xf32>
    %205 = arith.mulf %202, %204 : vector<8x192xf32>
    %c0_106 = arith.constant 0 : index
    %c0_107 = arith.constant 0 : index
    %206 = vector.load %arg19[%c0_106, %c0_107] : memref<8x1xf32, #tpu.memory_space<vmem>>, vector<8x1xf32>
    %207 = vector.broadcast %206 : vector<8x1xf32> to vector<8x192xf32>
    %208 = arith.addf %205, %207 : vector<8x192xf32>
    %cst_108 = arith.constant 0.000000e+00 : f32
    %209 = vector.broadcast %cst_108 : f32 to vector<8x192xf32>
    %210 = arith.cmpf ogt, %208, %209 : vector<8x192xf32>
    %cst_109 = arith.constant 1.000000e-01 : f32
    %211 = vector.broadcast %cst_109 : f32 to vector<8x192xf32>
    %212 = arith.mulf %211, %208 : vector<8x192xf32>
    %213 = arith.select %210, %208, %212 : vector<8x192xi1>, vector<8x192xf32>
    %214 = vector.extract_strided_slice %213 {offsets = [0, 32], sizes = [8, 128], strides = [1, 1]} : vector<8x192xf32> to vector<8x128xf32>
    %c0_110 = arith.constant 0 : index
    %c0_111 = arith.constant 0 : index
    %c0_112 = arith.constant 0 : index
    %215 = vector.load %arg20[%c0_110, %c0_111, %c0_112] : memref<1x8x128xf32, #tpu.memory_space<vmem>>, vector<1x8x128xf32>
    %216 = vector.shape_cast %215 : vector<1x8x128xf32> to vector<8x128xf32>
    %217 = vector.shape_cast %214 : vector<8x128xf32> to vector<1x8x128xf32>
    tpu.vector_store %arg20[%c0_110, %c0_111, %c0_112], %217 {strides = array<i32>} : memref<1x8x128xf32, #tpu.memory_space<vmem>>, vector<1x8x128xf32>,
    return
  }
  func.func @transform_0(%arg0: i32, %arg1: i32) -> (i32, i32, i32, i32) {
    %c0_i32 = arith.constant 0 : i32
    %c0_i32_0 = arith.constant 0 : i32
    %c0_i32_1 = arith.constant 0 : i32
    return %arg0, %arg1, %c0_i32, %c0_i32_0 : i32, i32, i32, i32
  }
  func.func @transform_1(%arg0: i32, %arg1: i32) -> (i32, i32, i32) {
    %c0_i32 = arith.constant 0 : i32
    %c0_i32_0 = arith.constant 0 : i32
    %c0_i32_1 = arith.constant 0 : i32
    return %arg1, %c0_i32, %c0_i32_0 : i32, i32, i32
  }
  func.func @transform_2(%arg0: i32, %arg1: i32) -> (i32, i32) {
    %c0_i32 = arith.constant 0 : i32
    %c0_i32_0 = arith.constant 0 : i32
    %c0_i32_1 = arith.constant 0 : i32
    return %c0_i32, %c0_i32_0 : i32, i32
  }
  func.func @transform_3(%arg0: i32, %arg1: i32) -> (i32, i32) {
    %c0_i32 = arith.constant 0 : i32
    %c0_i32_0 = arith.constant 0 : i32
    %c0_i32_1 = arith.constant 0 : i32
    return %c0_i32, %c0_i32_0 : i32, i32
  }
  func.func @transform_4(%arg0: i32, %arg1: i32) -> (i32, i32) {
    %c0_i32 = arith.constant 0 : i32
    %c0_i32_0 = arith.constant 0 : i32
    %c0_i32_1 = arith.constant 0 : i32
    return %c0_i32, %c0_i32_0 : i32, i32
  }
  func.func @transform_5(%arg0: i32, %arg1: i32) -> (i32, i32) {
    %c0_i32 = arith.constant 0 : i32
    %c0_i32_0 = arith.constant 0 : i32
    %c0_i32_1 = arith.constant 0 : i32
    return %c0_i32, %c0_i32_0 : i32, i32
  }
  func.func @transform_6(%arg0: i32, %arg1: i32) -> (i32, i32, i32) {
    %c0_i32 = arith.constant 0 : i32
    %c0_i32_0 = arith.constant 0 : i32
    %c0_i32_1 = arith.constant 0 : i32
    %c0_i32_2 = arith.constant 0 : i32
    return %c0_i32, %c0_i32_0, %c0_i32_1 : i32, i32, i32
  }
  func.func @transform_7(%arg0: i32, %arg1: i32) -> (i32, i32) {
    %c0_i32 = arith.constant 0 : i32
    %c0_i32_0 = arith.constant 0 : i32
    %c0_i32_1 = arith.constant 0 : i32
    return %c0_i32, %c0_i32_0 : i32, i32
  }
  func.func @transform_8(%arg0: i32, %arg1: i32) -> (i32, i32) {
    %c0_i32 = arith.constant 0 : i32
    %c0_i32_0 = arith.constant 0 : i32
    %c0_i32_1 = arith.constant 0 : i32
    return %c0_i32, %c0_i32_0 : i32, i32
  }
  func.func @transform_9(%arg0: i32, %arg1: i32) -> (i32, i32) {
    %c0_i32 = arith.constant 0 : i32
    %c0_i32_0 = arith.constant 0 : i32
    %c0_i32_1 = arith.constant 0 : i32
    return %c0_i32, %c0_i32_0 : i32, i32
  }
  func.func @transform_10(%arg0: i32, %arg1: i32) -> (i32, i32) {
    %c0_i32 = arith.constant 0 : i32
    %c0_i32_0 = arith.constant 0 : i32
    %c0_i32_1 = arith.constant 0 : i32
    return %c0_i32, %c0_i32_0 : i32, i32
  }
  func.func @transform_11(%arg0: i32, %arg1: i32) -> (i32, i32) {
    %c0_i32 = arith.constant 0 : i32
    %c0_i32_0 = arith.constant 0 : i32
    %c0_i32_1 = arith.constant 0 : i32
    return %c0_i32, %c0_i32_0 : i32, i32
  }
  func.func @transform_12(%arg0: i32, %arg1: i32) -> (i32, i32, i32) {
    %c0_i32 = arith.constant 0 : i32
    %c0_i32_0 = arith.constant 0 : i32
    %c0_i32_1 = arith.constant 0 : i32
    %c0_i32_2 = arith.constant 0 : i32
    return %c0_i32, %c0_i32_0, %c0_i32_1 : i32, i32, i32
  }
  func.func @transform_13(%arg0: i32, %arg1: i32) -> (i32, i32) {
    %c0_i32 = arith.constant 0 : i32
    %c0_i32_0 = arith.constant 0 : i32
    %c0_i32_1 = arith.constant 0 : i32
    return %c0_i32, %c0_i32_0 : i32, i32
  }
  func.func @transform_14(%arg0: i32, %arg1: i32) -> (i32, i32) {
    %c0_i32 = arith.constant 0 : i32
    %c0_i32_0 = arith.constant 0 : i32
    %c0_i32_1 = arith.constant 0 : i32
    return %c0_i32, %c0_i32_0 : i32, i32
  }
  func.func @transform_15(%arg0: i32, %arg1: i32) -> (i32, i32) {
    %c0_i32 = arith.constant 0 : i32
    %c0_i32_0 = arith.constant 0 : i32
    %c0_i32_1 = arith.constant 0 : i32
    return %c0_i32, %c0_i32_0 : i32, i32
  }
  func.func @transform_16(%arg0: i32, %arg1: i32) -> (i32, i32) {
    %c0_i32 = arith.constant 0 : i32
    %c0_i32_0 = arith.constant 0 : i32
    %c0_i32_1 = arith.constant 0 : i32
    return %c0_i32, %c0_i32_0 : i32, i32
  }
  func.func @transform_17(%arg0: i32, %arg1: i32) -> (i32, i32) {
    %c0_i32 = arith.constant 0 : i32
    %c0_i32_0 = arith.constant 0 : i32
    %c0_i32_1 = arith.constant 0 : i32
    return %c0_i32, %c0_i32_0 : i32, i32
  }
  func.func @transform_18(%arg0: i32, %arg1: i32) -> (i32, i32, i32) {
    %c0_i32 = arith.constant 0 : i32
    %c0_i32_0 = arith.constant 0 : i32
    return %arg0, %c0_i32, %arg1 : i32, i32, i32
  }
}

</mosaic_0001>

<llo_original>
// kernel: top_down_forward_nchw.1
$region0: #{top_down_forward_nchw.1}
  #allocation0 [shape = 'u32[]', space=smem, size = 0x4, offset = 0x4, fixed_abs, tag = 'smem constant byte address 0x4 - core index']
  #allocation1 [shape = 'u32[144,128]{1,0:T(1,128)}', space=vmem, size = 0x12000, scoped, tag = 'internal scratch']
  %s0 = inlined_call_operand.hbm [shape: f32[2,2,4,192], index: 0, kind: input, shape index: {}]
  %s1 = inlined_call_operand.hbm [shape: f32[2,1,192], index: 1, kind: input, shape index: {}]
  %s2 = inlined_call_operand.hbm [shape: f32[2,192], index: 2, kind: input, shape index: {}]
  %s3 = inlined_call_operand.hbm [shape: f32[8,4], index: 3, kind: input, shape index: {}]
  %s4 = inlined_call_operand.hbm [shape: f32[8,1], index: 4, kind: input, shape index: {}]
  %s5 = inlined_call_operand.hbm [shape: f32[8,1], index: 5, kind: input, shape index: {}]
  %s6 = inlined_call_operand.hbm [shape: f32[9,16,8], index: 6, kind: input, shape index: {}]
  %s7 = inlined_call_operand.hbm [shape: f32[16,1], index: 7, kind: input, shape index: {}]
  %s8 = inlined_call_operand.hbm [shape: f32[16,1], index: 8, kind: input, shape index: {}]
  %s9 = inlined_call_operand.hbm [shape: f32[8,16], index: 9, kind: input, shape index: {}]
  %s10 = inlined_call_operand.hbm [shape: f32[8,1], index: 10, kind: input, shape index: {}]
  %s11 = inlined_call_operand.hbm [shape: f32[8,1], index: 11, kind: input, shape index: {}]
  %s12 = inlined_call_operand.hbm [shape: f32[9,16,8], index: 12, kind: input, shape index: {}]
  %s13 = inlined_call_operand.hbm [shape: f32[16,1], index: 13, kind: input, shape index: {}]
  %s14 = inlined_call_operand.hbm [shape: f32[16,1], index: 14, kind: input, shape index: {}]
  %s15 = inlined_call_operand.hbm [shape: f32[8,16], index: 15, kind: input, shape index: {}]
  %s16 = inlined_call_operand.hbm [shape: f32[8,1], index: 16, kind: input, shape index: {}]
  %s17 = inlined_call_operand.hbm [shape: f32[8,1], index: 17, kind: input, shape index: {}]
  %s18 = inlined_call_operand.hbm [shape: f32[2,8,256], index: 18, kind: output, shape index: {}]
  %s19 = sld [smem:[#allocation0]]
  $region177: #{top_down_forward_nchw.1} parent=0
    _
  %s21 = ssub.s32 1, %s19
  %s22 = scalar_select 0, %s21, %s19
  $region1: #{top_down_forward_nchw.1} parent=0
    #allocation2 [shape = 'u8[8192]{0}', space=vmem, size = 0x2000, scoped, tag = 'input window, operand 0']
    #allocation3 [shape = 's32[2]{0}', space=sflag, size = 0x8, scoped, tag = 'scoped memory for top_down_forward_nchw.1']
    #allocation4 [shape = 's32[2]{0}', space=sflag, size = 0x8, scoped, tag = 'scoped memory for top_down_forward_nchw.1']
    #allocation5 [shape = 'u8[2048]{0}', space=vmem, size = 0x800, scoped, tag = 'input window, operand 1']
    #allocation6 [shape = 's32[2]{0}', space=sflag, size = 0x8, scoped, tag = 'scoped memory for top_down_forward_nchw.1']
    #allocation7 [shape = 'u8[2048]{0}', space=vmem, size = 0x800, scoped, tag = 'input window, operand 2, single buffered']
    #allocation8 [shape = 'u8[4096]{0}', space=vmem, size = 0x1000, scoped, tag = 'input window, operand 3, single buffered']
    #allocation9 [shape = 's32[1]{0}', space=sflag, size = 0x4, scoped, tag = 'scoped memory for top_down_forward_nchw.1']
    #allocation10 [shape = 'u8[4096]{0}', space=vmem, size = 0x1000, scoped, tag = 'input window, operand 4, single buffered']
    #allocation11 [shape = 'u8[4096]{0}', space=vmem, size = 0x1000, scoped, tag = 'input window, operand 5, single buffered']
    #allocation12 [shape = 's32[1]{0}', space=sflag, size = 0x4, scoped, tag = 'scoped memory for top_down_forward_nchw.1']
    #allocation13 [shape = 'u8[73728]{0}', space=vmem, size = 0x12000, scoped, tag = 'input window, operand 6, single buffered']
    #allocation14 [shape = 'u8[8192]{0}', space=vmem, size = 0x2000, scoped, tag = 'input window, operand 7, single buffered']
    #allocation15 [shape = 's32[1]{0}', space=sflag, size = 0x4, scoped, tag = 'scoped memory for top_down_forward_nchw.1']
    #allocation16 [shape = 'u8[8192]{0}', space=vmem, size = 0x2000, scoped, tag = 'input window, operand 8, single buffered']
    #allocation17 [shape = 'u8[4096]{0}', space=vmem, size = 0x1000, scoped, tag = 'input window, operand 9, single buffered']
    #allocation18 [shape = 's32[1]{0}', space=sflag, size = 0x4, scoped, tag = 'scoped memory for top_down_forward_nchw.1']
    #allocation19 [shape = 'u8[4096]{0}', space=vmem, size = 0x1000, scoped, tag = 'input window, operand 10, single buffered']
    #allocation20 [shape = 'u8[4096]{0}', space=vmem, size = 0x1000, scoped, tag = 'input window, operand 11, single buffered']
    #allocation21 [shape = 's32[1]{0}', space=sflag, size = 0x4, scoped, tag = 'scoped memory for top_down_forward_nchw.1']
    #allocation22 [shape = 'u8[73728]{0}', space=vmem, size = 0x12000, scoped, tag = 'input window, operand 12, single buffered']
    #allocation23 [shape = 'u8[8192]{0}', space=vmem, size = 0x2000, scoped, tag = 'input window, operand 13, single buffered']
    #allocation24 [shape = 's32[1]{0}', space=sflag, size = 0x4, scoped, tag = 'scoped memory for top_down_forward_nchw.1']
    #allocation25 [shape = 'u8[8192]{0}', space=vmem, size = 0x2000, scoped, tag = 'input window, operand 14, single buffered']
    #allocation26 [shape = 'u8[4096]{0}', space=vmem, size = 0x1000, scoped, tag = 'input window, operand 15, single buffered']
    #allocation27 [shape = 's32[1]{0}', space=sflag, size = 0x4, scoped, tag = 'scoped memory for top_down_forward_nchw.1']
    #allocation28 [shape = 'u8[4096]{0}', space=vmem, size = 0x1000, scoped, tag = 'input window, operand 16, single buffered']
    #allocation29 [shape = 'u8[4096]{0}', space=vmem, size = 0x1000, scoped, tag = 'input window, operand 17, single buffered']
    #allocation30 [shape = 's32[1]{0}', space=sflag, size = 0x4, scoped, tag = 'scoped memory for top_down_forward_nchw.1']
    #allocation31 [shape = 'u8[8192]{0}', space=vmem, size = 0x2000, scoped, tag = 'output window, operand 0']
    %23 = vsyncpa [#allocation3], 0
    %s24 = scalar_lea.sflag [#allocation3], 1
    %25 = vsyncpa %s24, 0
    %26 = vsyncpa [#allocation6], 0
    %s27 = scalar_lea.sflag [#allocation6], 1
    %28 = vsyncpa %s27, 0
    %29 = vsyncpa [#allocation9], 0
    %30 = vsyncpa [#allocation12], 0
    %31 = vsyncpa [#allocation15], 0
    %32 = vsyncpa [#allocation18], 0
    %33 = vsyncpa [#allocation21], 0
    %34 = vsyncpa [#allocation24], 0
    %35 = vsyncpa [#allocation27], 0
    %36 = vsyncpa [#allocation30], 0
    %37 = vsyncpa [#allocation4], 0
    %s38 = scalar_lea.sflag [#allocation4], 1
    %39 = vsyncpa %s38, 0
    loop: start=0, step=1, limit=6
    $region2: #{top_down_forward_nchw.1} parent=1 // loop_pre_header
      _
    $region3: #{top_down_forward_nchw.1} parent=1 // loop_header
      %s41 = sphi 0, %s45
      %p42 = scmp.ge.s32.totalorder %s41, 6
      %s48 = sphi 0, %s60
      %s49 = sphi 0, %s56
      %s50 = sphi 0, %s48
      %s51 = sphi 0, %s49
      %s52 = sphi 0, %s50
      %s53 = sphi 0, %s51
      %s65 = sphi 0, %s67
      %s68 = sphi 0, %s65
      %s69 = sphi 0, %s68
      %s85 = sphi 0, %s69
      %s91 = sphi 0, %s93
      %s94 = sphi 0, %s91
      %s95 = sphi 0, %s94
      %s111 = sphi 0, %s95
      %s115 = sphi 0, %s115
      %s117 = sphi 0, %s115
      %s118 = sphi 0, %s117
      %s132 = sphi 0, %s118
      %s136 = sphi 0, %s136
      %s138 = sphi 0, %s136
      %s139 = sphi 0, %s138
      %s153 = sphi 0, %s139
      %s157 = sphi 0, %s157
      %s159 = sphi 0, %s157
      %s160 = sphi 0, %s159
      %s174 = sphi 0, %s160
      %s178 = sphi 0, %s178
      %s180 = sphi 0, %s178
      %s181 = sphi 0, %s180
      %s195 = sphi 0, %s181
      %s199 = sphi 0, %s199
      %s201 = sphi 0, %s199
      %s202 = sphi 0, %s201
      %s216 = sphi 0, %s202
      %s220 = sphi 0, %s220
      %s222 = sphi 0, %s220
      %s223 = sphi 0, %s222
      %s237 = sphi 0, %s223
      %s241 = sphi 0, %s241
      %s243 = sphi 0, %s241
      %s244 = sphi 0, %s243
      %s258 = sphi 0, %s244
      %s262 = sphi 0, %s262
      %s264 = sphi 0, %s262
      %s265 = sphi 0, %s264
      %s279 = sphi 0, %s265
      %s283 = sphi 0, %s283
      %s285 = sphi 0, %s283
      %s286 = sphi 0, %s285
      %s300 = sphi 0, %s286
      %s304 = sphi 0, %s304
      %s306 = sphi 0, %s304
      %s307 = sphi 0, %s306
      %s321 = sphi 0, %s307
      %s325 = sphi 0, %s325
      %s327 = sphi 0, %s325
      %s328 = sphi 0, %s327
      %s342 = sphi 0, %s328
      %s346 = sphi 0, %s346
      %s348 = sphi 0, %s346
      %s349 = sphi 0, %s348
      %s363 = sphi 0, %s349
      %s367 = sphi 0, %s367
      %s369 = sphi 0, %s367
      %s370 = sphi 0, %s369
      %s384 = sphi 0, %s370
      %s388 = sphi 0, %s388
      %s390 = sphi 0, %s388
      %s391 = sphi 0, %s390
      %s405 = sphi 0, %s391
      %s409 = sphi 0, %s409
      %s411 = sphi 0, %s409
      %s412 = sphi 0, %s411
      %s426 = sphi 0, %s412
      %s430 = sphi 0, %s430
      %s432 = sphi 0, %s430
      %s433 = sphi 0, %s432
      %s447 = sphi 0, %s433
      %s455 = sphi 0, %s457
      %s458 = sphi 0, %s455
      %s459 = sphi 0, %s458
      %s475 = sphi 0, %s459
    $region4: #{top_down_forward_nchw.1} parent=1 // loop_header_branch
      %44 = sbr.rel (%p42) target = $region8
    $region5: #{top_down_forward_nchw.1} parent=1 // loop_body
      %s46 = ssub.s32 %s41, 1
      %s47 = ssub.s32 %s41, 2
      %s54 = sadd.s32 1, %s49
      %p55 = scmp.ge.s32.totalorder %s54, 2
      %s56 = scalar_select %p55, 0, %s54
      %s57 = sadd.s32 1, %s48
      %s58 = scalar_select %p55, %s57, %s48
      %p59 = scmp.ge.s32.totalorder %s58, 2
      %s60 = scalar_select %p59, 0, %s58
      %s61 = ssub.s32 %s48, %s60
      %s62 = ssub.s32 %s49, %s56
      %s63 = sor.u32 %s61, %s62
      %p64 = scmp.eq.s32.totalorder %s63, 0
      %s66 = sadd.s32 %s65, 1
      %s67 = scalar_select %p64, %s65, %s66
      %p70 = pneg %p64
      %p71 = scmp.eq.s32.totalorder %s41, 3
      %p72 = por %p70, %p71
      %p73 = scmp.ne.s32.totalorder %s65, %s68
      %p74 = scmp.eq.s32.totalorder %s41, 0
      %p75 = por %p73, %p74
      %p76 = scmp.ne.s32.totalorder %s65, %s68
      %p77 = scmp.eq.s32.totalorder %s46, 3
      %p78 = por %p76, %p77
      %p79 = scmp.ne.s32.totalorder %s68, %s69
      %p80 = scmp.eq.s32.totalorder %s46, 0
      %p81 = por %p79, %p80
      %p82 = scmp.ne.s32.totalorder %s68, %s69
      %p83 = scmp.eq.s32.totalorder %s47, 3
      %p84 = por %p82, %p83
      %p86 = scmp.ne.s32.totalorder %s69, %s85
      %p87 = scmp.eq.s32.totalorder %s47, 0
      %p88 = por %p86, %p87
      %s89 = ssub.s32 %s49, %s56
      %p90 = scmp.eq.s32.totalorder %s89, 0
      %s92 = sadd.s32 %s91, 1
      %s93 = scalar_select %p90, %s91, %s92
      %p96 = pneg %p90
      %p97 = scmp.eq.s32.totalorder %s41, 3
      %p98 = por %p96, %p97
      %p99 = scmp.ne.s32.totalorder %s91, %s94
      %p100 = scmp.eq.s32.totalorder %s41, 0
      %p101 = por %p99, %p100
      %p102 = scmp.ne.s32.totalorder %s91, %s94
      %p103 = scmp.eq.s32.totalorder %s46, 3
      %p104 = por %p102, %p103
      %p105 = scmp.ne.s32.totalorder %s94, %s95
      %p106 = scmp.eq.s32.totalorder %s46, 0
      %p107 = por %p105, %p106
      %p108 = scmp.ne.s32.totalorder %s94, %s95
      %p109 = scmp.eq.s32.totalorder %s47, 3
      %p110 = por %p108, %p109
      %p112 = scmp.ne.s32.totalorder %s95, %s111
      %p113 = scmp.eq.s32.totalorder %s47, 0
      %p114 = por %p112, %p113
      %s116 = sadd.s32 %s115, 1
      %p119 = scmp.eq.s32.totalorder %s41, 3
      %p120 = scmp.ne.s32.totalorder %s115, %s117
      %p121 = scmp.eq.s32.totalorder %s41, 0
      %p122 = por %p120, %p121
      %p123 = scmp.ne.s32.totalorder %s115, %s117
      %p124 = scmp.eq.s32.totalorder %s46, 3
      %p125 = por %p123, %p124
      %p126 = scmp.ne.s32.totalorder %s117, %s118
      %p127 = scmp.eq.s32.totalorder %s46, 0
      %p128 = por %p126, %p127
      %p129 = scmp.ne.s32.totalorder %s117, %s118
      %p130 = scmp.eq.s32.totalorder %s47, 3
      %p131 = por %p129, %p130
      %p133 = scmp.ne.s32.totalorder %s118, %s132
      %p134 = scmp.eq.s32.totalorder %s47, 0
      %p135 = por %p133, %p134
      %s137 = sadd.s32 %s136, 1
      %p140 = scmp.eq.s32.totalorder %s41, 3
      %p141 = scmp.ne.s32.totalorder %s136, %s138
      %p142 = scmp.eq.s32.totalorder %s41, 0
      %p143 = por %p141, %p142
      %p144 = scmp.ne.s32.totalorder %s136, %s138
      %p145 = scmp.eq.s32.totalorder %s46, 3
      %p146 = por %p144, %p145
      %p147 = scmp.ne.s32.totalorder %s138, %s139
      %p148 = scmp.eq.s32.totalorder %s46, 0
      %p149 = por %p147, %p148
      %p150 = scmp.ne.s32.totalorder %s138, %s139
      %p151 = scmp.eq.s32.totalorder %s47, 3
      %p152 = por %p150, %p151
      %p154 = scmp.ne.s32.totalorder %s139, %s153
      %p155 = scmp.eq.s32.totalorder %s47, 0
      %p156 = por %p154, %p155
      %s158 = sadd.s32 %s157, 1
      %p161 = scmp.eq.s32.totalorder %s41, 3
      %p162 = scmp.ne.s32.totalorder %s157, %s159
      %p163 = scmp.eq.s32.totalorder %s41, 0
      %p164 = por %p162, %p163
      %p165 = scmp.ne.s32.totalorder %s157, %s159
      %p166 = scmp.eq.s32.totalorder %s46, 3
      %p167 = por %p165, %p166
      %p168 = scmp.ne.s32.totalorder %s159, %s160
      %p169 = scmp.eq.s32.totalorder %s46, 0
      %p170 = por %p168, %p169
      %p171 = scmp.ne.s32.totalorder %s159, %s160
      %p172 = scmp.eq.s32.totalorder %s47, 3
      %p173 = por %p171, %p172
      %p175 = scmp.ne.s32.totalorder %s160, %s174
      %p176 = scmp.eq.s32.totalorder %s47, 0
      %p177 = por %p175, %p176
      %s179 = sadd.s32 %s178, 1
      %p182 = scmp.eq.s32.totalorder %s41, 3
      %p183 = scmp.ne.s32.totalorder %s178, %s180
      %p184 = scmp.eq.s32.totalorder %s41, 0
      %p185 = por %p183, %p184
      %p186 = scmp.ne.s32.totalorder %s178, %s180
      %p187 = scmp.eq.s32.totalorder %s46, 3
      %p188 = por %p186, %p187
      %p189 = scmp.ne.s32.totalorder %s180, %s181
      %p190 = scmp.eq.s32.totalorder %s46, 0
      %p191 = por %p189, %p190
      %p192 = scmp.ne.s32.totalorder %s180, %s181
      %p193 = scmp.eq.s32.totalorder %s47, 3
      %p194 = por %p192, %p193
      %p196 = scmp.ne.s32.totalorder %s181, %s195
      %p197 = scmp.eq.s32.totalorder %s47, 0
      %p198 = por %p196, %p197
      %s200 = sadd.s32 %s199, 1
      %p203 = scmp.eq.s32.totalorder %s41, 3
      %p204 = scmp.ne.s32.totalorder %s199, %s201
      %p205 = scmp.eq.s32.totalorder %s41, 0
      %p206 = por %p204, %p205
      %p207 = scmp.ne.s32.totalorder %s199, %s201
      %p208 = scmp.eq.s32.totalorder %s46, 3
      %p209 = por %p207, %p208
      %p210 = scmp.ne.s32.totalorder %s201, %s202
      %p211 = scmp.eq.s32.totalorder %s46, 0
      %p212 = por %p210, %p211
      %p213 = scmp.ne.s32.totalorder %s201, %s202
      %p214 = scmp.eq.s32.totalorder %s47, 3
      %p215 = por %p213, %p214
      %p217 = scmp.ne.s32.totalorder %s202, %s216
      %p218 = scmp.eq.s32.totalorder %s47, 0
      %p219 = por %p217, %p218
      %s221 = sadd.s32 %s220, 1
      %p224 = scmp.eq.s32.totalorder %s41, 3
      %p225 = scmp.ne.s32.totalorder %s220, %s222
      %p226 = scmp.eq.s32.totalorder %s41, 0
      %p227 = por %p225, %p226
      %p228 = scmp.ne.s32.totalorder %s220, %s222
      %p229 = scmp.eq.s32.totalorder %s46, 3
      %p230 = por %p228, %p229
      %p231 = scmp.ne.s32.totalorder %s222, %s223
      %p232 = scmp.eq.s32.totalorder %s46, 0
      %p233 = por %p231, %p232
      %p234 = scmp.ne.s32.totalorder %s222, %s223
      %p235 = scmp.eq.s32.totalorder %s47, 3
      %p236 = por %p234, %p235
      %p238 = scmp.ne.s32.totalorder %s223, %s237
      %p239 = scmp.eq.s32.totalorder %s47, 0
      %p240 = por %p238, %p239
      %s242 = sadd.s32 %s241, 1
      %p245 = scmp.eq.s32.totalorder %s41, 3
      %p246 = scmp.ne.s32.totalorder %s241, %s243
      %p247 = scmp.eq.s32.totalorder %s41, 0
      %p248 = por %p246, %p247
      %p249 = scmp.ne.s32.totalorder %s241, %s243
      %p250 = scmp.eq.s32.totalorder %s46, 3
      %p251 = por %p249, %p250
      %p252 = scmp.ne.s32.totalorder %s243, %s244
      %p253 = scmp.eq.s32.totalorder %s46, 0
      %p254 = por %p252, %p253
      %p255 = scmp.ne.s32.totalorder %s243, %s244
      %p256 = scmp.eq.s32.totalorder %s47, 3
      %p257 = por %p255, %p256
      %p259 = scmp.ne.s32.totalorder %s244, %s258
      %p260 = scmp.eq.s32.totalorder %s47, 0
      %p261 = por %p259, %p260
      %s263 = sadd.s32 %s262, 1
      %p266 = scmp.eq.s32.totalorder %s41, 3
      %p267 = scmp.ne.s32.totalorder %s262, %s264
      %p268 = scmp.eq.s32.totalorder %s41, 0
      %p269 = por %p267, %p268
      %p270 = scmp.ne.s32.totalorder %s262, %s264
      %p271 = scmp.eq.s32.totalorder %s46, 3
      %p272 = por %p270, %p271
      %p273 = scmp.ne.s32.totalorder %s264, %s265
      %p274 = scmp.eq.s32.totalorder %s46, 0
      %p275 = por %p273, %p274
      %p276 = scmp.ne.s32.totalorder %s264, %s265
      %p277 = scmp.eq.s32.totalorder %s47, 3
      %p278 = por %p276, %p277
      %p280 = scmp.ne.s32.totalorder %s265, %s279
      %p281 = scmp.eq.s32.totalorder %s47, 0
      %p282 = por %p280, %p281
      %s284 = sadd.s32 %s283, 1
      %p287 = scmp.eq.s32.totalorder %s41, 3
      %p288 = scmp.ne.s32.totalorder %s283, %s285
      %p289 = scmp.eq.s32.totalorder %s41, 0
      %p290 = por %p288, %p289
      %p291 = scmp.ne.s32.totalorder %s283, %s285
      %p292 = scmp.eq.s32.totalorder %s46, 3
      %p293 = por %p291, %p292
      %p294 = scmp.ne.s32.totalorder %s285, %s286
      %p295 = scmp.eq.s32.totalorder %s46, 0
      %p296 = por %p294, %p295
      %p297 = scmp.ne.s32.totalorder %s285, %s286
      %p298 = scmp.eq.s32.totalorder %s47, 3
      %p299 = por %p297, %p298
      %p301 = scmp.ne.s32.totalorder %s286, %s300
      %p302 = scmp.eq.s32.totalorder %s47, 0
      %p303 = por %p301, %p302
      %s305 = sadd.s32 %s304, 1
      %p308 = scmp.eq.s32.totalorder %s41, 3
      %p309 = scmp.ne.s32.totalorder %s304, %s306
      %p310 = scmp.eq.s32.totalorder %s41, 0
      %p311 = por %p309, %p310
      %p312 = scmp.ne.s32.totalorder %s304, %s306
      %p313 = scmp.eq.s32.totalorder %s46, 3
      %p314 = por %p312, %p313
      %p315 = scmp.ne.s32.totalorder %s306, %s307
      %p316 = scmp.eq.s32.totalorder %s46, 0
      %p317 = por %p315, %p316
      %p318 = scmp.ne.s32.totalorder %s306, %s307
      %p319 = scmp.eq.s32.totalorder %s47, 3
      %p320 = por %p318, %p319
      %p322 = scmp.ne.s32.totalorder %s307, %s321
      %p323 = scmp.eq.s32.totalorder %s47, 0
      %p324 = por %p322, %p323
      %s326 = sadd.s32 %s325, 1
      %p329 = scmp.eq.s32.totalorder %s41, 3
      %p330 = scmp.ne.s32.totalorder %s325, %s327
      %p331 = scmp.eq.s32.totalorder %s41, 0
      %p332 = por %p330, %p331
      %p333 = scmp.ne.s32.totalorder %s325, %s327
      %p334 = scmp.eq.s32.totalorder %s46, 3
      %p335 = por %p333, %p334
      %p336 = scmp.ne.s32.totalorder %s327, %s328
      %p337 = scmp.eq.s32.totalorder %s46, 0
      %p338 = por %p336, %p337
      %p339 = scmp.ne.s32.totalorder %s327, %s328
      %p340 = scmp.eq.s32.totalorder %s47, 3
      %p341 = por %p339, %p340
      %p343 = scmp.ne.s32.totalorder %s328, %s342
      %p344 = scmp.eq.s32.totalorder %s47, 0
      %p345 = por %p343, %p344
      %s347 = sadd.s32 %s346, 1
      %p350 = scmp.eq.s32.totalorder %s41, 3
      %p351 = scmp.ne.s32.totalorder %s346, %s348
      %p352 = scmp.eq.s32.totalorder %s41, 0
      %p353 = por %p351, %p352
      %p354 = scmp.ne.s32.totalorder %s346, %s348
      %p355 = scmp.eq.s32.totalorder %s46, 3
      %p356 = por %p354, %p355
      %p357 = scmp.ne.s32.totalorder %s348, %s349
      %p358 = scmp.eq.s32.totalorder %s46, 0
      %p359 = por %p357, %p358
      %p360 = scmp.ne.s32.totalorder %s348, %s349
      %p361 = scmp.eq.s32.totalorder %s47, 3
      %p362 = por %p360, %p361
      %p364 = scmp.ne.s32.totalorder %s349, %s363
      %p365 = scmp.eq.s32.totalorder %s47, 0
      %p366 = por %p364, %p365
      %s368 = sadd.s32 %s367, 1
      %p371 = scmp.eq.s32.totalorder %s41, 3
      %p372 = scmp.ne.s32.totalorder %s367, %s369
      %p373 = scmp.eq.s32.totalorder %s41, 0
      %p374 = por %p372, %p373
      %p375 = scmp.ne.s32.totalorder %s367, %s369
      %p376 = scmp.eq.s32.totalorder %s46, 3
      %p377 = por %p375, %p376
      %p378 = scmp.ne.s32.totalorder %s369, %s370
      %p379 = scmp.eq.s32.totalorder %s46, 0
      %p380 = por %p378, %p379
      %p381 = scmp.ne.s32.totalorder %s369, %s370
      %p382 = scmp.eq.s32.totalorder %s47, 3
      %p383 = por %p381, %p382
      %p385 = scmp.ne.s32.totalorder %s370, %s384
      %p386 = scmp.eq.s32.totalorder %s47, 0
      %p387 = por %p385, %p386
      %s389 = sadd.s32 %s388, 1
      %p392 = scmp.eq.s32.totalorder %s41, 3
      %p393 = scmp.ne.s32.totalorder %s388, %s390
      %p394 = scmp.eq.s32.totalorder %s41, 0
      %p395 = por %p393, %p394
      %p396 = scmp.ne.s32.totalorder %s388, %s390
      %p397 = scmp.eq.s32.totalorder %s46, 3
      %p398 = por %p396, %p397
      %p399 = scmp.ne.s32.totalorder %s390, %s391
      %p400 = scmp.eq.s32.totalorder %s46, 0
      %p401 = por %p399, %p400
      %p402 = scmp.ne.s32.totalorder %s390, %s391
      %p403 = scmp.eq.s32.totalorder %s47, 3
      %p404 = por %p402, %p403
      %p406 = scmp.ne.s32.totalorder %s391, %s405
      %p407 = scmp.eq.s32.totalorder %s47, 0
      %p408 = por %p406, %p407
      %s410 = sadd.s32 %s409, 1
      %p413 = scmp.eq.s32.totalorder %s41, 3
      %p414 = scmp.ne.s32.totalorder %s409, %s411
      %p415 = scmp.eq.s32.totalorder %s41, 0
      %p416 = por %p414, %p415
      %p417 = scmp.ne.s32.totalorder %s409, %s411
      %p418 = scmp.eq.s32.totalorder %s46, 3
      %p419 = por %p417, %p418
      %p420 = scmp.ne.s32.totalorder %s411, %s412
      %p421 = scmp.eq.s32.totalorder %s46, 0
      %p422 = por %p420, %p421
      %p423 = scmp.ne.s32.totalorder %s411, %s412
      %p424 = scmp.eq.s32.totalorder %s47, 3
      %p425 = por %p423, %p424
      %p427 = scmp.ne.s32.totalorder %s412, %s426
      %p428 = scmp.eq.s32.totalorder %s47, 0
      %p429 = por %p427, %p428
      %s431 = sadd.s32 %s430, 1
      %p434 = scmp.eq.s32.totalorder %s41, 3
      %p435 = scmp.ne.s32.totalorder %s430, %s432
      %p436 = scmp.eq.s32.totalorder %s41, 0
      %p437 = por %p435, %p436
      %p438 = scmp.ne.s32.totalorder %s430, %s432
      %p439 = scmp.eq.s32.totalorder %s46, 3
      %p440 = por %p438, %p439
      %p441 = scmp.ne.s32.totalorder %s432, %s433
      %p442 = scmp.eq.s32.totalorder %s46, 0
      %p443 = por %p441, %p442
      %p444 = scmp.ne.s32.totalorder %s432, %s433
      %p445 = scmp.eq.s32.totalorder %s47, 3
      %p446 = por %p444, %p445
      %p448 = scmp.ne.s32.totalorder %s433, %s447
      %p449 = scmp.eq.s32.totalorder %s47, 0
      %p450 = por %p448, %p449
      %s451 = ssub.s32 %s48, %s60
      %s452 = ssub.s32 %s49, %s56
      %s453 = sor.u32 %s451, %s452
      %p454 = scmp.eq.s32.totalorder %s453, 0
      %s456 = sadd.s32 %s455, 1
      %s457 = scalar_select %p454, %s455, %s456
      %p460 = pneg %p454
      %p461 = scmp.eq.s32.totalorder %s41, 3
      %p462 = por %p460, %p461
      %p463 = scmp.ne.s32.totalorder %s455, %s458
      %p464 = scmp.eq.s32.totalorder %s41, 0
      %p465 = por %p463, %p464
      %p466 = scmp.ne.s32.totalorder %s455, %s458
      %p467 = scmp.eq.s32.totalorder %s46, 3
      %p468 = por %p466, %p467
      %p469 = scmp.ne.s32.totalorder %s458, %s459
      %p470 = scmp.eq.s32.totalorder %s46, 0
      %p471 = por %p469, %p470
      %p472 = scmp.ne.s32.totalorder %s458, %s459
      %p473 = scmp.eq.s32.totalorder %s47, 3
      %p474 = por %p472, %p473
      %p476 = scmp.ne.s32.totalorder %s459, %s475
      %p477 = scmp.eq.s32.totalorder %s47, 0
      %p478 = por %p476, %p477
      %p479 = scmp.le.s32.totalorder 1, %s41
      %p480 = scmp.lt.s32.totalorder %s41, 5
      %p481 = pnand %p479, %p480
      %p482 = pneg %p481
      // Predicated region
      $region9: #{top_down_forward_nchw.1} parent=5 // pred_check
        _
      $region10: #{top_down_forward_nchw.1} parent=5 // pred_check_branch
        %484 = sbr.rel (%p481) target = $region12
      $region11: #{top_down_forward_nchw.1} parent=5 // pred_region
        %s485 = ssub.s32 %s41, 1
        // Predicated region
        $region13: #{top_down_forward_nchw.1} parent=11 // pred_check
          %p486 = pneg %p128
        $region14: #{top_down_forward_nchw.1} parent=11 // pred_check_branch
          %488 = sbr.rel (%p486) target = $region16
        $region15: #{top_down_forward_nchw.1} parent=11 // pred_region
          %s490 = ssub.s32 64, 64
          %491 = vsyncadd [#allocation6], %s490
          %s493 = sshll.u32 [#allocation7], 4
          %s494 = int_to_ptr.vmem [resolvable:$true] %s493
          %496 = dma.hbm_to_vmem [thread:$0]  %s2, 64, %s494, [#allocation6]
        $region16: #{top_down_forward_nchw.1} parent=11 // pred_fallthru
          _
        // Predicated region
        $region17: #{top_down_forward_nchw.1} parent=11 // pred_check
          %p497 = pneg %p149
        $region18: #{top_down_forward_nchw.1} parent=11 // pred_check_branch
          %499 = sbr.rel (%p497) target = $region20
        $region19: #{top_down_forward_nchw.1} parent=11 // pred_region
          %s501 = ssub.s32 128, 128
          %502 = vsyncadd [#allocation9], %s501
          %s504 = sshll.u32 [#allocation8], 4
          %s505 = int_to_ptr.vmem [resolvable:$true] %s504
          %507 = dma.hbm_to_vmem [thread:$0]  %s3, 128, %s505, [#allocation9]
        $region20: #{top_down_forward_nchw.1} parent=11 // pred_fallthru
          _
        // Predicated region
        $region21: #{top_down_forward_nchw.1} parent=11 // pred_check
          %p508 = pneg %p170
        $region22: #{top_down_forward_nchw.1} parent=11 // pred_check_branch
          %510 = sbr.rel (%p508) target = $region24
        $region23: #{top_down_forward_nchw.1} parent=11 // pred_region
          %s512 = ssub.s32 128, 128
          %513 = vsyncadd [#allocation9], %s512
          %s515 = sshll.u32 [#allocation10], 4
          %s516 = int_to_ptr.vmem [resolvable:$true] %s515
          %518 = dma.hbm_to_vmem [thread:$0]  %s4, 128, %s516, [#allocation9]
        $region24: #{top_down_forward_nchw.1} parent=11 // pred_fallthru
          _
        // Predicated region
        $region25: #{top_down_forward_nchw.1} parent=11 // pred_check
          %p519 = pneg %p191
        $region26: #{top_down_forward_nchw.1} parent=11 // pred_check_branch
          %521 = sbr.rel (%p519) target = $region28
        $region27: #{top_down_forward_nchw.1} parent=11 // pred_region
          %s523 = ssub.s32 128, 128
          %524 = vsyncadd [#allocation12], %s523
          %s526 = sshll.u32 [#allocation11], 4
          %s527 = int_to_ptr.vmem [resolvable:$true] %s526
          %529 = dma.hbm_to_vmem [thread:$0]  %s5, 128, %s527, [#allocation12]
        $region28: #{top_down_forward_nchw.1} parent=11 // pred_fallthru
          _
        // Predicated region
        $region29: #{top_down_forward_nchw.1} parent=11 // pred_check
          %p530 = pneg %p212
        $region30: #{top_down_forward_nchw.1} parent=11 // pred_check_branch
          %532 = sbr.rel (%p530) target = $region32
        $region31: #{top_down_forward_nchw.1} parent=11 // pred_region
          %s534 = ssub.s32 2304, 2304
          %535 = vsyncadd [#allocation12], %s534
          %s536 = sshll.u32 [#allocation13], 4
          %s537 = int_to_ptr.vmem [resolvable:$true] %s536
          %542 = dma.hbm_to_vmem [thread:$0]  %s6, 2304, %s537, [#allocation12], 128, 128, 8
        $region32: #{top_down_forward_nchw.1} parent=11 // pred_fallthru
          _
        // Predicated region
        $region33: #{top_down_forward_nchw.1} parent=11 // pred_check
          %p543 = pneg %p233
        $region34: #{top_down_forward_nchw.1} parent=11 // pred_check_branch
          %545 = sbr.rel (%p543) target = $region36
        $region35: #{top_down_forward_nchw.1} parent=11 // pred_region
          %s547 = ssub.s32 256, 256
          %548 = vsyncadd [#allocation15], %s547
          %s549 = sshll.u32 [#allocation14], 4
          %s550 = int_to_ptr.vmem [resolvable:$true] %s549
          %555 = dma.hbm_to_vmem [thread:$0]  %s7, 256, %s550, [#allocation15], 128, 128, 8
        $region36: #{top_down_forward_nchw.1} parent=11 // pred_fallthru
          _
        // Predicated region
        $region37: #{top_down_forward_nchw.1} parent=11 // pred_check
          %p556 = pneg %p254
        $region38: #{top_down_forward_nchw.1} parent=11 // pred_check_branch
          %558 = sbr.rel (%p556) target = $region40
        $region39: #{top_down_forward_nchw.1} parent=11 // pred_region
          %s560 = ssub.s32 256, 256
          %561 = vsyncadd [#allocation15], %s560
          %s562 = sshll.u32 [#allocation16], 4
          %s563 = int_to_ptr.vmem [resolvable:$true] %s562
          %568 = dma.hbm_to_vmem [thread:$0]  %s8, 256, %s563, [#allocation15], 128, 128, 8
        $region40: #{top_down_forward_nchw.1} parent=11 // pred_fallthru
          _
        // Predicated region
        $region41: #{top_down_forward_nchw.1} parent=11 // pred_check
          %p569 = pneg %p275
        $region42: #{top_down_forward_nchw.1} parent=11 // pred_check_branch
          %571 = sbr.rel (%p569) target = $region44
        $region43: #{top_down_forward_nchw.1} parent=11 // pred_region
          %s573 = ssub.s32 128, 128
          %574 = vsyncadd [#allocation18], %s573
          %s576 = sshll.u32 [#allocation17], 4
          %s577 = int_to_ptr.vmem [resolvable:$true] %s576
          %579 = dma.hbm_to_vmem [thread:$0]  %s9, 128, %s577, [#allocation18]
        $region44: #{top_down_forward_nchw.1} parent=11 // pred_fallthru
          _
        // Predicated region
        $region45: #{top_down_forward_nchw.1} parent=11 // pred_check
          %p580 = pneg %p296
        $region46: #{top_down_forward_nchw.1} parent=11 // pred_check_branch
          %582 = sbr.rel (%p580) target = $region48
        $region47: #{top_down_forward_nchw.1} parent=11 // pred_region
          %s584 = ssub.s32 128, 128
          %585 = vsyncadd [#allocation18], %s584
          %s587 = sshll.u32 [#allocation19], 4
          %s588 = int_to_ptr.vmem [resolvable:$true] %s587
          %590 = dma.hbm_to_vmem [thread:$0]  %s10, 128, %s588, [#allocation18]
        $region48: #{top_down_forward_nchw.1} parent=11 // pred_fallthru
          _
        // Predicated region
        $region49: #{top_down_forward_nchw.1} parent=11 // pred_check
          %p591 = pneg %p317
        $region50: #{top_down_forward_nchw.1} parent=11 // pred_check_branch
          %593 = sbr.rel (%p591) target = $region52
        $region51: #{top_down_forward_nchw.1} parent=11 // pred_region
          %s595 = ssub.s32 128, 128
          %596 = vsyncadd [#allocation21], %s595
          %s598 = sshll.u32 [#allocation20], 4
          %s599 = int_to_ptr.vmem [resolvable:$true] %s598
          %601 = dma.hbm_to_vmem [thread:$0]  %s11, 128, %s599, [#allocation21]
        $region52: #{top_down_forward_nchw.1} parent=11 // pred_fallthru
          _
        // Predicated region
        $region53: #{top_down_forward_nchw.1} parent=11 // pred_check
          %p602 = pneg %p338
        $region54: #{top_down_forward_nchw.1} parent=11 // pred_check_branch
          %604 = sbr.rel (%p602) target = $region56
        $region55: #{top_down_forward_nchw.1} parent=11 // pred_region
          %s606 = ssub.s32 2304, 2304
          %607 = vsyncadd [#allocation21], %s606
          %s608 = sshll.u32 [#allocation22], 4
          %s609 = int_to_ptr.vmem [resolvable:$true] %s608
          %614 = dma.hbm_to_vmem [thread:$0]  %s12, 2304, %s609, [#allocation21], 128, 128, 8
        $region56: #{top_down_forward_nchw.1} parent=11 // pred_fallthru
          _
        // Predicated region
        $region57: #{top_down_forward_nchw.1} parent=11 // pred_check
          %p615 = pneg %p359
        $region58: #{top_down_forward_nchw.1} parent=11 // pred_check_branch
          %617 = sbr.rel (%p615) target = $region60
        $region59: #{top_down_forward_nchw.1} parent=11 // pred_region
          %s619 = ssub.s32 256, 256
          %620 = vsyncadd [#allocation24], %s619
          %s621 = sshll.u32 [#allocation23], 4
          %s622 = int_to_ptr.vmem [resolvable:$true] %s621
          %627 = dma.hbm_to_vmem [thread:$0]  %s13, 256, %s622, [#allocation24], 128, 128, 8
        $region60: #{top_down_forward_nchw.1} parent=11 // pred_fallthru
          _
        // Predicated region
        $region61: #{top_down_forward_nchw.1} parent=11 // pred_check
          %p628 = pneg %p380
        $region62: #{top_down_forward_nchw.1} parent=11 // pred_check_branch
          %630 = sbr.rel (%p628) target = $region64
        $region63: #{top_down_forward_nchw.1} parent=11 // pred_region
          %s632 = ssub.s32 256, 256
          %633 = vsyncadd [#allocation24], %s632
          %s634 = sshll.u32 [#allocation25], 4
          %s635 = int_to_ptr.vmem [resolvable:$true] %s634
          %640 = dma.hbm_to_vmem [thread:$0]  %s14, 256, %s635, [#allocation24], 128, 128, 8
        $region64: #{top_down_forward_nchw.1} parent=11 // pred_fallthru
          _
        // Predicated region
        $region65: #{top_down_forward_nchw.1} parent=11 // pred_check
          %p641 = pneg %p401
        $region66: #{top_down_forward_nchw.1} parent=11 // pred_check_branch
          %643 = sbr.rel (%p641) target = $region68
        $region67: #{top_down_forward_nchw.1} parent=11 // pred_region
          %s645 = ssub.s32 128, 128
          %646 = vsyncadd [#allocation27], %s645
          %s648 = sshll.u32 [#allocation26], 4
          %s649 = int_to_ptr.vmem [resolvable:$true] %s648
          %651 = dma.hbm_to_vmem [thread:$0]  %s15, 128, %s649, [#allocation27]
        $region68: #{top_down_forward_nchw.1} parent=11 // pred_fallthru
          _
        // Predicated region
        $region69: #{top_down_forward_nchw.1} parent=11 // pred_check
          %p652 = pneg %p422
        $region70: #{top_down_forward_nchw.1} parent=11 // pred_check_branch
          %654 = sbr.rel (%p652) target = $region72
        $region71: #{top_down_forward_nchw.1} parent=11 // pred_region
          %s656 = ssub.s32 128, 128
          %657 = vsyncadd [#allocation27], %s656
          %s659 = sshll.u32 [#allocation28], 4
          %s660 = int_to_ptr.vmem [resolvable:$true] %s659
          %662 = dma.hbm_to_vmem [thread:$0]  %s16, 128, %s660, [#allocation27]
        $region72: #{top_down_forward_nchw.1} parent=11 // pred_fallthru
          _
        // Predicated region
        $region73: #{top_down_forward_nchw.1} parent=11 // pred_check
          %p663 = pneg %p443
        $region74: #{top_down_forward_nchw.1} parent=11 // pred_check_branch
          %665 = sbr.rel (%p663) target = $region76
        $region75: #{top_down_forward_nchw.1} parent=11 // pred_region
          %s667 = ssub.s32 128, 128
          %668 = vsyncadd [#allocation30], %s667
          %s670 = sshll.u32 [#allocation29], 4
          %s671 = int_to_ptr.vmem [resolvable:$true] %s670
          %673 = dma.hbm_to_vmem [thread:$0]  %s17, 128, %s671, [#allocation30]
        $region76: #{top_down_forward_nchw.1} parent=11 // pred_fallthru
          _
      $region12: #{top_down_forward_nchw.1} parent=5 // pred_fallthru
        _
      %p674 = scmp.lt.s32.totalorder %s41, 4
      // Predicated region
      $region77: #{top_down_forward_nchw.1} parent=5 // pred_check
        %p675 = pneg %p674
      $region78: #{top_down_forward_nchw.1} parent=5 // pred_check_branch
        %677 = sbr.rel (%p675) target = $region80
      $region79: #{top_down_forward_nchw.1} parent=5 // pred_region
        // Predicated region
        $region81: #{top_down_forward_nchw.1} parent=79 // pred_check
          %p678 = pneg %p75
        $region82: #{top_down_forward_nchw.1} parent=79 // pred_check_branch
          %680 = sbr.rel (%p678) target = $region84
        $region83: #{top_down_forward_nchw.1} parent=79 // pred_region
          %s681 = sand.u32 %s65, 1
          %s682 = scalar_lea.sflag [#allocation3], %s681
          %s683 = sand.u32 %s65, 1
          %s684 = smul.addr %s683, 8
          %s685 = scalar_lea.vmem [#allocation2], %s684
          %s687 = ssub.s32 128, 128
          %688 = vsyncadd %s682, %s687
          %s689 = smul.addr %s49, 2
          %s690 = smul.addr %s48, 4
          %s691 = sadd.s32 %s689, %s690
          %s692 = smul.addr %s691, 64
          %s693 = scalar_lea.hbm %s0, %s692
          %s695 = sshll.u32 %s685, 4
          %s696 = int_to_ptr.vmem [resolvable:$true] %s695
          %698 = dma.hbm_to_vmem [thread:$0]  %s693, 128, %s696, %s682
        $region84: #{top_down_forward_nchw.1} parent=79 // pred_fallthru
          _
        // Predicated region
        $region85: #{top_down_forward_nchw.1} parent=79 // pred_check
          %p699 = pneg %p101
        $region86: #{top_down_forward_nchw.1} parent=79 // pred_check_branch
          %701 = sbr.rel (%p699) target = $region88
        $region87: #{top_down_forward_nchw.1} parent=79 // pred_region
          %s702 = sand.u32 %s41, 1
          %s703 = scalar_lea.sflag [#allocation6], %s702
          %s704 = sand.u32 %s91, 1
          %s705 = smul.addr %s704, 2
          %s706 = scalar_lea.vmem [#allocation5], %s705
          %s708 = ssub.s32 32, 32
          %709 = vsyncadd %s703, %s708
          %s710 = smul.addr %s49, 2
          %s711 = smul.addr %s710, 16
          %s712 = scalar_lea.hbm %s1, %s711
          %s714 = sshll.u32 %s706, 4
          %s715 = int_to_ptr.vmem [resolvable:$true] %s714
          %717 = dma.hbm_to_vmem [thread:$0]  %s712, 32, %s715, %s703
        $region88: #{top_down_forward_nchw.1} parent=79 // pred_fallthru
          _
      $region80: #{top_down_forward_nchw.1} parent=5 // pred_fallthru
        _
      %p718 = scmp.le.s32.totalorder 1, %s41
      %p719 = scmp.lt.s32.totalorder %s41, 5
      %p720 = pnand %p718, %p719
      %p721 = pneg %p720
      // Predicated region
      $region89: #{top_down_forward_nchw.1} parent=5 // pred_check
        _
      $region90: #{top_down_forward_nchw.1} parent=5 // pred_check_branch
        %723 = sbr.rel (%p720) target = $region92
      $region91: #{top_down_forward_nchw.1} parent=5 // pred_region
        %s724 = ssub.s32 %s41, 1
        %s725 = sand.u32 %s68, 1
        %s726 = scalar_lea.sflag [#allocation3], %s725
        %s727 = sand.u32 %s68, 1
        %s728 = smul.addr %s727, 8
        %s729 = scalar_lea.vmem [#allocation2], %s728
        // Predicated region
        $region93: #{top_down_forward_nchw.1} parent=91 // pred_check
          %p730 = pneg %p81
        $region94: #{top_down_forward_nchw.1} parent=91 // pred_check_branch
          %732 = sbr.rel (%p730) target = $region96
        $region95: #{top_down_forward_nchw.1} parent=91 // pred_region
          %733 = dma.done %s726, 128
        $region96: #{top_down_forward_nchw.1} parent=91 // pred_fallthru
          _
        %s734 = sand.u32 %s46, 1
        %s735 = scalar_lea.sflag [#allocation6], %s734
        %s736 = sand.u32 %s94, 1
        %s737 = smul.addr %s736, 2
        %s738 = scalar_lea.vmem [#allocation5], %s737
        // Predicated region
        $region97: #{top_down_forward_nchw.1} parent=91 // pred_check
          %p739 = pneg %p107
        $region98: #{top_down_forward_nchw.1} parent=91 // pred_check_branch
          %741 = sbr.rel (%p739) target = $region100
        $region99: #{top_down_forward_nchw.1} parent=91 // pred_region
          %742 = dma.done %s735, 32
        $region100: #{top_down_forward_nchw.1} parent=91 // pred_fallthru
          _
        // Predicated region
        $region101: #{top_down_forward_nchw.1} parent=91 // pred_check
          %p743 = pneg %p128
        $region102: #{top_down_forward_nchw.1} parent=91 // pred_check_branch
          %745 = sbr.rel (%p743) target = $region104
        $region103: #{top_down_forward_nchw.1} parent=91 // pred_region
          %746 = dma.done [#allocation6], 64
        $region104: #{top_down_forward_nchw.1} parent=91 // pred_fallthru
          _
        // Predicated region
        $region105: #{top_down_forward_nchw.1} parent=91 // pred_check
          %p747 = pneg %p149
        $region106: #{top_down_forward_nchw.1} parent=91 // pred_check_branch
          %749 = sbr.rel (%p747) target = $region108
        $region107: #{top_down_forward_nchw.1} parent=91 // pred_region
          %750 = dma.done [#allocation9], 128
        $region108: #{top_down_forward_nchw.1} parent=91 // pred_fallthru
          _
        // Predicated region
        $region109: #{top_down_forward_nchw.1} parent=91 // pred_check
          %p751 = pneg %p170
        $region110: #{top_down_forward_nchw.1} parent=91 // pred_check_branch
          %753 = sbr.rel (%p751) target = $region112
        $region111: #{top_down_forward_nchw.1} parent=91 // pred_region
          %754 = dma.done [#allocation9], 128
        $region112: #{top_down_forward_nchw.1} parent=91 // pred_fallthru
          _
        // Predicated region
        $region113: #{top_down_forward_nchw.1} parent=91 // pred_check
          %p755 = pneg %p191
        $region114: #{top_down_forward_nchw.1} parent=91 // pred_check_branch
          %757 = sbr.rel (%p755) target = $region116
        $region115: #{top_down_forward_nchw.1} parent=91 // pred_region
          %758 = dma.done [#allocation12], 128
        $region116: #{top_down_forward_nchw.1} parent=91 // pred_fallthru
          _
        // Predicated region
        $region117: #{top_down_forward_nchw.1} parent=91 // pred_check
          %p759 = pneg %p212
        $region118: #{top_down_forward_nchw.1} parent=91 // pred_check_branch
          %761 = sbr.rel (%p759) target = $region120
        $region119: #{top_down_forward_nchw.1} parent=91 // pred_region
          %762 = dma.done [#allocation12], 2304
        $region120: #{top_down_forward_nchw.1} parent=91 // pred_fallthru
          _
        // Predicated region
        $region121: #{top_down_forward_nchw.1} parent=91 // pred_check
          %p763 = pneg %p233
        $region122: #{top_down_forward_nchw.1} parent=91 // pred_check_branch
          %765 = sbr.rel (%p763) target = $region124
        $region123: #{top_down_forward_nchw.1} parent=91 // pred_region
          %766 = dma.done [#allocation15], 256
        $region124: #{top_down_forward_nchw.1} parent=91 // pred_fallthru
          _
        // Predicated region
        $region125: #{top_down_forward_nchw.1} parent=91 // pred_check
          %p767 = pneg %p254
        $region126: #{top_down_forward_nchw.1} parent=91 // pred_check_branch
          %769 = sbr.rel (%p767) target = $region128
        $region127: #{top_down_forward_nchw.1} parent=91 // pred_region
          %770 = dma.done [#allocation15], 256
        $region128: #{top_down_forward_nchw.1} parent=91 // pred_fallthru
          _
        // Predicated region
        $region129: #{top_down_forward_nchw.1} parent=91 // pred_check
          %p771 = pneg %p275
        $region130: #{top_down_forward_nchw.1} parent=91 // pred_check_branch
          %773 = sbr.rel (%p771) target = $region132
        $region131: #{top_down_forward_nchw.1} parent=91 // pred_region
          %774 = dma.done [#allocation18], 128
        $region132: #{top_down_forward_nchw.1} parent=91 // pred_fallthru
          _
        // Predicated region
        $region133: #{top_down_forward_nchw.1} parent=91 // pred_check
          %p775 = pneg %p296
        $region134: #{top_down_forward_nchw.1} parent=91 // pred_check_branch
          %777 = sbr.rel (%p775) target = $region136
        $region135: #{top_down_forward_nchw.1} parent=91 // pred_region
          %778 = dma.done [#allocation18], 128
        $region136: #{top_down_forward_nchw.1} parent=91 // pred_fallthru
          _
        // Predicated region
        $region137: #{top_down_forward_nchw.1} parent=91 // pred_check
          %p779 = pneg %p317
        $region138: #{top_down_forward_nchw.1} parent=91 // pred_check_branch
          %781 = sbr.rel (%p779) target = $region140
        $region139: #{top_down_forward_nchw.1} parent=91 // pred_region
          %782 = dma.done [#allocation21], 128
        $region140: #{top_down_forward_nchw.1} parent=91 // pred_fallthru
          _
        // Predicated region
        $region141: #{top_down_forward_nchw.1} parent=91 // pred_check
          %p783 = pneg %p338
        $region142: #{top_down_forward_nchw.1} parent=91 // pred_check_branch
          %785 = sbr.rel (%p783) target = $region144
        $region143: #{top_down_forward_nchw.1} parent=91 // pred_region
          %786 = dma.done [#allocation21], 2304
        $region144: #{top_down_forward_nchw.1} parent=91 // pred_fallthru
          _
        // Predicated region
        $region145: #{top_down_forward_nchw.1} parent=91 // pred_check
          %p787 = pneg %p359
        $region146: #{top_down_forward_nchw.1} parent=91 // pred_check_branch
          %789 = sbr.rel (%p787) target = $region148
        $region147: #{top_down_forward_nchw.1} parent=91 // pred_region
          %790 = dma.done [#allocation24], 256
        $region148: #{top_down_forward_nchw.1} parent=91 // pred_fallthru
          _
        // Predicated region
        $region149: #{top_down_forward_nchw.1} parent=91 // pred_check
          %p791 = pneg %p380
        $region150: #{top_down_forward_nchw.1} parent=91 // pred_check_branch
          %793 = sbr.rel (%p791) target = $region152
        $region151: #{top_down_forward_nchw.1} parent=91 // pred_region
          %794 = dma.done [#allocation24], 256
        $region152: #{top_down_forward_nchw.1} parent=91 // pred_fallthru
          _
        // Predicated region
        $region153: #{top_down_forward_nchw.1} parent=91 // pred_check
          %p795 = pneg %p401
        $region154: #{top_down_forward_nchw.1} parent=91 // pred_check_branch
          %797 = sbr.rel (%p795) target = $region156
        $region155: #{top_down_forward_nchw.1} parent=91 // pred_region
          %798 = dma.done [#allocation27], 128
        $region156: #{top_down_forward_nchw.1} parent=91 // pred_fallthru
          _
        // Predicated region
        $region157: #{top_down_forward_nchw.1} parent=91 // pred_check
          %p799 = pneg %p422
        $region158: #{top_down_forward_nchw.1} parent=91 // pred_check_branch
          %801 = sbr.rel (%p799) target = $region160
        $region159: #{top_down_forward_nchw.1} parent=91 // pred_region
          %802 = dma.done [#allocation27], 128
        $region160: #{top_down_forward_nchw.1} parent=91 // pred_fallthru
          _
        // Predicated region
        $region161: #{top_down_forward_nchw.1} parent=91 // pred_check
          %p803 = pneg %p443
        $region162: #{top_down_forward_nchw.1} parent=91 // pred_check_branch
          %805 = sbr.rel (%p803) target = $region164
        $region163: #{top_down_forward_nchw.1} parent=91 // pred_region
          %806 = dma.done [#allocation30], 128
        $region164: #{top_down_forward_nchw.1} parent=91 // pred_fallthru
          _
        %s807 = sand.u32 %s68, 1
        %s808 = scalar_lea.sflag [#allocation3], %s807
        %s809 = sand.u32 %s68, 1
        %s810 = smul.addr %s809, 8
        %s811 = scalar_lea.vmem [#allocation2], %s810
        %p812 = pneg %p81
        %p813 = pneg %p78
        %s814 = sand.u32 %s46, 1
        %s815 = scalar_lea.sflag [#allocation6], %s814
        %s816 = sand.u32 %s94, 1
        %s817 = smul.addr %s816, 2
        %s818 = scalar_lea.vmem [#allocation5], %s817
        %p819 = pneg %p107
        %p820 = pneg %p104
        %p821 = pneg %p128
        %p822 = pneg %p125
        %p823 = pneg %p149
        %p824 = pneg %p146
        %p825 = pneg %p170
        %p826 = pneg %p167
        %p827 = pneg %p191
        %p828 = pneg %p188
        %p829 = pneg %p212
        %p830 = pneg %p209
        %p831 = pneg %p233
        %p832 = pneg %p230
        %p833 = pneg %p254
        %p834 = pneg %p251
        %p835 = pneg %p275
        %p836 = pneg %p272
        %p837 = pneg %p296
        %p838 = pneg %p293
        %p839 = pneg %p317
        %p840 = pneg %p314
        %p841 = pneg %p338
        %p842 = pneg %p335
        %p843 = pneg %p359
        %p844 = pneg %p356
        %p845 = pneg %p380
        %p846 = pneg %p377
        %p847 = pneg %p401
        %p848 = pneg %p398
        %p849 = pneg %p422
        %p850 = pneg %p419
        %p851 = pneg %p443
        %p852 = pneg %p440
        %p853 = pneg %p471
        %p854 = pneg %p468
        %s855 = sand.u32 %s458, 1
        %s856 = scalar_lea.sflag [#allocation4], %s855
        %s857 = sand.u32 %s458, 1
        %s858 = smul.addr %s857, 8
        %s859 = scalar_lea.vmem [#allocation31], %s858
        %v860 = vld [vmem:[%s738] sm:$0x3]
        %v861 = vld [vmem:[#allocation7] sm:$0xf]
        %v862 = vld [vmem:[%s729] sm:$0xff]
        %v863 = vld [vmem:[#allocation8] sm:$0xff]
        %v865 = vcombine.high %v862, %v862
        %vm866 = vcmask 31744
        %v868 = vsel %vm866, %v863, 0
        %vm870 = vcmask 1043456
        %v871 = vsel %vm870, %v862, 0
        %v873 = vsel %vm870, %v865, 0
        %875 = vmatprep.subr.mxu0 %v873
        %876 = vmatpush1.msra.mxu0 %v871
        %877 = vmatprep.subr.mxu0 0.0
        %878 = vmatpush1.msra.mxu0 0.0
        %879 = vmatprep.subr.mxu0 0.0
        %880 = vmatpush1.msra.mxu0 0.0
        %881 = vmatprep.subr.mxu0 0.0
        %882 = vmatpush1.msra.mxu0 0.0
        %883 = vmatprep.subr.mxu0 0.0
        %884 = vmatpush1.msra.mxu0 0.0
        %885 = vmatprep.subr.mxu0 0.0
        %886 = vmatpush1.msra.mxu0 0.0
        %887 = vmatprep.subr.mxu0 0.0
        %888 = vmatpush1.msra.mxu0 0.0
        %889 = vmatprep.subr.mxu0 0.0
        %890 = vmatpush1.msra.mxu0 0.0
        %891 = vmatprep.subr.mxu0 0.0
        %892 = vmatpush1.msra.mxu0 0.0
        %893 = vmatprep.subr.mxu0 0.0
        %894 = vmatpush1.msra.mxu0 0.0
        %895 = vmatprep.subr.mxu0 0.0
        %896 = vmatpush1.msra.mxu0 0.0
        %897 = vmatprep.subr.mxu0 0.0
        %898 = vmatpush1.msra.mxu0 0.0
        %899 = vmatprep.subr.mxu0 0.0
        %900 = vmatpush1.msra.mxu0 0.0
        %901 = vmatprep.subr.mxu0 0.0
        %902 = vmatpush1.msra.mxu0 0.0
        %903 = vmatprep.subr.mxu0 0.0
        %904 = vmatpush1.msra.mxu0 0.0
        %905 = vmatprep.subr.mxu0 0.0
        %906 = vmatpush1.msra.mxu0 0.0
        %907 = vmatprep.subr.mxu0 0.0
        %908 = vmatpush1.msra.mxu0 0.0
        %909 = vmatprep.subr.mxu0 0.0
        %910 = vmatpush1.msra.mxu0 0.0
        %911 = vmatprep.subr.mxu0 0.0
        %912 = vmatpush1.msra.mxu0 0.0
        %913 = vmatprep.subr.mxu0 0.0
        %914 = vmatpush1.msra.mxu0 0.0
        %915 = vmatprep.subr.mxu0 0.0
        %916 = vmatpush1.msra.mxu0 0.0
        %917 = vmatprep.subr.mxu0 0.0
        %918 = vmatpush1.msra.mxu0 0.0
        %919 = vmatprep.subr.mxu0 0.0
        %920 = vmatpush1.msra.mxu0 0.0
        %921 = vmatprep.subr.mxu0 0.0
        %922 = vmatpush1.msra.mxu0 0.0
        %923 = vmatprep.subr.mxu0 0.0
        %924 = vmatpush1.msra.mxu0 0.0
        %925 = vmatprep.subr.mxu0 0.0
        %926 = vmatpush1.msra.mxu0 0.0
        %927 = vmatprep.subr.mxu0 0.0
        %928 = vmatpush1.msra.mxu0 0.0
        %929 = vmatprep.subr.mxu0 0.0
        %930 = vmatpush1.msra.mxu0 0.0
        %931 = vmatprep.subr.mxu0 0.0
        %932 = vmatpush1.msra.mxu0 0.0
        %933 = vmatprep.subr.mxu0 0.0
        %934 = vmatpush1.msra.mxu0 0.0
        %935 = vmatprep.subr.mxu0 0.0
        %936 = vmatpush1.msra.mxu0 0.0
        %937 = vmatprep.subr.mxu0 0.0
        %938 = vmatpush1.msra.mxu0 0.0
        %939 = vmatprep.mubr.f32.mxu0 0.0
        %940 = vmatmul.mubr.f32.gmra.mrb[0].mxu0 %v868
        %v941 = vpop.f32.mrb[0].mxu0
        %v942 = vadd.f32 0.0, %v941
        %v943 = vpop.f32.mrb[0].mxu0
        %v944 = vadd.f32 0.0, %v943
        %945 = vdwg.mxu0
        %v946 = vld [vmem:[#allocation10] sm:$0xff]
        %948 = vset.pattern.permute.xlu0 0
        %949 = vperm.xlu0 %948, %v946
        %v950 = vpop.permute.xlu0 %949
        %v952 = vmul.f32 %v942, %v950
        %v953 = vmul.f32 %v944, %v950
        %v954 = vld [vmem:[#allocation11] sm:$0xff]
        %956 = vset.pattern.permute.xlu0 0
        %957 = vperm.xlu0 %956, %v954
        %v958 = vpop.permute.xlu0 %957
        %v960 = vadd.f32 %v952, %v958
        %v961 = vadd.f32 %v953, %v958
        %vm962 = vcmp.gt.f32.partialorder %v960, 0.0
        %vm963 = vcmp.gt.f32.partialorder %v961, 0.0
        %v964 = vmul.f32 %v960, 0.1
        %v965 = vmul.f32 %v961, 0.1
        %v966 = vsel %vm962, %v960, %v964
        %v967 = vsel %vm963, %v961, %v965
        %v969 = vlaneseq
        %v970 = vshrl.u32 %v969, 7
        %v971 = vsub.s32 0, %v970
        %v972 = vrot.slane %v860, %v971
        %v973 = vlaneseq
        %v974 = vshrl.u32 %v973, 7
        %v975 = vsub.s32 1, %v974
        %v976 = vrot.slane %v860, %v975
        %v979 = vmul.f32 %v966, %v972
        %v980 = vmul.f32 %v967, %v976
        %982 = vrot.lane.b32.xlu0 %v980, 81
        %v983 = vpop.permute.xlu0 %982
        %986 = vrot.lane.b32.xlu0 %v979, 17
        %v987 = vpop.permute.xlu0 %986
        %988 = vrot.lane.b32.xlu0 %v980, 17
        %v989 = vpop.permute.xlu0 %988
        %vm990 = vcmask 138240
        %v991 = vsel %vm990, %v987, %v989
        %v994 = vsel %vm990, %v983, %v987
        %v996 = vlaneseq
        %v997 = vshrl.u32 %v996, 7
        %v998 = vsub.s32 0, %v997
        %v999 = vrot.slane %v861, %v998
        %v1000 = vlaneseq
        %v1001 = vshrl.u32 %v1000, 7
        %v1002 = vsub.s32 2, %v1001
        %v1003 = vrot.slane %v861, %v1002
        %v1006 = vlaneseq
        %v1007 = vshrl.u32 %v1006, 7
        %v1008 = vsub.s32 0, %v1007
        %v1009 = vrot.slane %v999, %v1008
        %v1010 = vlaneseq
        %v1011 = vshrl.u32 %v1010, 7
        %v1012 = vsub.s32 0, %v1011
        %v1013 = vrot.slane %v1003, %v1012
        %v1014 = vmul.f32 %v994, %v1009
        %v1015 = vmul.f32 %v991, %v1013
        %v1016 = vld [vmem:[#allocation13] sm:$0xff]
        %v1017 = vld [vmem:[#allocation13 + $0x8] sm:$0xff]
        %1018 = vrot.lane.b32.xlu0 %v980, 80
        %v1019 = vpop.permute.xlu0 %1018
        %1021 = vrot.lane.b32.xlu0 %v979, 16
        %v1022 = vpop.permute.xlu0 %1021
        %1023 = vrot.lane.b32.xlu0 %v980, 16
        %v1024 = vpop.permute.xlu0 %1023
        %vm1025 = vcmask 130048
        %v1026 = vsel %vm1025, %v1022, %v1024
        %v1029 = vsel %vm1025, %v1019, %v1022
        %s1030 = scalar_lea.vmem [#allocation13], 16
        %v1031 = vld [vmem:[%s1030] sm:$0xff]
        %v1032 = vld [vmem:[%s1030 + $0x8] sm:$0xff]
        %vm1033 = vcmask 64512
        %v1035 = vsel %vm1033, %v1031, 0
        %v1038 = vsel %vm1033, %v1032, 0
        %1040 = vmatprep.subr.mxu0 %v1026
        %1041 = vmatpush1.msra.mxu0 %v1029
        %1042 = vmatprep.subr.mxu0 0.0
        %1043 = vmatpush1.msra.mxu0 0.0
        %1044 = vmatprep.subr.mxu0 0.0
        %1045 = vmatpush1.msra.mxu0 0.0
        %1046 = vmatprep.subr.mxu0 0.0
        %1047 = vmatpush1.msra.mxu0 0.0
        %1048 = vmatprep.subr.mxu0 0.0
        %1049 = vmatpush1.msra.mxu0 0.0
        %1050 = vmatprep.subr.mxu0 0.0
        %1051 = vmatpush1.msra.mxu0 0.0
        %1052 = vmatprep.subr.mxu0 0.0
        %1053 = vmatpush1.msra.mxu0 0.0
        %1054 = vmatprep.subr.mxu0 0.0
        %1055 = vmatpush1.msra.mxu0 0.0
        %1056 = vmatprep.subr.mxu0 0.0
        %1057 = vmatpush1.msra.mxu0 0.0
        %1058 = vmatprep.subr.mxu0 0.0
        %1059 = vmatpush1.msra.mxu0 0.0
        %1060 = vmatprep.subr.mxu0 0.0
        %1061 = vmatpush1.msra.mxu0 0.0
        %1062 = vmatprep.subr.mxu0 0.0
        %1063 = vmatpush1.msra.mxu0 0.0
        %1064 = vmatprep.subr.mxu0 0.0
        %1065 = vmatpush1.msra.mxu0 0.0
        %1066 = vmatprep.subr.mxu0 0.0
        %1067 = vmatpush1.msra.mxu0 0.0
        %1068 = vmatprep.subr.mxu0 0.0
        %1069 = vmatpush1.msra.mxu0 0.0
        %1070 = vmatprep.subr.mxu0 0.0
        %1071 = vmatpush1.msra.mxu0 0.0
        %1072 = vmatprep.subr.mxu0 0.0
        %1073 = vmatpush1.msra.mxu0 0.0
        %1074 = vmatprep.subr.mxu0 0.0
        %1075 = vmatpush1.msra.mxu0 0.0
        %1076 = vmatprep.subr.mxu0 0.0
        %1077 = vmatpush1.msra.mxu0 0.0
        %1078 = vmatprep.subr.mxu0 0.0
        %1079 = vmatpush1.msra.mxu0 0.0
        %1080 = vmatprep.subr.mxu0 0.0
        %1081 = vmatpush1.msra.mxu0 0.0
        %1082 = vmatprep.subr.mxu0 0.0
        %1083 = vmatpush1.msra.mxu0 0.0
        %1084 = vmatprep.subr.mxu0 0.0
        %1085 = vmatpush1.msra.mxu0 0.0
        %1086 = vmatprep.subr.mxu0 0.0
        %1087 = vmatpush1.msra.mxu0 0.0
        %1088 = vmatprep.subr.mxu0 0.0
        %1089 = vmatpush1.msra.mxu0 0.0
        %1090 = vmatprep.subr.mxu0 0.0
        %1091 = vmatpush1.msra.mxu0 0.0
        %1092 = vmatprep.subr.mxu0 0.0
        %1093 = vmatpush1.msra.mxu0 0.0
        %1094 = vmatprep.subr.mxu0 0.0
        %1095 = vmatpush1.msra.mxu0 0.0
        %1096 = vmatprep.subr.mxu0 0.0
        %1097 = vmatpush1.msra.mxu0 0.0
        %1098 = vmatprep.subr.mxu0 0.0
        %1099 = vmatpush1.msra.mxu0 0.0
        %1100 = vmatprep.subr.mxu0 0.0
        %1101 = vmatpush1.msra.mxu0 0.0
        %1102 = vmatprep.subr.mxu0 0.0
        %1103 = vmatpush1.msra.mxu0 0.0
        %1104 = vmatprep.mubr.f32.mxu0 0.0
        %1105 = vmatmul.mubr.f32.gmra.mrb[0].mxu0 %v1035
        %v1106 = vpop.f32.mrb[0].mxu0
        %v1107 = vadd.f32 0.0, %v1106
        %v1108 = vpop.f32.mrb[0].mxu0
        %v1109 = vadd.f32 0.0, %v1108
        %1110 = vmatprep.mubr.f32.mxu0 0.0
        %1111 = vmatmul.mubr.f32.gmra.mrb[0].mxu0 %v1038
        %v1112 = vpop.f32.mrb[0].mxu0
        %v1113 = vadd.f32 0.0, %v1112
        %v1114 = vpop.f32.mrb[0].mxu0
        %v1115 = vadd.f32 0.0, %v1114
        %1116 = vdwg.mxu0
        %v1118 = vsel %vm1033, %v1016, 0
        %v1121 = vsel %vm1033, %v1017, 0
        %1123 = vmatprep.subr.mxu0 %v1015
        %1124 = vmatpush1.msra.mxu0 %v1014
        %1125 = vmatprep.subr.mxu0 0.0
        %1126 = vmatpush1.msra.mxu0 0.0
        %1127 = vmatprep.subr.mxu0 0.0
        %1128 = vmatpush1.msra.mxu0 0.0
        %1129 = vmatprep.subr.mxu0 0.0
        %1130 = vmatpush1.msra.mxu0 0.0
        %1131 = vmatprep.subr.mxu0 0.0
        %1132 = vmatpush1.msra.mxu0 0.0
        %1133 = vmatprep.subr.mxu0 0.0
        %1134 = vmatpush1.msra.mxu0 0.0
        %1135 = vmatprep.subr.mxu0 0.0
        %1136 = vmatpush1.msra.mxu0 0.0
        %1137 = vmatprep.subr.mxu0 0.0
        %1138 = vmatpush1.msra.mxu0 0.0
        %1139 = vmatprep.subr.mxu0 0.0
        %1140 = vmatpush1.msra.mxu0 0.0
        %1141 = vmatprep.subr.mxu0 0.0
        %1142 = vmatpush1.msra.mxu0 0.0
        %1143 = vmatprep.subr.mxu0 0.0
        %1144 = vmatpush1.msra.mxu0 0.0
        %1145 = vmatprep.subr.mxu0 0.0
        %1146 = vmatpush1.msra.mxu0 0.0
        %1147 = vmatprep.subr.mxu0 0.0
        %1148 = vmatpush1.msra.mxu0 0.0
        %1149 = vmatprep.subr.mxu0 0.0
        %1150 = vmatpush1.msra.mxu0 0.0
        %1151 = vmatprep.subr.mxu0 0.0
        %1152 = vmatpush1.msra.mxu0 0.0
        %1153 = vmatprep.subr.mxu0 0.0
        %1154 = vmatpush1.msra.mxu0 0.0
        %1155 = vmatprep.subr.mxu0 0.0
        %1156 = vmatpush1.msra.mxu0 0.0
        %1157 = vmatprep.subr.mxu0 0.0
        %1158 = vmatpush1.msra.mxu0 0.0
        %1159 = vmatprep.subr.mxu0 0.0
        %1160 = vmatpush1.msra.mxu0 0.0
        %1161 = vmatprep.subr.mxu0 0.0
        %1162 = vmatpush1.msra.mxu0 0.0
        %1163 = vmatprep.subr.mxu0 0.0
        %1164 = vmatpush1.msra.mxu0 0.0
        %1165 = vmatprep.subr.mxu0 0.0
        %1166 = vmatpush1.msra.mxu0 0.0
        %1167 = vmatprep.subr.mxu0 0.0
        %1168 = vmatpush1.msra.mxu0 0.0
        %1169 = vmatprep.subr.mxu0 0.0
        %1170 = vmatpush1.msra.mxu0 0.0
        %1171 = vmatprep.subr.mxu0 0.0
        %1172 = vmatpush1.msra.mxu0 0.0
        %1173 = vmatprep.subr.mxu0 0.0
        %1174 = vmatpush1.msra.mxu0 0.0
        %1175 = vmatprep.subr.mxu0 0.0
        %1176 = vmatpush1.msra.mxu0 0.0
        %1177 = vmatprep.subr.mxu0 0.0
        %1178 = vmatpush1.msra.mxu0 0.0
        %1179 = vmatprep.subr.mxu0 0.0
        %1180 = vmatpush1.msra.mxu0 0.0
        %1181 = vmatprep.subr.mxu0 0.0
        %1182 = vmatpush1.msra.mxu0 0.0
        %1183 = vmatprep.subr.mxu0 0.0
        %1184 = vmatpush1.msra.mxu0 0.0
        %1185 = vmatprep.subr.mxu0 0.0
        %1186 = vmatpush1.msra.mxu0 0.0
        %1187 = vmatprep.mubr.f32.mxu0 0.0
        %1188 = vmatmul.mubr.f32.gmra.mrb[0].mxu0 %v1118
        %v1189 = vpop.f32.mrb[0].mxu0
        %v1190 = vadd.f32 %v1107, %v1189
        %v1191 = vpop.f32.mrb[0].mxu0
        %v1192 = vadd.f32 %v1109, %v1191
        %1193 = vmatprep.mubr.f32.mxu0 0.0
        %1194 = vmatmul.mubr.f32.gmra.mrb[0].mxu0 %v1121
        %v1195 = vpop.f32.mrb[0].mxu0
        %v1196 = vadd.f32 %v1113, %v1195
        %v1197 = vpop.f32.mrb[0].mxu0
        %v1198 = vadd.f32 %v1115, %v1197
        %1199 = vdwg.mxu0
        %1200 = vrot.lane.b32.xlu0 %v980, 79
        %v1201 = vpop.permute.xlu0 %1200
        %1203 = vrot.lane.b32.xlu0 %v979, 15
        %v1204 = vpop.permute.xlu0 %1203
        %1205 = vrot.lane.b32.xlu0 %v980, 15
        %v1206 = vpop.permute.xlu0 %1205
        %vm1207 = vcmask 121856
        %v1208 = vsel %vm1207, %v1204, %v1206
        %v1211 = vsel %vm1207, %v1201, %v1204
        %v1212 = vlaneseq
        %v1213 = vshrl.u32 %v1212, 7
        %v1214 = vsub.s32 1, %v1213
        %v1215 = vrot.slane %v861, %v1214
        %v1216 = vlaneseq
        %v1217 = vshrl.u32 %v1216, 7
        %v1218 = vsub.s32 3, %v1217
        %v1219 = vrot.slane %v861, %v1218
        %v1222 = vlaneseq
        %v1223 = vshrl.u32 %v1222, 7
        %v1224 = vsub.s32 1, %v1223
        %v1225 = vrot.slane %v1215, %v1224
        %v1226 = vlaneseq
        %v1227 = vshrl.u32 %v1226, 7
        %v1228 = vsub.s32 1, %v1227
        %v1229 = vrot.slane %v1219, %v1228
        %v1230 = vmul.f32 %v1211, %v1225
        %v1231 = vmul.f32 %v1208, %v1229
        %s1232 = scalar_lea.vmem [#allocation13], 32
        %v1233 = vld [vmem:[%s1232] sm:$0xff]
        %v1234 = vld [vmem:[%s1232 + $0x8] sm:$0xff]
        %v1236 = vsel %vm1033, %v1233, 0
        %v1239 = vsel %vm1033, %v1234, 0
        %1241 = vmatprep.subr.mxu0 %v1231
        %1242 = vmatpush1.msra.mxu0 %v1230
        %1243 = vmatprep.subr.mxu0 0.0
        %1244 = vmatpush1.msra.mxu0 0.0
        %1245 = vmatprep.subr.mxu0 0.0
        %1246 = vmatpush1.msra.mxu0 0.0
        %1247 = vmatprep.subr.mxu0 0.0
        %1248 = vmatpush1.msra.mxu0 0.0
        %1249 = vmatprep.subr.mxu0 0.0
        %1250 = vmatpush1.msra.mxu0 0.0
        %1251 = vmatprep.subr.mxu0 0.0
        %1252 = vmatpush1.msra.mxu0 0.0
        %1253 = vmatprep.subr.mxu0 0.0
        %1254 = vmatpush1.msra.mxu0 0.0
        %1255 = vmatprep.subr.mxu0 0.0
        %1256 = vmatpush1.msra.mxu0 0.0
        %1257 = vmatprep.subr.mxu0 0.0
        %1258 = vmatpush1.msra.mxu0 0.0
        %1259 = vmatprep.subr.mxu0 0.0
        %1260 = vmatpush1.msra.mxu0 0.0
        %1261 = vmatprep.subr.mxu0 0.0
        %1262 = vmatpush1.msra.mxu0 0.0
        %1263 = vmatprep.subr.mxu0 0.0
        %1264 = vmatpush1.msra.mxu0 0.0
        %1265 = vmatprep.subr.mxu0 0.0
        %1266 = vmatpush1.msra.mxu0 0.0
        %1267 = vmatprep.subr.mxu0 0.0
        %1268 = vmatpush1.msra.mxu0 0.0
        %1269 = vmatprep.subr.mxu0 0.0
        %1270 = vmatpush1.msra.mxu0 0.0
        %1271 = vmatprep.subr.mxu0 0.0
        %1272 = vmatpush1.msra.mxu0 0.0
        %1273 = vmatprep.subr.mxu0 0.0
        %1274 = vmatpush1.msra.mxu0 0.0
        %1275 = vmatprep.subr.mxu0 0.0
        %1276 = vmatpush1.msra.mxu0 0.0
        %1277 = vmatprep.subr.mxu0 0.0
        %1278 = vmatpush1.msra.mxu0 0.0
        %1279 = vmatprep.subr.mxu0 0.0
        %1280 = vmatpush1.msra.mxu0 0.0
        %1281 = vmatprep.subr.mxu0 0.0
        %1282 = vmatpush1.msra.mxu0 0.0
        %1283 = vmatprep.subr.mxu0 0.0
        %1284 = vmatpush1.msra.mxu0 0.0
        %1285 = vmatprep.subr.mxu0 0.0
        %1286 = vmatpush1.msra.mxu0 0.0
        %1287 = vmatprep.subr.mxu0 0.0
        %1288 = vmatpush1.msra.mxu0 0.0
        %1289 = vmatprep.subr.mxu0 0.0
        %1290 = vmatpush1.msra.mxu0 0.0
        %1291 = vmatprep.subr.mxu0 0.0
        %1292 = vmatpush1.msra.mxu0 0.0
        %1293 = vmatprep.subr.mxu0 0.0
        %1294 = vmatpush1.msra.mxu0 0.0
        %1295 = vmatprep.subr.mxu0 0.0
        %1296 = vmatpush1.msra.mxu0 0.0
        %1297 = vmatprep.subr.mxu0 0.0
        %1298 = vmatpush1.msra.mxu0 0.0
        %1299 = vmatprep.subr.mxu0 0.0
        %1300 = vmatpush1.msra.mxu0 0.0
        %1301 = vmatprep.subr.mxu0 0.0
        %1302 = vmatpush1.msra.mxu0 0.0
        %1303 = vmatprep.subr.mxu0 0.0
        %1304 = vmatpush1.msra.mxu0 0.0
        %1305 = vmatprep.mubr.f32.mxu0 0.0
        %1306 = vmatmul.mubr.f32.gmra.mrb[0].mxu0 %v1236
        %v1307 = vpop.f32.mrb[0].mxu0
        %v1308 = vadd.f32 0.0, %v1307
        %v1309 = vpop.f32.mrb[0].mxu0
        %v1310 = vadd.f32 0.0, %v1309
        %1311 = vmatprep.mubr.f32.mxu0 0.0
        %1312 = vmatmul.mubr.f32.gmra.mrb[0].mxu0 %v1239
        %v1313 = vpop.f32.mrb[0].mxu0
        %v1314 = vadd.f32 0.0, %v1313
        %v1315 = vpop.f32.mrb[0].mxu0
        %v1316 = vadd.f32 0.0, %v1315
        %1317 = vdwg.mxu0
        %v1318 = vadd.f32 %v1190, %v1308
        %v1319 = vadd.f32 %v1192, %v1310
        %v1320 = vadd.f32 %v1196, %v1314
        %v1321 = vadd.f32 %v1198, %v1316
        %1322 = vrot.lane.b32.xlu0 %v980, 65
        %v1323 = vpop.permute.xlu0 %1322
        %1325 = vrot.lane.b32.xlu0 %v979, 1
        %v1326 = vpop.permute.xlu0 %1325
        %1327 = vrot.lane.b32.xlu0 %v980, 1
        %v1328 = vpop.permute.xlu0 %1327
        %vm1329 = vcmask 7168
        %v1330 = vsel %vm1329, %v1326, %v1328
        %v1333 = vsel %vm1329, %v1323, %v1326
        %v1334 = vmul.f32 %v1333, %v1009
        %v1335 = vmul.f32 %v1330, %v1013
        %s1336 = scalar_lea.vmem [#allocation13], 48
        %v1337 = vld [vmem:[%s1336] sm:$0xff]
        %v1338 = vld [vmem:[%s1336 + $0x8] sm:$0xff]
        %v1340 = vsel %vm1033, %v1337, 0
        %v1343 = vsel %vm1033, %v1338, 0
        %1345 = vmatprep.subr.mxu0 %v1335
        %1346 = vmatpush1.msra.mxu0 %v1334
        %1347 = vmatprep.subr.mxu0 0.0
        %1348 = vmatpush1.msra.mxu0 0.0
        %1349 = vmatprep.subr.mxu0 0.0
        %1350 = vmatpush1.msra.mxu0 0.0
        %1351 = vmatprep.subr.mxu0 0.0
        %1352 = vmatpush1.msra.mxu0 0.0
        %1353 = vmatprep.subr.mxu0 0.0
        %1354 = vmatpush1.msra.mxu0 0.0
        %1355 = vmatprep.subr.mxu0 0.0
        %1356 = vmatpush1.msra.mxu0 0.0
        %1357 = vmatprep.subr.mxu0 0.0
        %1358 = vmatpush1.msra.mxu0 0.0
        %1359 = vmatprep.subr.mxu0 0.0
        %1360 = vmatpush1.msra.mxu0 0.0
        %1361 = vmatprep.subr.mxu0 0.0
        %1362 = vmatpush1.msra.mxu0 0.0
        %1363 = vmatprep.subr.mxu0 0.0
        %1364 = vmatpush1.msra.mxu0 0.0
        %1365 = vmatprep.subr.mxu0 0.0
        %1366 = vmatpush1.msra.mxu0 0.0
        %1367 = vmatprep.subr.mxu0 0.0
        %1368 = vmatpush1.msra.mxu0 0.0
        %1369 = vmatprep.subr.mxu0 0.0
        %1370 = vmatpush1.msra.mxu0 0.0
        %1371 = vmatprep.subr.mxu0 0.0
        %1372 = vmatpush1.msra.mxu0 0.0
        %1373 = vmatprep.subr.mxu0 0.0
        %1374 = vmatpush1.msra.mxu0 0.0
        %1375 = vmatprep.subr.mxu0 0.0
        %1376 = vmatpush1.msra.mxu0 0.0
        %1377 = vmatprep.subr.mxu0 0.0
        %1378 = vmatpush1.msra.mxu0 0.0
        %1379 = vmatprep.subr.mxu0 0.0
        %1380 = vmatpush1.msra.mxu0 0.0
        %1381 = vmatprep.subr.mxu0 0.0
        %1382 = vmatpush1.msra.mxu0 0.0
        %1383 = vmatprep.subr.mxu0 0.0
        %1384 = vmatpush1.msra.mxu0 0.0
        %1385 = vmatprep.subr.mxu0 0.0
        %1386 = vmatpush1.msra.mxu0 0.0
        %1387 = vmatprep.subr.mxu0 0.0
        %1388 = vmatpush1.msra.mxu0 0.0
        %1389 = vmatprep.subr.mxu0 0.0
        %1390 = vmatpush1.msra.mxu0 0.0
        %1391 = vmatprep.subr.mxu0 0.0
        %1392 = vmatpush1.msra.mxu0 0.0
        %1393 = vmatprep.subr.mxu0 0.0
        %1394 = vmatpush1.msra.mxu0 0.0
        %1395 = vmatprep.subr.mxu0 0.0
        %1396 = vmatpush1.msra.mxu0 0.0
        %1397 = vmatprep.subr.mxu0 0.0
        %1398 = vmatpush1.msra.mxu0 0.0
        %1399 = vmatprep.subr.mxu0 0.0
        %1400 = vmatpush1.msra.mxu0 0.0
        %1401 = vmatprep.subr.mxu0 0.0
        %1402 = vmatpush1.msra.mxu0 0.0
        %1403 = vmatprep.subr.mxu0 0.0
        %1404 = vmatpush1.msra.mxu0 0.0
        %1405 = vmatprep.subr.mxu0 0.0
        %1406 = vmatpush1.msra.mxu0 0.0
        %1407 = vmatprep.subr.mxu0 0.0
        %1408 = vmatpush1.msra.mxu0 0.0
        %1409 = vmatprep.mubr.f32.mxu0 0.0
        %1410 = vmatmul.mubr.f32.gmra.mrb[0].mxu0 %v1340
        %v1411 = vpop.f32.mrb[0].mxu0
        %v1412 = vadd.f32 0.0, %v1411
        %v1413 = vpop.f32.mrb[0].mxu0
        %v1414 = vadd.f32 0.0, %v1413
        %1415 = vmatprep.mubr.f32.mxu0 0.0
        %1416 = vmatmul.mubr.f32.gmra.mrb[0].mxu0 %v1343
        %v1417 = vpop.f32.mrb[0].mxu0
        %v1418 = vadd.f32 0.0, %v1417
        %v1419 = vpop.f32.mrb[0].mxu0
        %v1420 = vadd.f32 0.0, %v1419
        %1421 = vdwg.mxu0
        %v1422 = vadd.f32 %v1318, %v1412
        %v1423 = vadd.f32 %v1319, %v1414
        %v1424 = vadd.f32 %v1320, %v1418
        %v1425 = vadd.f32 %v1321, %v1420
        %s1426 = scalar_lea.vmem [#allocation13], 64
        %v1427 = vld [vmem:[%s1426] sm:$0xff]
        %v1428 = vld [vmem:[%s1426 + $0x8] sm:$0xff]
        %v1430 = vsel %vm1033, %v1427, 0
        %v1433 = vsel %vm1033, %v1428, 0
        %1435 = vmatprep.subr.mxu0 %v980
        %1436 = vmatpush1.msra.mxu0 %v979
        %1437 = vmatprep.subr.mxu0 0.0
        %1438 = vmatpush1.msra.mxu0 0.0
        %1439 = vmatprep.subr.mxu0 0.0
        %1440 = vmatpush1.msra.mxu0 0.0
        %1441 = vmatprep.subr.mxu0 0.0
        %1442 = vmatpush1.msra.mxu0 0.0
        %1443 = vmatprep.subr.mxu0 0.0
        %1444 = vmatpush1.msra.mxu0 0.0
        %1445 = vmatprep.subr.mxu0 0.0
        %1446 = vmatpush1.msra.mxu0 0.0
        %1447 = vmatprep.subr.mxu0 0.0
        %1448 = vmatpush1.msra.mxu0 0.0
        %1449 = vmatprep.subr.mxu0 0.0
        %1450 = vmatpush1.msra.mxu0 0.0
        %1451 = vmatprep.subr.mxu0 0.0
        %1452 = vmatpush1.msra.mxu0 0.0
        %1453 = vmatprep.subr.mxu0 0.0
        %1454 = vmatpush1.msra.mxu0 0.0
        %1455 = vmatprep.subr.mxu0 0.0
        %1456 = vmatpush1.msra.mxu0 0.0
        %1457 = vmatprep.subr.mxu0 0.0
        %1458 = vmatpush1.msra.mxu0 0.0
        %1459 = vmatprep.subr.mxu0 0.0
        %1460 = vmatpush1.msra.mxu0 0.0
        %1461 = vmatprep.subr.mxu0 0.0
        %1462 = vmatpush1.msra.mxu0 0.0
        %1463 = vmatprep.subr.mxu0 0.0
        %1464 = vmatpush1.msra.mxu0 0.0
        %1465 = vmatprep.subr.mxu0 0.0
        %1466 = vmatpush1.msra.mxu0 0.0
        %1467 = vmatprep.subr.mxu0 0.0
        %1468 = vmatpush1.msra.mxu0 0.0
        %1469 = vmatprep.subr.mxu0 0.0
        %1470 = vmatpush1.msra.mxu0 0.0
        %1471 = vmatprep.subr.mxu0 0.0
        %1472 = vmatpush1.msra.mxu0 0.0
        %1473 = vmatprep.subr.mxu0 0.0
        %1474 = vmatpush1.msra.mxu0 0.0
        %1475 = vmatprep.subr.mxu0 0.0
        %1476 = vmatpush1.msra.mxu0 0.0
        %1477 = vmatprep.subr.mxu0 0.0
        %1478 = vmatpush1.msra.mxu0 0.0
        %1479 = vmatprep.subr.mxu0 0.0
        %1480 = vmatpush1.msra.mxu0 0.0
        %1481 = vmatprep.subr.mxu0 0.0
        %1482 = vmatpush1.msra.mxu0 0.0
        %1483 = vmatprep.subr.mxu0 0.0
        %1484 = vmatpush1.msra.mxu0 0.0
        %1485 = vmatprep.subr.mxu0 0.0
        %1486 = vmatpush1.msra.mxu0 0.0
        %1487 = vmatprep.subr.mxu0 0.0
        %1488 = vmatpush1.msra.mxu0 0.0
        %1489 = vmatprep.subr.mxu0 0.0
        %1490 = vmatpush1.msra.mxu0 0.0
        %1491 = vmatprep.subr.mxu0 0.0
        %1492 = vmatpush1.msra.mxu0 0.0
        %1493 = vmatprep.subr.mxu0 0.0
        %1494 = vmatpush1.msra.mxu0 0.0
        %1495 = vmatprep.subr.mxu0 0.0
        %1496 = vmatpush1.msra.mxu0 0.0
        %1497 = vmatprep.subr.mxu0 0.0
        %1498 = vmatpush1.msra.mxu0 0.0
        %1499 = vmatprep.mubr.f32.mxu0 0.0
        %1500 = vmatmul.mubr.f32.gmra.mrb[0].mxu0 %v1430
        %v1501 = vpop.f32.mrb[0].mxu0
        %v1502 = vadd.f32 0.0, %v1501
        %v1503 = vpop.f32.mrb[0].mxu0
        %v1504 = vadd.f32 0.0, %v1503
        %1505 = vmatprep.mubr.f32.mxu0 0.0
        %1506 = vmatmul.mubr.f32.gmra.mrb[0].mxu0 %v1433
        %v1507 = vpop.f32.mrb[0].mxu0
        %v1508 = vadd.f32 0.0, %v1507
        %v1509 = vpop.f32.mrb[0].mxu0
        %v1510 = vadd.f32 0.0, %v1509
        %1511 = vdwg.mxu0
        %v1512 = vadd.f32 %v1422, %v1502
        %v1513 = vadd.f32 %v1423, %v1504
        %v1514 = vadd.f32 %v1424, %v1508
        %v1515 = vadd.f32 %v1425, %v1510
        %1516 = vrot.lane.b32.xlu0 %v979, 127
        %v1517 = vpop.permute.xlu0 %1516
        %1518 = vrot.lane.b32.xlu0 %v980, 127
        %v1519 = vpop.permute.xlu0 %1518
        %vm1520 = vcmask 1039360
        %v1521 = vsel %vm1520, %v1517, %v1519
        %1524 = vrot.lane.b32.xlu0 %v979, 63
        %v1525 = vpop.permute.xlu0 %1524
        %vm1527 = vcmask 515072
        %v1528 = vsel %vm1527, %v1519, %v1525
        %v1529 = vmul.f32 %v1521, %v1225
        %v1530 = vmul.f32 %v1528, %v1229
        %s1531 = scalar_lea.vmem [#allocation13], 80
        %v1532 = vld [vmem:[%s1531] sm:$0xff]
        %v1533 = vld [vmem:[%s1531 + $0x8] sm:$0xff]
        %v1535 = vsel %vm1033, %v1532, 0
        %v1538 = vsel %vm1033, %v1533, 0
        %1540 = vmatprep.subr.mxu0 %v1530
        %1541 = vmatpush1.msra.mxu0 %v1529
        %1542 = vmatprep.subr.mxu0 0.0
        %1543 = vmatpush1.msra.mxu0 0.0
        %1544 = vmatprep.subr.mxu0 0.0
        %1545 = vmatpush1.msra.mxu0 0.0
        %1546 = vmatprep.subr.mxu0 0.0
        %1547 = vmatpush1.msra.mxu0 0.0
        %1548 = vmatprep.subr.mxu0 0.0
        %1549 = vmatpush1.msra.mxu0 0.0
        %1550 = vmatprep.subr.mxu0 0.0
        %1551 = vmatpush1.msra.mxu0 0.0
        %1552 = vmatprep.subr.mxu0 0.0
        %1553 = vmatpush1.msra.mxu0 0.0
        %1554 = vmatprep.subr.mxu0 0.0
        %1555 = vmatpush1.msra.mxu0 0.0
        %1556 = vmatprep.subr.mxu0 0.0
        %1557 = vmatpush1.msra.mxu0 0.0
        %1558 = vmatprep.subr.mxu0 0.0
        %1559 = vmatpush1.msra.mxu0 0.0
        %1560 = vmatprep.subr.mxu0 0.0
        %1561 = vmatpush1.msra.mxu0 0.0
        %1562 = vmatprep.subr.mxu0 0.0
        %1563 = vmatpush1.msra.mxu0 0.0
        %1564 = vmatprep.subr.mxu0 0.0
        %1565 = vmatpush1.msra.mxu0 0.0
        %1566 = vmatprep.subr.mxu0 0.0
        %1567 = vmatpush1.msra.mxu0 0.0
        %1568 = vmatprep.subr.mxu0 0.0
        %1569 = vmatpush1.msra.mxu0 0.0
        %1570 = vmatprep.subr.mxu0 0.0
        %1571 = vmatpush1.msra.mxu0 0.0
        %1572 = vmatprep.subr.mxu0 0.0
        %1573 = vmatpush1.msra.mxu0 0.0
        %1574 = vmatprep.subr.mxu0 0.0
        %1575 = vmatpush1.msra.mxu0 0.0
        %1576 = vmatprep.subr.mxu0 0.0
        %1577 = vmatpush1.msra.mxu0 0.0
        %1578 = vmatprep.subr.mxu0 0.0
        %1579 = vmatpush1.msra.mxu0 0.0
        %1580 = vmatprep.subr.mxu0 0.0
        %1581 = vmatpush1.msra.mxu0 0.0
        %1582 = vmatprep.subr.mxu0 0.0
        %1583 = vmatpush1.msra.mxu0 0.0
        %1584 = vmatprep.subr.mxu0 0.0
        %1585 = vmatpush1.msra.mxu0 0.0
        %1586 = vmatprep.subr.mxu0 0.0
        %1587 = vmatpush1.msra.mxu0 0.0
        %1588 = vmatprep.subr.mxu0 0.0
        %1589 = vmatpush1.msra.mxu0 0.0
        %1590 = vmatprep.subr.mxu0 0.0
        %1591 = vmatpush1.msra.mxu0 0.0
        %1592 = vmatprep.subr.mxu0 0.0
        %1593 = vmatpush1.msra.mxu0 0.0
        %1594 = vmatprep.subr.mxu0 0.0
        %1595 = vmatpush1.msra.mxu0 0.0
        %1596 = vmatprep.subr.mxu0 0.0
        %1597 = vmatpush1.msra.mxu0 0.0
        %1598 = vmatprep.subr.mxu0 0.0
        %1599 = vmatpush1.msra.mxu0 0.0
        %1600 = vmatprep.subr.mxu0 0.0
        %1601 = vmatpush1.msra.mxu0 0.0
        %1602 = vmatprep.subr.mxu0 0.0
        %1603 = vmatpush1.msra.mxu0 0.0
        %1604 = vmatprep.mubr.f32.mxu0 0.0
        %1605 = vmatmul.mubr.f32.gmra.mrb[0].mxu0 %v1535
        %v1606 = vpop.f32.mrb[0].mxu0
        %v1607 = vadd.f32 0.0, %v1606
        %v1608 = vpop.f32.mrb[0].mxu0
        %v1609 = vadd.f32 0.0, %v1608
        %1610 = vmatprep.mubr.f32.mxu0 0.0
        %1611 = vmatmul.mubr.f32.gmra.mrb[0].mxu0 %v1538
        %v1612 = vpop.f32.mrb[0].mxu0
        %v1613 = vadd.f32 0.0, %v1612
        %v1614 = vpop.f32.mrb[0].mxu0
        %v1615 = vadd.f32 0.0, %v1614
        %1616 = vdwg.mxu0
        %v1617 = vadd.f32 %v1512, %v1607
        %v1618 = vadd.f32 %v1513, %v1609
        %v1619 = vadd.f32 %v1514, %v1613
        %v1620 = vadd.f32 %v1515, %v1615
        %1621 = vrot.lane.b32.xlu0 %v979, 113
        %v1622 = vpop.permute.xlu0 %1621
        %1623 = vrot.lane.b32.xlu0 %v980, 113
        %v1624 = vpop.permute.xlu0 %1623
        %vm1625 = vcmask 924672
        %v1626 = vsel %vm1625, %v1622, %v1624
        %1629 = vrot.lane.b32.xlu0 %v979, 49
        %v1630 = vpop.permute.xlu0 %1629
        %vm1632 = vcmask 400384
        %v1633 = vsel %vm1632, %v1624, %v1630
        %v1634 = vmul.f32 %v1626, %v1009
        %v1635 = vmul.f32 %v1633, %v1013
        %s1636 = scalar_lea.vmem [#allocation13], 96
        %v1637 = vld [vmem:[%s1636] sm:$0xff]
        %v1638 = vld [vmem:[%s1636 + $0x8] sm:$0xff]
        %v1640 = vsel %vm1033, %v1637, 0
        %v1643 = vsel %vm1033, %v1638, 0
        %1645 = vmatprep.subr.mxu0 %v1635
        %1646 = vmatpush1.msra.mxu0 %v1634
        %1647 = vmatprep.subr.mxu0 0.0
        %1648 = vmatpush1.msra.mxu0 0.0
        %1649 = vmatprep.subr.mxu0 0.0
        %1650 = vmatpush1.msra.mxu0 0.0
        %1651 = vmatprep.subr.mxu0 0.0
        %1652 = vmatpush1.msra.mxu0 0.0
        %1653 = vmatprep.subr.mxu0 0.0
        %1654 = vmatpush1.msra.mxu0 0.0
        %1655 = vmatprep.subr.mxu0 0.0
        %1656 = vmatpush1.msra.mxu0 0.0
        %1657 = vmatprep.subr.mxu0 0.0
        %1658 = vmatpush1.msra.mxu0 0.0
        %1659 = vmatprep.subr.mxu0 0.0
        %1660 = vmatpush1.msra.mxu0 0.0
        %1661 = vmatprep.subr.mxu0 0.0
        %1662 = vmatpush1.msra.mxu0 0.0
        %1663 = vmatprep.subr.mxu0 0.0
        %1664 = vmatpush1.msra.mxu0 0.0
        %1665 = vmatprep.subr.mxu0 0.0
        %1666 = vmatpush1.msra.mxu0 0.0
        %1667 = vmatprep.subr.mxu0 0.0
        %1668 = vmatpush1.msra.mxu0 0.0
        %1669 = vmatprep.subr.mxu0 0.0
        %1670 = vmatpush1.msra.mxu0 0.0
        %1671 = vmatprep.subr.mxu0 0.0
        %1672 = vmatpush1.msra.mxu0 0.0
        %1673 = vmatprep.subr.mxu0 0.0
        %1674 = vmatpush1.msra.mxu0 0.0
        %1675 = vmatprep.subr.mxu0 0.0
        %1676 = vmatpush1.msra.mxu0 0.0
        %1677 = vmatprep.subr.mxu0 0.0
        %1678 = vmatpush1.msra.mxu0 0.0
        %1679 = vmatprep.subr.mxu0 0.0
        %1680 = vmatpush1.msra.mxu0 0.0
        %1681 = vmatprep.subr.mxu0 0.0
        %1682 = vmatpush1.msra.mxu0 0.0
        %1683 = vmatprep.subr.mxu0 0.0
        %1684 = vmatpush1.msra.mxu0 0.0
        %1685 = vmatprep.subr.mxu0 0.0
        %1686 = vmatpush1.msra.mxu0 0.0
        %1687 = vmatprep.subr.mxu0 0.0
        %1688 = vmatpush1.msra.mxu0 0.0
        %1689 = vmatprep.subr.mxu0 0.0
        %1690 = vmatpush1.msra.mxu0 0.0
        %1691 = vmatprep.subr.mxu0 0.0
        %1692 = vmatpush1.msra.mxu0 0.0
        %1693 = vmatprep.subr.mxu0 0.0
        %1694 = vmatpush1.msra.mxu0 0.0
        %1695 = vmatprep.subr.mxu0 0.0
        %1696 = vmatpush1.msra.mxu0 0.0
        %1697 = vmatprep.subr.mxu0 0.0
        %1698 = vmatpush1.msra.mxu0 0.0
        %1699 = vmatprep.subr.mxu0 0.0
        %1700 = vmatpush1.msra.mxu0 0.0
        %1701 = vmatprep.subr.mxu0 0.0
        %1702 = vmatpush1.msra.mxu0 0.0
        %1703 = vmatprep.subr.mxu0 0.0
        %1704 = vmatpush1.msra.mxu0 0.0
        %1705 = vmatprep.subr.mxu0 0.0
        %1706 = vmatpush1.msra.mxu0 0.0
        %1707 = vmatprep.subr.mxu0 0.0
        %1708 = vmatpush1.msra.mxu0 0.0
        %1709 = vmatprep.mubr.f32.mxu0 0.0
        %1710 = vmatmul.mubr.f32.gmra.mrb[0].mxu0 %v1640
        %v1711 = vpop.f32.mrb[0].mxu0
        %v1712 = vadd.f32 0.0, %v1711
        %v1713 = vpop.f32.mrb[0].mxu0
        %v1714 = vadd.f32 0.0, %v1713
        %1715 = vmatprep.mubr.f32.mxu0 0.0
        %1716 = vmatmul.mubr.f32.gmra.mrb[0].mxu0 %v1643
        %v1717 = vpop.f32.mrb[0].mxu0
        %v1718 = vadd.f32 0.0, %v1717
        %v1719 = vpop.f32.mrb[0].mxu0
        %v1720 = vadd.f32 0.0, %v1719
        %1721 = vdwg.mxu0
        %v1722 = vadd.f32 %v1617, %v1712
        %v1723 = vadd.f32 %v1618, %v1714
        %v1724 = vadd.f32 %v1619, %v1718
        %v1725 = vadd.f32 %v1620, %v1720
        %1726 = vrot.lane.b32.xlu0 %v979, 112
        %v1727 = vpop.permute.xlu0 %1726
        %1728 = vrot.lane.b32.xlu0 %v980, 112
        %v1729 = vpop.permute.xlu0 %1728
        %vm1730 = vcmask 916480
        %v1731 = vsel %vm1730, %v1727, %v1729
        %1734 = vrot.lane.b32.xlu0 %v979, 48
        %v1735 = vpop.permute.xlu0 %1734
        %vm1737 = vcmask 392192
        %v1738 = vsel %vm1737, %v1729, %v1735
        %s1739 = scalar_lea.vmem [#allocation13], 112
        %v1740 = vld [vmem:[%s1739] sm:$0xff]
        %v1741 = vld [vmem:[%s1739 + $0x8] sm:$0xff]
        %v1743 = vsel %vm1033, %v1740, 0
        %v1746 = vsel %vm1033, %v1741, 0
        %1748 = vmatprep.subr.mxu0 %v1738
        %1749 = vmatpush1.msra.mxu0 %v1731
        %1750 = vmatprep.subr.mxu0 0.0
        %1751 = vmatpush1.msra.mxu0 0.0
        %1752 = vmatprep.subr.mxu0 0.0
        %1753 = vmatpush1.msra.mxu0 0.0
        %1754 = vmatprep.subr.mxu0 0.0
        %1755 = vmatpush1.msra.mxu0 0.0
        %1756 = vmatprep.subr.mxu0 0.0
        %1757 = vmatpush1.msra.mxu0 0.0
        %1758 = vmatprep.subr.mxu0 0.0
        %1759 = vmatpush1.msra.mxu0 0.0
        %1760 = vmatprep.subr.mxu0 0.0
        %1761 = vmatpush1.msra.mxu0 0.0
        %1762 = vmatprep.subr.mxu0 0.0
        %1763 = vmatpush1.msra.mxu0 0.0
        %1764 = vmatprep.subr.mxu0 0.0
        %1765 = vmatpush1.msra.mxu0 0.0
        %1766 = vmatprep.subr.mxu0 0.0
        %1767 = vmatpush1.msra.mxu0 0.0
        %1768 = vmatprep.subr.mxu0 0.0
        %1769 = vmatpush1.msra.mxu0 0.0
        %1770 = vmatprep.subr.mxu0 0.0
        %1771 = vmatpush1.msra.mxu0 0.0
        %1772 = vmatprep.subr.mxu0 0.0
        %1773 = vmatpush1.msra.mxu0 0.0
        %1774 = vmatprep.subr.mxu0 0.0
        %1775 = vmatpush1.msra.mxu0 0.0
        %1776 = vmatprep.subr.mxu0 0.0
        %1777 = vmatpush1.msra.mxu0 0.0
        %1778 = vmatprep.subr.mxu0 0.0
        %1779 = vmatpush1.msra.mxu0 0.0
        %1780 = vmatprep.subr.mxu0 0.0
        %1781 = vmatpush1.msra.mxu0 0.0
        %1782 = vmatprep.subr.mxu0 0.0
        %1783 = vmatpush1.msra.mxu0 0.0
        %1784 = vmatprep.subr.mxu0 0.0
        %1785 = vmatpush1.msra.mxu0 0.0
        %1786 = vmatprep.subr.mxu0 0.0
        %1787 = vmatpush1.msra.mxu0 0.0
        %1788 = vmatprep.subr.mxu0 0.0
        %1789 = vmatpush1.msra.mxu0 0.0
        %1790 = vmatprep.subr.mxu0 0.0
        %1791 = vmatpush1.msra.mxu0 0.0
        %1792 = vmatprep.subr.mxu0 0.0
        %1793 = vmatpush1.msra.mxu0 0.0
        %1794 = vmatprep.subr.mxu0 0.0
        %1795 = vmatpush1.msra.mxu0 0.0
        %1796 = vmatprep.subr.mxu0 0.0
        %1797 = vmatpush1.msra.mxu0 0.0
        %1798 = vmatprep.subr.mxu0 0.0
        %1799 = vmatpush1.msra.mxu0 0.0
        %1800 = vmatprep.subr.mxu0 0.0
        %1801 = vmatpush1.msra.mxu0 0.0
        %1802 = vmatprep.subr.mxu0 0.0
        %1803 = vmatpush1.msra.mxu0 0.0
        %1804 = vmatprep.subr.mxu0 0.0
        %1805 = vmatpush1.msra.mxu0 0.0
        %1806 = vmatprep.subr.mxu0 0.0
        %1807 = vmatpush1.msra.mxu0 0.0
        %1808 = vmatprep.subr.mxu0 0.0
        %1809 = vmatpush1.msra.mxu0 0.0
        %1810 = vmatprep.subr.mxu0 0.0
        %1811 = vmatpush1.msra.mxu0 0.0
        %1812 = vmatprep.mubr.f32.mxu0 0.0
        %1813 = vmatmul.mubr.f32.gmra.mrb[0].mxu0 %v1743
        %v1814 = vpop.f32.mrb[0].mxu0
        %v1815 = vadd.f32 0.0, %v1814
        %v1816 = vpop.f32.mrb[0].mxu0
        %v1817 = vadd.f32 0.0, %v1816
        %1818 = vmatprep.mubr.f32.mxu0 0.0
        %1819 = vmatmul.mubr.f32.gmra.mrb[0].mxu0 %v1746
        %v1820 = vpop.f32.mrb[0].mxu0
        %v1821 = vadd.f32 0.0, %v1820
        %v1822 = vpop.f32.mrb[0].mxu0
        %v1823 = vadd.f32 0.0, %v1822
        %1824 = vdwg.mxu0
        %v1825 = vadd.f32 %v1722, %v1815
        %v1826 = vadd.f32 %v1723, %v1817
        %v1827 = vadd.f32 %v1724, %v1821
        %v1828 = vadd.f32 %v1725, %v1823
        %1829 = vrot.lane.b32.xlu0 %v979, 111
        %v1830 = vpop.permute.xlu0 %1829
        %1831 = vrot.lane.b32.xlu0 %v980, 111
        %v1832 = vpop.permute.xlu0 %1831
        %vm1833 = vcmask 908288
        %v1834 = vsel %vm1833, %v1830, %v1832
        %1837 = vrot.lane.b32.xlu0 %v979, 47
        %v1838 = vpop.permute.xlu0 %1837
        %vm1840 = vcmask 384000
        %v1841 = vsel %vm1840, %v1832, %v1838
        %v1842 = vmul.f32 %v1834, %v1225
        %v1843 = vmul.f32 %v1841, %v1229
        %s1844 = scalar_lea.vmem [#allocation13], 128
        %v1845 = vld [vmem:[%s1844] sm:$0xff]
        %v1846 = vld [vmem:[%s1844 + $0x8] sm:$0xff]
        %v1848 = vsel %vm1033, %v1845, 0
        %v1851 = vsel %vm1033, %v1846, 0
        %1853 = vmatprep.subr.mxu0 %v1843
        %1854 = vmatpush1.msra.mxu0 %v1842
        %1855 = vmatprep.subr.mxu0 0.0
        %1856 = vmatpush1.msra.mxu0 0.0
        %1857 = vmatprep.subr.mxu0 0.0
        %1858 = vmatpush1.msra.mxu0 0.0
        %1859 = vmatprep.subr.mxu0 0.0
        %1860 = vmatpush1.msra.mxu0 0.0
        %1861 = vmatprep.subr.mxu0 0.0
        %1862 = vmatpush1.msra.mxu0 0.0
        %1863 = vmatprep.subr.mxu0 0.0
        %1864 = vmatpush1.msra.mxu0 0.0
        %1865 = vmatprep.subr.mxu0 0.0
        %1866 = vmatpush1.msra.mxu0 0.0
        %1867 = vmatprep.subr.mxu0 0.0
        %1868 = vmatpush1.msra.mxu0 0.0
        %1869 = vmatprep.subr.mxu0 0.0
        %1870 = vmatpush1.msra.mxu0 0.0
        %1871 = vmatprep.subr.mxu0 0.0
        %1872 = vmatpush1.msra.mxu0 0.0
        %1873 = vmatprep.subr.mxu0 0.0
        %1874 = vmatpush1.msra.mxu0 0.0
        %1875 = vmatprep.subr.mxu0 0.0
        %1876 = vmatpush1.msra.mxu0 0.0
        %1877 = vmatprep.subr.mxu0 0.0
        %1878 = vmatpush1.msra.mxu0 0.0
        %1879 = vmatprep.subr.mxu0 0.0
        %1880 = vmatpush1.msra.mxu0 0.0
        %1881 = vmatprep.subr.mxu0 0.0
        %1882 = vmatpush1.msra.mxu0 0.0
        %1883 = vmatprep.subr.mxu0 0.0
        %1884 = vmatpush1.msra.mxu0 0.0
        %1885 = vmatprep.subr.mxu0 0.0
        %1886 = vmatpush1.msra.mxu0 0.0
        %1887 = vmatprep.subr.mxu0 0.0
        %1888 = vmatpush1.msra.mxu0 0.0
        %1889 = vmatprep.subr.mxu0 0.0
        %1890 = vmatpush1.msra.mxu0 0.0
        %1891 = vmatprep.subr.mxu0 0.0
        %1892 = vmatpush1.msra.mxu0 0.0
        %1893 = vmatprep.subr.mxu0 0.0
        %1894 = vmatpush1.msra.mxu0 0.0
        %1895 = vmatprep.subr.mxu0 0.0
        %1896 = vmatpush1.msra.mxu0 0.0
        %1897 = vmatprep.subr.mxu0 0.0
        %1898 = vmatpush1.msra.mxu0 0.0
        %1899 = vmatprep.subr.mxu0 0.0
        %1900 = vmatpush1.msra.mxu0 0.0
        %1901 = vmatprep.subr.mxu0 0.0
        %1902 = vmatpush1.msra.mxu0 0.0
        %1903 = vmatprep.subr.mxu0 0.0
        %1904 = vmatpush1.msra.mxu0 0.0
        %1905 = vmatprep.subr.mxu0 0.0
        %1906 = vmatpush1.msra.mxu0 0.0
        %1907 = vmatprep.subr.mxu0 0.0
        %1908 = vmatpush1.msra.mxu0 0.0
        %1909 = vmatprep.subr.mxu0 0.0
        %1910 = vmatpush1.msra.mxu0 0.0
        %1911 = vmatprep.subr.mxu0 0.0
        %1912 = vmatpush1.msra.mxu0 0.0
        %1913 = vmatprep.subr.mxu0 0.0
        %1914 = vmatpush1.msra.mxu0 0.0
        %1915 = vmatprep.subr.mxu0 0.0
        %1916 = vmatpush1.msra.mxu0 0.0
        %1917 = vmatprep.mubr.f32.mxu0 0.0
        %1918 = vmatmul.mubr.f32.gmra.mrb[0].mxu0 %v1848
        %v1919 = vpop.f32.mrb[0].mxu0
        %v1920 = vadd.f32 0.0, %v1919
        %v1921 = vpop.f32.mrb[0].mxu0
        %v1922 = vadd.f32 0.0, %v1921
        %1923 = vmatprep.mubr.f32.mxu0 0.0
        %1924 = vmatmul.mubr.f32.gmra.mrb[0].mxu0 %v1851
        %v1925 = vpop.f32.mrb[0].mxu0
        %v1926 = vadd.f32 0.0, %v1925
        %v1927 = vpop.f32.mrb[0].mxu0
        %v1928 = vadd.f32 0.0, %v1927
        %1929 = vdwg.mxu0
        %v1930 = vadd.f32 %v1825, %v1920
        %v1931 = vadd.f32 %v1826, %v1922
        %v1932 = vadd.f32 %v1827, %v1926
        %v1933 = vadd.f32 %v1828, %v1928
        %v1934 = vld [vmem:[#allocation14] sm:$0xff]
        %v1935 = vld [vmem:[#allocation14 + $0x8] sm:$0xff]
        %1937 = vset.pattern.permute.xlu0 0
        %1938 = vperm.xlu0 %1937, %v1934
        %v1939 = vpop.permute.xlu0 %1938
        %1942 = vset.pattern.permute.xlu0 0
        %1943 = vperm.xlu0 %1942, %v1935
        %v1944 = vpop.permute.xlu0 %1943
        %v1946 = vmul.f32 %v1930, %v1939
        %v1947 = vmul.f32 %v1931, %v1939
        %v1948 = vmul.f32 %v1932, %v1944
        %v1949 = vmul.f32 %v1933, %v1944
        %v1950 = vld [vmem:[#allocation16] sm:$0xff]
        %v1951 = vld [vmem:[#allocation16 + $0x8] sm:$0xff]
        %1953 = vset.pattern.permute.xlu0 0
        %1954 = vperm.xlu0 %1953, %v1950
        %v1955 = vpop.permute.xlu0 %1954
        %1958 = vset.pattern.permute.xlu0 0
        %1959 = vperm.xlu0 %1958, %v1951
        %v1960 = vpop.permute.xlu0 %1959
        %v1962 = vadd.f32 %v1946, %v1955
        %v1963 = vadd.f32 %v1947, %v1955
        %v1964 = vadd.f32 %v1948, %v1960
        %v1965 = vadd.f32 %v1949, %v1960
        %vm1966 = vcmp.gt.f32.partialorder %v1962, 0.0
        %vm1967 = vcmp.gt.f32.partialorder %v1963, 0.0
        %vm1968 = vcmp.gt.f32.partialorder %v1964, 0.0
        %vm1969 = vcmp.gt.f32.partialorder %v1965, 0.0
        %v1970 = vmul.f32 %v1962, 0.1
        %v1971 = vmul.f32 %v1963, 0.1
        %v1972 = vmul.f32 %v1964, 0.1
        %v1973 = vmul.f32 %v1965, 0.1
        %v1974 = vsel %vm1966, %v1962, %v1970
        %v1975 = vsel %vm1967, %v1963, %v1971
        %v1976 = vsel %vm1968, %v1964, %v1972
        %v1977 = vsel %vm1969, %v1965, %v1973
        %v1978 = vld [vmem:[#allocation17] sm:$0xff]
        %v1980 = vsel %vm1025, %v1978, 0
        %1982 = vmatprep.subr.mxu0 %v1975
        %1983 = vmatpush1.msra.mxu0 %v1974
        %1984 = vmatprep.subr.mxu0 %v1977
        %1985 = vmatpush1.msra.mxu0 %v1976
        %1986 = vmatprep.subr.mxu0 0.0
        %1987 = vmatpush1.msra.mxu0 0.0
        %1988 = vmatprep.subr.mxu0 0.0
        %1989 = vmatpush1.msra.mxu0 0.0
        %1990 = vmatprep.subr.mxu0 0.0
        %1991 = vmatpush1.msra.mxu0 0.0
        %1992 = vmatprep.subr.mxu0 0.0
        %1993 = vmatpush1.msra.mxu0 0.0
        %1994 = vmatprep.subr.mxu0 0.0
        %1995 = vmatpush1.msra.mxu0 0.0
        %1996 = vmatprep.subr.mxu0 0.0
        %1997 = vmatpush1.msra.mxu0 0.0
        %1998 = vmatprep.subr.mxu0 0.0
        %1999 = vmatpush1.msra.mxu0 0.0
        %2000 = vmatprep.subr.mxu0 0.0
        %2001 = vmatpush1.msra.mxu0 0.0
        %2002 = vmatprep.subr.mxu0 0.0
        %2003 = vmatpush1.msra.mxu0 0.0
        %2004 = vmatprep.subr.mxu0 0.0
        %2005 = vmatpush1.msra.mxu0 0.0
        %2006 = vmatprep.subr.mxu0 0.0
        %2007 = vmatpush1.msra.mxu0 0.0
        %2008 = vmatprep.subr.mxu0 0.0
        %2009 = vmatpush1.msra.mxu0 0.0
        %2010 = vmatprep.subr.mxu0 0.0
        %2011 = vmatpush1.msra.mxu0 0.0
        %2012 = vmatprep.subr.mxu0 0.0
        %2013 = vmatpush1.msra.mxu0 0.0
        %2014 = vmatprep.subr.mxu0 0.0
        %2015 = vmatpush1.msra.mxu0 0.0
        %2016 = vmatprep.subr.mxu0 0.0
        %2017 = vmatpush1.msra.mxu0 0.0
        %2018 = vmatprep.subr.mxu0 0.0
        %2019 = vmatpush1.msra.mxu0 0.0
        %2020 = vmatprep.subr.mxu0 0.0
        %2021 = vmatpush1.msra.mxu0 0.0
        %2022 = vmatprep.subr.mxu0 0.0
        %2023 = vmatpush1.msra.mxu0 0.0
        %2024 = vmatprep.subr.mxu0 0.0
        %2025 = vmatpush1.msra.mxu0 0.0
        %2026 = vmatprep.subr.mxu0 0.0
        %2027 = vmatpush1.msra.mxu0 0.0
        %2028 = vmatprep.subr.mxu0 0.0
        %2029 = vmatpush1.msra.mxu0 0.0
        %2030 = vmatprep.subr.mxu0 0.0
        %2031 = vmatpush1.msra.mxu0 0.0
        %2032 = vmatprep.subr.mxu0 0.0
        %2033 = vmatpush1.msra.mxu0 0.0
        %2034 = vmatprep.subr.mxu0 0.0
        %2035 = vmatpush1.msra.mxu0 0.0
        %2036 = vmatprep.subr.mxu0 0.0
        %2037 = vmatpush1.msra.mxu0 0.0
        %2038 = vmatprep.subr.mxu0 0.0
        %2039 = vmatpush1.msra.mxu0 0.0
        %2040 = vmatprep.subr.mxu0 0.0
        %2041 = vmatpush1.msra.mxu0 0.0
        %2042 = vmatprep.subr.mxu0 0.0
        %2043 = vmatpush1.msra.mxu0 0.0
        %2044 = vmatprep.subr.mxu0 0.0
        %2045 = vmatpush1.msra.mxu0 0.0
        %2046 = vmatprep.mubr.f32.mxu0 0.0
        %2047 = vmatmul.mubr.f32.gmra.mrb[0].mxu0 %v1980
        %v2048 = vpop.f32.mrb[0].mxu0
        %v2049 = vadd.f32 0.0, %v2048
        %v2050 = vpop.f32.mrb[0].mxu0
        %v2051 = vadd.f32 0.0, %v2050
        %2052 = vdwg.mxu0
        %v2053 = vld [vmem:[#allocation19] sm:$0xff]
        %2055 = vset.pattern.permute.xlu0 0
        %2056 = vperm.xlu0 %2055, %v2053
        %v2057 = vpop.permute.xlu0 %2056
        %v2059 = vmul.f32 %v2049, %v2057
        %v2060 = vmul.f32 %v2051, %v2057
        %v2061 = vld [vmem:[#allocation20] sm:$0xff]
        %2063 = vset.pattern.permute.xlu0 0
        %2064 = vperm.xlu0 %2063, %v2061
        %v2065 = vpop.permute.xlu0 %2064
        %v2067 = vadd.f32 %v2059, %v2065
        %v2068 = vadd.f32 %v2060, %v2065
        %vm2069 = vcmp.gt.f32.partialorder %v2067, 0.0
        %vm2070 = vcmp.gt.f32.partialorder %v2068, 0.0
        %v2071 = vmul.f32 %v2067, 0.1
        %v2072 = vmul.f32 %v2068, 0.1
        %v2073 = vsel %vm2069, %v2067, %v2071
        %v2074 = vsel %vm2070, %v2068, %v2072
        %v2075 = vmul.f32 %v2073, %v972
        %v2076 = vmul.f32 %v2074, %v976
        %2078 = vrot.lane.b32.xlu0 %v2076, 81
        %v2079 = vpop.permute.xlu0 %2078
        %2082 = vrot.lane.b32.xlu0 %v2075, 17
        %v2083 = vpop.permute.xlu0 %2082
        %2084 = vrot.lane.b32.xlu0 %v2076, 17
        %v2085 = vpop.permute.xlu0 %2084
        %v2086 = vsel %vm990, %v2083, %v2085
        %v2089 = vsel %vm990, %v2079, %v2083
        %v2090 = vmul.f32 %v2089, %v1009
        %v2091 = vmul.f32 %v2086, %v1013
        %v2092 = vld [vmem:[#allocation22] sm:$0xff]
        %v2093 = vld [vmem:[#allocation22 + $0x8] sm:$0xff]
        %2094 = vrot.lane.b32.xlu0 %v2076, 80
        %v2095 = vpop.permute.xlu0 %2094
        %2097 = vrot.lane.b32.xlu0 %v2075, 16
        %v2098 = vpop.permute.xlu0 %2097
        %2099 = vrot.lane.b32.xlu0 %v2076, 16
        %v2100 = vpop.permute.xlu0 %2099
        %v2101 = vsel %vm1025, %v2098, %v2100
        %v2104 = vsel %vm1025, %v2095, %v2098
        %s2105 = scalar_lea.vmem [#allocation22], 16
        %v2106 = vld [vmem:[%s2105] sm:$0xff]
        %v2107 = vld [vmem:[%s2105 + $0x8] sm:$0xff]
        %v2109 = vsel %vm1033, %v2106, 0
        %v2112 = vsel %vm1033, %v2107, 0
        %2114 = vmatprep.subr.mxu0 %v2101
        %2115 = vmatpush1.msra.mxu0 %v2104
        %2116 = vmatprep.subr.mxu0 0.0
        %2117 = vmatpush1.msra.mxu0 0.0
        %2118 = vmatprep.subr.mxu0 0.0
        %2119 = vmatpush1.msra.mxu0 0.0
        %2120 = vmatprep.subr.mxu0 0.0
        %2121 = vmatpush1.msra.mxu0 0.0
        %2122 = vmatprep.subr.mxu0 0.0
        %2123 = vmatpush1.msra.mxu0 0.0
        %2124 = vmatprep.subr.mxu0 0.0
        %2125 = vmatpush1.msra.mxu0 0.0
        %2126 = vmatprep.subr.mxu0 0.0
        %2127 = vmatpush1.msra.mxu0 0.0
        %2128 = vmatprep.subr.mxu0 0.0
        %2129 = vmatpush1.msra.mxu0 0.0
        %2130 = vmatprep.subr.mxu0 0.0
        %2131 = vmatpush1.msra.mxu0 0.0
        %2132 = vmatprep.subr.mxu0 0.0
        %2133 = vmatpush1.msra.mxu0 0.0
        %2134 = vmatprep.subr.mxu0 0.0
        %2135 = vmatpush1.msra.mxu0 0.0
        %2136 = vmatprep.subr.mxu0 0.0
        %2137 = vmatpush1.msra.mxu0 0.0
        %2138 = vmatprep.subr.mxu0 0.0
        %2139 = vmatpush1.msra.mxu0 0.0
        %2140 = vmatprep.subr.mxu0 0.0
        %2141 = vmatpush1.msra.mxu0 0.0
        %2142 = vmatprep.subr.mxu0 0.0
        %2143 = vmatpush1.msra.mxu0 0.0
        %2144 = vmatprep.subr.mxu0 0.0
        %2145 = vmatpush1.msra.mxu0 0.0
        %2146 = vmatprep.subr.mxu0 0.0
        %2147 = vmatpush1.msra.mxu0 0.0
        %2148 = vmatprep.subr.mxu0 0.0
        %2149 = vmatpush1.msra.mxu0 0.0
        %2150 = vmatprep.subr.mxu0 0.0
        %2151 = vmatpush1.msra.mxu0 0.0
        %2152 = vmatprep.subr.mxu0 0.0
        %2153 = vmatpush1.msra.mxu0 0.0
        %2154 = vmatprep.subr.mxu0 0.0
        %2155 = vmatpush1.msra.mxu0 0.0
        %2156 = vmatprep.subr.mxu0 0.0
        %2157 = vmatpush1.msra.mxu0 0.0
        %2158 = vmatprep.subr.mxu0 0.0
        %2159 = vmatpush1.msra.mxu0 0.0
        %2160 = vmatprep.subr.mxu0 0.0
        %2161 = vmatpush1.msra.mxu0 0.0
        %2162 = vmatprep.subr.mxu0 0.0
        %2163 = vmatpush1.msra.mxu0 0.0
        %2164 = vmatprep.subr.mxu0 0.0
        %2165 = vmatpush1.msra.mxu0 0.0
        %2166 = vmatprep.subr.mxu0 0.0
        %2167 = vmatpush1.msra.mxu0 0.0
        %2168 = vmatprep.subr.mxu0 0.0
        %2169 = vmatpush1.msra.mxu0 0.0
        %2170 = vmatprep.subr.mxu0 0.0
        %2171 = vmatpush1.msra.mxu0 0.0
        %2172 = vmatprep.subr.mxu0 0.0
        %2173 = vmatpush1.msra.mxu0 0.0
        %2174 = vmatprep.subr.mxu0 0.0
        %2175 = vmatpush1.msra.mxu0 0.0
        %2176 = vmatprep.subr.mxu0 0.0
        %2177 = vmatpush1.msra.mxu0 0.0
        %2178 = vmatprep.mubr.f32.mxu0 0.0
        %2179 = vmatmul.mubr.f32.gmra.mrb[0].mxu0 %v2109
        %v2180 = vpop.f32.mrb[0].mxu0
        %v2181 = vadd.f32 0.0, %v2180
        %v2182 = vpop.f32.mrb[0].mxu0
        %v2183 = vadd.f32 0.0, %v2182
        %2184 = vmatprep.mubr.f32.mxu0 0.0
        %2185 = vmatmul.mubr.f32.gmra.mrb[0].mxu0 %v2112
        %v2186 = vpop.f32.mrb[0].mxu0
        %v2187 = vadd.f32 0.0, %v2186
        %v2188 = vpop.f32.mrb[0].mxu0
        %v2189 = vadd.f32 0.0, %v2188
        %2190 = vdwg.mxu0
        %v2192 = vsel %vm1033, %v2092, 0
        %v2195 = vsel %vm1033, %v2093, 0
        %2197 = vmatprep.subr.mxu0 %v2091
        %2198 = vmatpush1.msra.mxu0 %v2090
        %2199 = vmatprep.subr.mxu0 0.0
        %2200 = vmatpush1.msra.mxu0 0.0
        %2201 = vmatprep.subr.mxu0 0.0
        %2202 = vmatpush1.msra.mxu0 0.0
        %2203 = vmatprep.subr.mxu0 0.0
        %2204 = vmatpush1.msra.mxu0 0.0
        %2205 = vmatprep.subr.mxu0 0.0
        %2206 = vmatpush1.msra.mxu0 0.0
        %2207 = vmatprep.subr.mxu0 0.0
        %2208 = vmatpush1.msra.mxu0 0.0
        %2209 = vmatprep.subr.mxu0 0.0
        %2210 = vmatpush1.msra.mxu0 0.0
        %2211 = vmatprep.subr.mxu0 0.0
        %2212 = vmatpush1.msra.mxu0 0.0
        %2213 = vmatprep.subr.mxu0 0.0
        %2214 = vmatpush1.msra.mxu0 0.0
        %2215 = vmatprep.subr.mxu0 0.0
        %2216 = vmatpush1.msra.mxu0 0.0
        %2217 = vmatprep.subr.mxu0 0.0
        %2218 = vmatpush1.msra.mxu0 0.0
        %2219 = vmatprep.subr.mxu0 0.0
        %2220 = vmatpush1.msra.mxu0 0.0
        %2221 = vmatprep.subr.mxu0 0.0
        %2222 = vmatpush1.msra.mxu0 0.0
        %2223 = vmatprep.subr.mxu0 0.0
        %2224 = vmatpush1.msra.mxu0 0.0
        %2225 = vmatprep.subr.mxu0 0.0
        %2226 = vmatpush1.msra.mxu0 0.0
        %2227 = vmatprep.subr.mxu0 0.0
        %2228 = vmatpush1.msra.mxu0 0.0
        %2229 = vmatprep.subr.mxu0 0.0
        %2230 = vmatpush1.msra.mxu0 0.0
        %2231 = vmatprep.subr.mxu0 0.0
        %2232 = vmatpush1.msra.mxu0 0.0
        %2233 = vmatprep.subr.mxu0 0.0
        %2234 = vmatpush1.msra.mxu0 0.0
        %2235 = vmatprep.subr.mxu0 0.0
        %2236 = vmatpush1.msra.mxu0 0.0
        %2237 = vmatprep.subr.mxu0 0.0
        %2238 = vmatpush1.msra.mxu0 0.0
        %2239 = vmatprep.subr.mxu0 0.0
        %2240 = vmatpush1.msra.mxu0 0.0
        %2241 = vmatprep.subr.mxu0 0.0
        %2242 = vmatpush1.msra.mxu0 0.0
        %2243 = vmatprep.subr.mxu0 0.0
        %2244 = vmatpush1.msra.mxu0 0.0
        %2245 = vmatprep.subr.mxu0 0.0
        %2246 = vmatpush1.msra.mxu0 0.0
        %2247 = vmatprep.subr.mxu0 0.0
        %2248 = vmatpush1.msra.mxu0 0.0
        %2249 = vmatprep.subr.mxu0 0.0
        %2250 = vmatpush1.msra.mxu0 0.0
        %2251 = vmatprep.subr.mxu0 0.0
        %2252 = vmatpush1.msra.mxu0 0.0
        %2253 = vmatprep.subr.mxu0 0.0
        %2254 = vmatpush1.msra.mxu0 0.0
        %2255 = vmatprep.subr.mxu0 0.0
        %2256 = vmatpush1.msra.mxu0 0.0
        %2257 = vmatprep.subr.mxu0 0.0
        %2258 = vmatpush1.msra.mxu0 0.0
        %2259 = vmatprep.subr.mxu0 0.0
        %2260 = vmatpush1.msra.mxu0 0.0
        %2261 = vmatprep.mubr.f32.mxu0 0.0
        %2262 = vmatmul.mubr.f32.gmra.mrb[0].mxu0 %v2192
        %v2263 = vpop.f32.mrb[0].mxu0
        %v2264 = vadd.f32 %v2181, %v2263
        %v2265 = vpop.f32.mrb[0].mxu0
        %v2266 = vadd.f32 %v2183, %v2265
        %2267 = vmatprep.mubr.f32.mxu0 0.0
        %2268 = vmatmul.mubr.f32.gmra.mrb[0].mxu0 %v2195
        %v2269 = vpop.f32.mrb[0].mxu0
        %v2270 = vadd.f32 %v2187, %v2269
        %v2271 = vpop.f32.mrb[0].mxu0
        %v2272 = vadd.f32 %v2189, %v2271
        %2273 = vdwg.mxu0
        %2274 = vrot.lane.b32.xlu0 %v2076, 79
        %v2275 = vpop.permute.xlu0 %2274
        %2277 = vrot.lane.b32.xlu0 %v2075, 15
        %v2278 = vpop.permute.xlu0 %2277
        %2279 = vrot.lane.b32.xlu0 %v2076, 15
        %v2280 = vpop.permute.xlu0 %2279
        %v2281 = vsel %vm1207, %v2278, %v2280
        %v2284 = vsel %vm1207, %v2275, %v2278
        %v2285 = vmul.f32 %v2284, %v1225
        %v2286 = vmul.f32 %v2281, %v1229
        %s2287 = scalar_lea.vmem [#allocation22], 32
        %v2288 = vld [vmem:[%s2287] sm:$0xff]
        %v2289 = vld [vmem:[%s2287 + $0x8] sm:$0xff]
        %v2291 = vsel %vm1033, %v2288, 0
        %v2294 = vsel %vm1033, %v2289, 0
        %2296 = vmatprep.subr.mxu0 %v2286
        %2297 = vmatpush1.msra.mxu0 %v2285
        %2298 = vmatprep.subr.mxu0 0.0
        %2299 = vmatpush1.msra.mxu0 0.0
        %2300 = vmatprep.subr.mxu0 0.0
        %2301 = vmatpush1.msra.mxu0 0.0
        %2302 = vmatprep.subr.mxu0 0.0
        %2303 = vmatpush1.msra.mxu0 0.0
        %2304 = vmatprep.subr.mxu0 0.0
        %2305 = vmatpush1.msra.mxu0 0.0
        %2306 = vmatprep.subr.mxu0 0.0
        %2307 = vmatpush1.msra.mxu0 0.0
        %2308 = vmatprep.subr.mxu0 0.0
        %2309 = vmatpush1.msra.mxu0 0.0
        %2310 = vmatprep.subr.mxu0 0.0
        %2311 = vmatpush1.msra.mxu0 0.0
        %2312 = vmatprep.subr.mxu0 0.0
        %2313 = vmatpush1.msra.mxu0 0.0
        %2314 = vmatprep.subr.mxu0 0.0
        %2315 = vmatpush1.msra.mxu0 0.0
        %2316 = vmatprep.subr.mxu0 0.0
        %2317 = vmatpush1.msra.mxu0 0.0
        %2318 = vmatprep.subr.mxu0 0.0
        %2319 = vmatpush1.msra.mxu0 0.0
        %2320 = vmatprep.subr.mxu0 0.0
        %2321 = vmatpush1.msra.mxu0 0.0
        %2322 = vmatprep.subr.mxu0 0.0
        %2323 = vmatpush1.msra.mxu0 0.0
        %2324 = vmatprep.subr.mxu0 0.0
        %2325 = vmatpush1.msra.mxu0 0.0
        %2326 = vmatprep.subr.mxu0 0.0
        %2327 = vmatpush1.msra.mxu0 0.0
        %2328 = vmatprep.subr.mxu0 0.0
        %2329 = vmatpush1.msra.mxu0 0.0
        %2330 = vmatprep.subr.mxu0 0.0
        %2331 = vmatpush1.msra.mxu0 0.0
        %2332 = vmatprep.subr.mxu0 0.0
        %2333 = vmatpush1.msra.mxu0 0.0
        %2334 = vmatprep.subr.mxu0 0.0
        %2335 = vmatpush1.msra.mxu0 0.0
        %2336 = vmatprep.subr.mxu0 0.0
        %2337 = vmatpush1.msra.mxu0 0.0
        %2338 = vmatprep.subr.mxu0 0.0
        %2339 = vmatpush1.msra.mxu0 0.0
        %2340 = vmatprep.subr.mxu0 0.0
        %2341 = vmatpush1.msra.mxu0 0.0
        %2342 = vmatprep.subr.mxu0 0.0
        %2343 = vmatpush1.msra.mxu0 0.0
        %2344 = vmatprep.subr.mxu0 0.0
        %2345 = vmatpush1.msra.mxu0 0.0
        %2346 = vmatprep.subr.mxu0 0.0
        %2347 = vmatpush1.msra.mxu0 0.0
        %2348 = vmatprep.subr.mxu0 0.0
        %2349 = vmatpush1.msra.mxu0 0.0
        %2350 = vmatprep.subr.mxu0 0.0
        %2351 = vmatpush1.msra.mxu0 0.0
        %2352 = vmatprep.subr.mxu0 0.0
        %2353 = vmatpush1.msra.mxu0 0.0
        %2354 = vmatprep.subr.mxu0 0.0
        %2355 = vmatpush1.msra.mxu0 0.0
        %2356 = vmatprep.subr.mxu0 0.0
        %2357 = vmatpush1.msra.mxu0 0.0
        %2358 = vmatprep.subr.mxu0 0.0
        %2359 = vmatpush1.msra.mxu0 0.0
        %2360 = vmatprep.mubr.f32.mxu0 0.0
        %2361 = vmatmul.mubr.f32.gmra.mrb[0].mxu0 %v2291
        %v2362 = vpop.f32.mrb[0].mxu0
        %v2363 = vadd.f32 0.0, %v2362
        %v2364 = vpop.f32.mrb[0].mxu0
        %v2365 = vadd.f32 0.0, %v2364
        %2366 = vmatprep.mubr.f32.mxu0 0.0
        %2367 = vmatmul.mubr.f32.gmra.mrb[0].mxu0 %v2294
        %v2368 = vpop.f32.mrb[0].mxu0
        %v2369 = vadd.f32 0.0, %v2368
        %v2370 = vpop.f32.mrb[0].mxu0
        %v2371 = vadd.f32 0.0, %v2370
        %2372 = vdwg.mxu0
        %v2373 = vadd.f32 %v2264, %v2363
        %v2374 = vadd.f32 %v2266, %v2365
        %v2375 = vadd.f32 %v2270, %v2369
        %v2376 = vadd.f32 %v2272, %v2371
        %2377 = vrot.lane.b32.xlu0 %v2076, 65
        %v2378 = vpop.permute.xlu0 %2377
        %2380 = vrot.lane.b32.xlu0 %v2075, 1
        %v2381 = vpop.permute.xlu0 %2380
        %2382 = vrot.lane.b32.xlu0 %v2076, 1
        %v2383 = vpop.permute.xlu0 %2382
        %v2384 = vsel %vm1329, %v2381, %v2383
        %v2387 = vsel %vm1329, %v2378, %v2381
        %v2388 = vmul.f32 %v2387, %v1009
        %v2389 = vmul.f32 %v2384, %v1013
        %s2390 = scalar_lea.vmem [#allocation22], 48
        %v2391 = vld [vmem:[%s2390] sm:$0xff]
        %v2392 = vld [vmem:[%s2390 + $0x8] sm:$0xff]
        %v2394 = vsel %vm1033, %v2391, 0
        %v2397 = vsel %vm1033, %v2392, 0
        %2399 = vmatprep.subr.mxu0 %v2389
        %2400 = vmatpush1.msra.mxu0 %v2388
        %2401 = vmatprep.subr.mxu0 0.0
        %2402 = vmatpush1.msra.mxu0 0.0
        %2403 = vmatprep.subr.mxu0 0.0
        %2404 = vmatpush1.msra.mxu0 0.0
        %2405 = vmatprep.subr.mxu0 0.0
        %2406 = vmatpush1.msra.mxu0 0.0
        %2407 = vmatprep.subr.mxu0 0.0
        %2408 = vmatpush1.msra.mxu0 0.0
        %2409 = vmatprep.subr.mxu0 0.0
        %2410 = vmatpush1.msra.mxu0 0.0
        %2411 = vmatprep.subr.mxu0 0.0
        %2412 = vmatpush1.msra.mxu0 0.0
        %2413 = vmatprep.subr.mxu0 0.0
        %2414 = vmatpush1.msra.mxu0 0.0
        %2415 = vmatprep.subr.mxu0 0.0
        %2416 = vmatpush1.msra.mxu0 0.0
        %2417 = vmatprep.subr.mxu0 0.0
        %2418 = vmatpush1.msra.mxu0 0.0
        %2419 = vmatprep.subr.mxu0 0.0
        %2420 = vmatpush1.msra.mxu0 0.0
        %2421 = vmatprep.subr.mxu0 0.0
        %2422 = vmatpush1.msra.mxu0 0.0
        %2423 = vmatprep.subr.mxu0 0.0
        %2424 = vmatpush1.msra.mxu0 0.0
        %2425 = vmatprep.subr.mxu0 0.0
        %2426 = vmatpush1.msra.mxu0 0.0
        %2427 = vmatprep.subr.mxu0 0.0
        %2428 = vmatpush1.msra.mxu0 0.0
        %2429 = vmatprep.subr.mxu0 0.0
        %2430 = vmatpush1.msra.mxu0 0.0
        %2431 = vmatprep.subr.mxu0 0.0
        %2432 = vmatpush1.msra.mxu0 0.0
        %2433 = vmatprep.subr.mxu0 0.0
        %2434 = vmatpush1.msra.mxu0 0.0
        %2435 = vmatprep.subr.mxu0 0.0
        %2436 = vmatpush1.msra.mxu0 0.0
        %2437 = vmatprep.subr.mxu0 0.0
        %2438 = vmatpush1.msra.mxu0 0.0
        %2439 = vmatprep.subr.mxu0 0.0
        %2440 = vmatpush1.msra.mxu0 0.0
        %2441 = vmatprep.subr.mxu0 0.0
        %2442 = vmatpush1.msra.mxu0 0.0
        %2443 = vmatprep.subr.mxu0 0.0
        %2444 = vmatpush1.msra.mxu0 0.0
        %2445 = vmatprep.subr.mxu0 0.0
        %2446 = vmatpush1.msra.mxu0 0.0
        %2447 = vmatprep.subr.mxu0 0.0
        %2448 = vmatpush1.msra.mxu0 0.0
        %2449 = vmatprep.subr.mxu0 0.0
        %2450 = vmatpush1.msra.mxu0 0.0
        %2451 = vmatprep.subr.mxu0 0.0
        %2452 = vmatpush1.msra.mxu0 0.0
        %2453 = vmatprep.subr.mxu0 0.0
        %2454 = vmatpush1.msra.mxu0 0.0
        %2455 = vmatprep.subr.mxu0 0.0
        %2456 = vmatpush1.msra.mxu0 0.0
        %2457 = vmatprep.subr.mxu0 0.0
        %2458 = vmatpush1.msra.mxu0 0.0
        %2459 = vmatprep.subr.mxu0 0.0
        %2460 = vmatpush1.msra.mxu0 0.0
        %2461 = vmatprep.subr.mxu0 0.0
        %2462 = vmatpush1.msra.mxu0 0.0
        %2463 = vmatprep.mubr.f32.mxu0 0.0
        %2464 = vmatmul.mubr.f32.gmra.mrb[0].mxu0 %v2394
        %v2465 = vpop.f32.mrb[0].mxu0
        %v2466 = vadd.f32 0.0, %v2465
        %v2467 = vpop.f32.mrb[0].mxu0
        %v2468 = vadd.f32 0.0, %v2467
        %2469 = vmatprep.mubr.f32.mxu0 0.0
        %2470 = vmatmul.mubr.f32.gmra.mrb[0].mxu0 %v2397
        %v2471 = vpop.f32.mrb[0].mxu0
        %v2472 = vadd.f32 0.0, %v2471
        %v2473 = vpop.f32.mrb[0].mxu0
        %v2474 = vadd.f32 0.0, %v2473
        %2475 = vdwg.mxu0
        %v2476 = vadd.f32 %v2373, %v2466
        %v2477 = vadd.f32 %v2374, %v2468
        %v2478 = vadd.f32 %v2375, %v2472
        %v2479 = vadd.f32 %v2376, %v2474
        %s2480 = scalar_lea.vmem [#allocation22], 64
        %v2481 = vld [vmem:[%s2480] sm:$0xff]
        %v2482 = vld [vmem:[%s2480 + $0x8] sm:$0xff]
        %v2484 = vsel %vm1033, %v2481, 0
        %v2487 = vsel %vm1033, %v2482, 0
        %2489 = vmatprep.subr.mxu0 %v2076
        %2490 = vmatpush1.msra.mxu0 %v2075
        %2491 = vmatprep.subr.mxu0 0.0
        %2492 = vmatpush1.msra.mxu0 0.0
        %2493 = vmatprep.subr.mxu0 0.0
        %2494 = vmatpush1.msra.mxu0 0.0
        %2495 = vmatprep.subr.mxu0 0.0
        %2496 = vmatpush1.msra.mxu0 0.0
        %2497 = vmatprep.subr.mxu0 0.0
        %2498 = vmatpush1.msra.mxu0 0.0
        %2499 = vmatprep.subr.mxu0 0.0
        %2500 = vmatpush1.msra.mxu0 0.0
        %2501 = vmatprep.subr.mxu0 0.0
        %2502 = vmatpush1.msra.mxu0 0.0
        %2503 = vmatprep.subr.mxu0 0.0
        %2504 = vmatpush1.msra.mxu0 0.0
        %2505 = vmatprep.subr.mxu0 0.0
        %2506 = vmatpush1.msra.mxu0 0.0
        %2507 = vmatprep.subr.mxu0 0.0
        %2508 = vmatpush1.msra.mxu0 0.0
        %2509 = vmatprep.subr.mxu0 0.0
        %2510 = vmatpush1.msra.mxu0 0.0
        %2511 = vmatprep.subr.mxu0 0.0
        %2512 = vmatpush1.msra.mxu0 0.0
        %2513 = vmatprep.subr.mxu0 0.0
        %2514 = vmatpush1.msra.mxu0 0.0
        %2515 = vmatprep.subr.mxu0 0.0
        %2516 = vmatpush1.msra.mxu0 0.0
        %2517 = vmatprep.subr.mxu0 0.0
        %2518 = vmatpush1.msra.mxu0 0.0
        %2519 = vmatprep.subr.mxu0 0.0
        %2520 = vmatpush1.msra.mxu0 0.0
        %2521 = vmatprep.subr.mxu0 0.0
        %2522 = vmatpush1.msra.mxu0 0.0
        %2523 = vmatprep.subr.mxu0 0.0
        %2524 = vmatpush1.msra.mxu0 0.0
        %2525 = vmatprep.subr.mxu0 0.0
        %2526 = vmatpush1.msra.mxu0 0.0
        %2527 = vmatprep.subr.mxu0 0.0
        %2528 = vmatpush1.msra.mxu0 0.0
        %2529 = vmatprep.subr.mxu0 0.0
        %2530 = vmatpush1.msra.mxu0 0.0
        %2531 = vmatprep.subr.mxu0 0.0
        %2532 = vmatpush1.msra.mxu0 0.0
        %2533 = vmatprep.subr.mxu0 0.0
        %2534 = vmatpush1.msra.mxu0 0.0
        %2535 = vmatprep.subr.mxu0 0.0
        %2536 = vmatpush1.msra.mxu0 0.0
        %2537 = vmatprep.subr.mxu0 0.0
        %2538 = vmatpush1.msra.mxu0 0.0
        %2539 = vmatprep.subr.mxu0 0.0
        %2540 = vmatpush1.msra.mxu0 0.0
        %2541 = vmatprep.subr.mxu0 0.0
        %2542 = vmatpush1.msra.mxu0 0.0
        %2543 = vmatprep.subr.mxu0 0.0
        %2544 = vmatpush1.msra.mxu0 0.0
        %2545 = vmatprep.subr.mxu0 0.0
        %2546 = vmatpush1.msra.mxu0 0.0
        %2547 = vmatprep.subr.mxu0 0.0
        %2548 = vmatpush1.msra.mxu0 0.0
        %2549 = vmatprep.subr.mxu0 0.0
        %2550 = vmatpush1.msra.mxu0 0.0
        %2551 = vmatprep.subr.mxu0 0.0
        %2552 = vmatpush1.msra.mxu0 0.0
        %2553 = vmatprep.mubr.f32.mxu0 0.0
        %2554 = vmatmul.mubr.f32.gmra.mrb[0].mxu0 %v2484
        %v2555 = vpop.f32.mrb[0].mxu0
        %v2556 = vadd.f32 0.0, %v2555
        %v2557 = vpop.f32.mrb[0].mxu0
        %v2558 = vadd.f32 0.0, %v2557
        %2559 = vmatprep.mubr.f32.mxu0 0.0
        %2560 = vmatmul.mubr.f32.gmra.mrb[0].mxu0 %v2487
        %v2561 = vpop.f32.mrb[0].mxu0
        %v2562 = vadd.f32 0.0, %v2561
        %v2563 = vpop.f32.mrb[0].mxu0
        %v2564 = vadd.f32 0.0, %v2563
        %2565 = vdwg.mxu0
        %v2566 = vadd.f32 %v2476, %v2556
        %v2567 = vadd.f32 %v2477, %v2558
        %v2568 = vadd.f32 %v2478, %v2562
        %v2569 = vadd.f32 %v2479, %v2564
        %2570 = vrot.lane.b32.xlu0 %v2075, 127
        %v2571 = vpop.permute.xlu0 %2570
        %2572 = vrot.lane.b32.xlu0 %v2076, 127
        %v2573 = vpop.permute.xlu0 %2572
        %v2574 = vsel %vm1520, %v2571, %v2573
        %2577 = vrot.lane.b32.xlu0 %v2075, 63
        %v2578 = vpop.permute.xlu0 %2577
        %v2580 = vsel %vm1527, %v2573, %v2578
        %v2581 = vmul.f32 %v2574, %v1225
        %v2582 = vmul.f32 %v2580, %v1229
        %s2583 = scalar_lea.vmem [#allocation22], 80
        %v2584 = vld [vmem:[%s2583] sm:$0xff]
        %v2585 = vld [vmem:[%s2583 + $0x8] sm:$0xff]
        %v2587 = vsel %vm1033, %v2584, 0
        %v2590 = vsel %vm1033, %v2585, 0
        %2592 = vmatprep.subr.mxu0 %v2582
        %2593 = vmatpush1.msra.mxu0 %v2581
        %2594 = vmatprep.subr.mxu0 0.0
        %2595 = vmatpush1.msra.mxu0 0.0
        %2596 = vmatprep.subr.mxu0 0.0
        %2597 = vmatpush1.msra.mxu0 0.0
        %2598 = vmatprep.subr.mxu0 0.0
        %2599 = vmatpush1.msra.mxu0 0.0
        %2600 = vmatprep.subr.mxu0 0.0
        %2601 = vmatpush1.msra.mxu0 0.0
        %2602 = vmatprep.subr.mxu0 0.0
        %2603 = vmatpush1.msra.mxu0 0.0
        %2604 = vmatprep.subr.mxu0 0.0
        %2605 = vmatpush1.msra.mxu0 0.0
        %2606 = vmatprep.subr.mxu0 0.0
        %2607 = vmatpush1.msra.mxu0 0.0
        %2608 = vmatprep.subr.mxu0 0.0
        %2609 = vmatpush1.msra.mxu0 0.0
        %2610 = vmatprep.subr.mxu0 0.0
        %2611 = vmatpush1.msra.mxu0 0.0
        %2612 = vmatprep.subr.mxu0 0.0
        %2613 = vmatpush1.msra.mxu0 0.0
        %2614 = vmatprep.subr.mxu0 0.0
        %2615 = vmatpush1.msra.mxu0 0.0
        %2616 = vmatprep.subr.mxu0 0.0
        %2617 = vmatpush1.msra.mxu0 0.0
        %2618 = vmatprep.subr.mxu0 0.0
        %2619 = vmatpush1.msra.mxu0 0.0
        %2620 = vmatprep.subr.mxu0 0.0
        %2621 = vmatpush1.msra.mxu0 0.0
        %2622 = vmatprep.subr.mxu0 0.0
        %2623 = vmatpush1.msra.mxu0 0.0
        %2624 = vmatprep.subr.mxu0 0.0
        %2625 = vmatpush1.msra.mxu0 0.0
        %2626 = vmatprep.subr.mxu0 0.0
        %2627 = vmatpush1.msra.mxu0 0.0
        %2628 = vmatprep.subr.mxu0 0.0
        %2629 = vmatpush1.msra.mxu0 0.0
        %2630 = vmatprep.subr.mxu0 0.0
        %2631 = vmatpush1.msra.mxu0 0.0
        %2632 = vmatprep.subr.mxu0 0.0
        %2633 = vmatpush1.msra.mxu0 0.0
        %2634 = vmatprep.subr.mxu0 0.0
        %2635 = vmatpush1.msra.mxu0 0.0
        %2636 = vmatprep.subr.mxu0 0.0
        %2637 = vmatpush1.msra.mxu0 0.0
        %2638 = vmatprep.subr.mxu0 0.0
        %2639 = vmatpush1.msra.mxu0 0.0
        %2640 = vmatprep.subr.mxu0 0.0
        %2641 = vmatpush1.msra.mxu0 0.0
        %2642 = vmatprep.subr.mxu0 0.0
        %2643 = vmatpush1.msra.mxu0 0.0
        %2644 = vmatprep.subr.mxu0 0.0
        %2645 = vmatpush1.msra.mxu0 0.0
        %2646 = vmatprep.subr.mxu0 0.0
        %2647 = vmatpush1.msra.mxu0 0.0
        %2648 = vmatprep.subr.mxu0 0.0
        %2649 = vmatpush1.msra.mxu0 0.0
        %2650 = vmatprep.subr.mxu0 0.0
        %2651 = vmatpush1.msra.mxu0 0.0
        %2652 = vmatprep.subr.mxu0 0.0
        %2653 = vmatpush1.msra.mxu0 0.0
        %2654 = vmatprep.subr.mxu0 0.0
        %2655 = vmatpush1.msra.mxu0 0.0
        %2656 = vmatprep.mubr.f32.mxu0 0.0
        %2657 = vmatmul.mubr.f32.gmra.mrb[0].mxu0 %v2587
        %v2658 = vpop.f32.mrb[0].mxu0
        %v2659 = vadd.f32 0.0, %v2658
        %v2660 = vpop.f32.mrb[0].mxu0
        %v2661 = vadd.f32 0.0, %v2660
        %2662 = vmatprep.mubr.f32.mxu0 0.0
        %2663 = vmatmul.mubr.f32.gmra.mrb[0].mxu0 %v2590
        %v2664 = vpop.f32.mrb[0].mxu0
        %v2665 = vadd.f32 0.0, %v2664
        %v2666 = vpop.f32.mrb[0].mxu0
        %v2667 = vadd.f32 0.0, %v2666
        %2668 = vdwg.mxu0
        %v2669 = vadd.f32 %v2566, %v2659
        %v2670 = vadd.f32 %v2567, %v2661
        %v2671 = vadd.f32 %v2568, %v2665
        %v2672 = vadd.f32 %v2569, %v2667
        %2673 = vrot.lane.b32.xlu0 %v2075, 113
        %v2674 = vpop.permute.xlu0 %2673
        %2675 = vrot.lane.b32.xlu0 %v2076, 113
        %v2676 = vpop.permute.xlu0 %2675
        %v2677 = vsel %vm1625, %v2674, %v2676
        %2680 = vrot.lane.b32.xlu0 %v2075, 49
        %v2681 = vpop.permute.xlu0 %2680
        %v2683 = vsel %vm1632, %v2676, %v2681
        %v2684 = vmul.f32 %v2677, %v1009
        %v2685 = vmul.f32 %v2683, %v1013
        %s2686 = scalar_lea.vmem [#allocation22], 96
        %v2687 = vld [vmem:[%s2686] sm:$0xff]
        %v2688 = vld [vmem:[%s2686 + $0x8] sm:$0xff]
        %v2690 = vsel %vm1033, %v2687, 0
        %v2693 = vsel %vm1033, %v2688, 0
        %2695 = vmatprep.subr.mxu0 %v2685
        %2696 = vmatpush1.msra.mxu0 %v2684
        %2697 = vmatprep.subr.mxu0 0.0
        %2698 = vmatpush1.msra.mxu0 0.0
        %2699 = vmatprep.subr.mxu0 0.0
        %2700 = vmatpush1.msra.mxu0 0.0
        %2701 = vmatprep.subr.mxu0 0.0
        %2702 = vmatpush1.msra.mxu0 0.0
        %2703 = vmatprep.subr.mxu0 0.0
        %2704 = vmatpush1.msra.mxu0 0.0
        %2705 = vmatprep.subr.mxu0 0.0
        %2706 = vmatpush1.msra.mxu0 0.0
        %2707 = vmatprep.subr.mxu0 0.0
        %2708 = vmatpush1.msra.mxu0 0.0
        %2709 = vmatprep.subr.mxu0 0.0
        %2710 = vmatpush1.msra.mxu0 0.0
        %2711 = vmatprep.subr.mxu0 0.0
        %2712 = vmatpush1.msra.mxu0 0.0
        %2713 = vmatprep.subr.mxu0 0.0
        %2714 = vmatpush1.msra.mxu0 0.0
        %2715 = vmatprep.subr.mxu0 0.0
        %2716 = vmatpush1.msra.mxu0 0.0
        %2717 = vmatprep.subr.mxu0 0.0
        %2718 = vmatpush1.msra.mxu0 0.0
        %2719 = vmatprep.subr.mxu0 0.0
        %2720 = vmatpush1.msra.mxu0 0.0
        %2721 = vmatprep.subr.mxu0 0.0
        %2722 = vmatpush1.msra.mxu0 0.0
        %2723 = vmatprep.subr.mxu0 0.0
        %2724 = vmatpush1.msra.mxu0 0.0
        %2725 = vmatprep.subr.mxu0 0.0
        %2726 = vmatpush1.msra.mxu0 0.0
        %2727 = vmatprep.subr.mxu0 0.0
        %2728 = vmatpush1.msra.mxu0 0.0
        %2729 = vmatprep.subr.mxu0 0.0
        %2730 = vmatpush1.msra.mxu0 0.0
        %2731 = vmatprep.subr.mxu0 0.0
        %2732 = vmatpush1.msra.mxu0 0.0
        %2733 = vmatprep.subr.mxu0 0.0
        %2734 = vmatpush1.msra.mxu0 0.0
        %2735 = vmatprep.subr.mxu0 0.0
        %2736 = vmatpush1.msra.mxu0 0.0
        %2737 = vmatprep.subr.mxu0 0.0
        %2738 = vmatpush1.msra.mxu0 0.0
        %2739 = vmatprep.subr.mxu0 0.0
        %2740 = vmatpush1.msra.mxu0 0.0
        %2741 = vmatprep.subr.mxu0 0.0
        %2742 = vmatpush1.msra.mxu0 0.0
        %2743 = vmatprep.subr.mxu0 0.0
        %2744 = vmatpush1.msra.mxu0 0.0
        %2745 = vmatprep.subr.mxu0 0.0
        %2746 = vmatpush1.msra.mxu0 0.0
        %2747 = vmatprep.subr.mxu0 0.0
        %2748 = vmatpush1.msra.mxu0 0.0
        %2749 = vmatprep.subr.mxu0 0.0
        %2750 = vmatpush1.msra.mxu0 0.0
        %2751 = vmatprep.subr.mxu0 0.0
        %2752 = vmatpush1.msra.mxu0 0.0
        %2753 = vmatprep.subr.mxu0 0.0
        %2754 = vmatpush1.msra.mxu0 0.0
        %2755 = vmatprep.subr.mxu0 0.0
        %2756 = vmatpush1.msra.mxu0 0.0
        %2757 = vmatprep.subr.mxu0 0.0
        %2758 = vmatpush1.msra.mxu0 0.0
        %2759 = vmatprep.mubr.f32.mxu0 0.0
        %2760 = vmatmul.mubr.f32.gmra.mrb[0].mxu0 %v2690
        %v2761 = vpop.f32.mrb[0].mxu0
        %v2762 = vadd.f32 0.0, %v2761
        %v2763 = vpop.f32.mrb[0].mxu0
        %v2764 = vadd.f32 0.0, %v2763
        %2765 = vmatprep.mubr.f32.mxu0 0.0
        %2766 = vmatmul.mubr.f32.gmra.mrb[0].mxu0 %v2693
        %v2767 = vpop.f32.mrb[0].mxu0
        %v2768 = vadd.f32 0.0, %v2767
        %v2769 = vpop.f32.mrb[0].mxu0
        %v2770 = vadd.f32 0.0, %v2769
        %2771 = vdwg.mxu0
        %v2772 = vadd.f32 %v2669, %v2762
        %v2773 = vadd.f32 %v2670, %v2764
        %v2774 = vadd.f32 %v2671, %v2768
        %v2775 = vadd.f32 %v2672, %v2770
        %2776 = vrot.lane.b32.xlu0 %v2075, 112
        %v2777 = vpop.permute.xlu0 %2776
        %2778 = vrot.lane.b32.xlu0 %v2076, 112
        %v2779 = vpop.permute.xlu0 %2778
        %v2780 = vsel %vm1730, %v2777, %v2779
        %2783 = vrot.lane.b32.xlu0 %v2075, 48
        %v2784 = vpop.permute.xlu0 %2783
        %v2786 = vsel %vm1737, %v2779, %v2784
        %s2787 = scalar_lea.vmem [#allocation22], 112
        %v2788 = vld [vmem:[%s2787] sm:$0xff]
        %v2789 = vld [vmem:[%s2787 + $0x8] sm:$0xff]
        %v2791 = vsel %vm1033, %v2788, 0
        %v2794 = vsel %vm1033, %v2789, 0
        %2796 = vmatprep.subr.mxu0 %v2786
        %2797 = vmatpush1.msra.mxu0 %v2780
        %2798 = vmatprep.subr.mxu0 0.0
        %2799 = vmatpush1.msra.mxu0 0.0
        %2800 = vmatprep.subr.mxu0 0.0
        %2801 = vmatpush1.msra.mxu0 0.0
        %2802 = vmatprep.subr.mxu0 0.0
        %2803 = vmatpush1.msra.mxu0 0.0
        %2804 = vmatprep.subr.mxu0 0.0
        %2805 = vmatpush1.msra.mxu0 0.0
        %2806 = vmatprep.subr.mxu0 0.0
        %2807 = vmatpush1.msra.mxu0 0.0
        %2808 = vmatprep.subr.mxu0 0.0
        %2809 = vmatpush1.msra.mxu0 0.0
        %2810 = vmatprep.subr.mxu0 0.0
        %2811 = vmatpush1.msra.mxu0 0.0
        %2812 = vmatprep.subr.mxu0 0.0
        %2813 = vmatpush1.msra.mxu0 0.0
        %2814 = vmatprep.subr.mxu0 0.0
        %2815 = vmatpush1.msra.mxu0 0.0
        %2816 = vmatprep.subr.mxu0 0.0
        %2817 = vmatpush1.msra.mxu0 0.0
        %2818 = vmatprep.subr.mxu0 0.0
        %2819 = vmatpush1.msra.mxu0 0.0
        %2820 = vmatprep.subr.mxu0 0.0
        %2821 = vmatpush1.msra.mxu0 0.0
        %2822 = vmatprep.subr.mxu0 0.0
        %2823 = vmatpush1.msra.mxu0 0.0
        %2824 = vmatprep.subr.mxu0 0.0
        %2825 = vmatpush1.msra.mxu0 0.0
        %2826 = vmatprep.subr.mxu0 0.0
        %2827 = vmatpush1.msra.mxu0 0.0
        %2828 = vmatprep.subr.mxu0 0.0
        %2829 = vmatpush1.msra.mxu0 0.0
        %2830 = vmatprep.subr.mxu0 0.0
        %2831 = vmatpush1.msra.mxu0 0.0
        %2832 = vmatprep.subr.mxu0 0.0
        %2833 = vmatpush1.msra.mxu0 0.0
        %2834 = vmatprep.subr.mxu0 0.0
        %2835 = vmatpush1.msra.mxu0 0.0
        %2836 = vmatprep.subr.mxu0 0.0
        %2837 = vmatpush1.msra.mxu0 0.0
        %2838 = vmatprep.subr.mxu0 0.0
        %2839 = vmatpush1.msra.mxu0 0.0
        %2840 = vmatprep.subr.mxu0 0.0
        %2841 = vmatpush1.msra.mxu0 0.0
        %2842 = vmatprep.subr.mxu0 0.0
        %2843 = vmatpush1.msra.mxu0 0.0
        %2844 = vmatprep.subr.mxu0 0.0
        %2845 = vmatpush1.msra.mxu0 0.0
        %2846 = vmatprep.subr.mxu0 0.0
        %2847 = vmatpush1.msra.mxu0 0.0
        %2848 = vmatprep.subr.mxu0 0.0
        %2849 = vmatpush1.msra.mxu0 0.0
        %2850 = vmatprep.subr.mxu0 0.0
        %2851 = vmatpush1.msra.mxu0 0.0
        %2852 = vmatprep.subr.mxu0 0.0
        %2853 = vmatpush1.msra.mxu0 0.0
        %2854 = vmatprep.subr.mxu0 0.0
        %2855 = vmatpush1.msra.mxu0 0.0
        %2856 = vmatprep.subr.mxu0 0.0
        %2857 = vmatpush1.msra.mxu0 0.0
        %2858 = vmatprep.subr.mxu0 0.0
        %2859 = vmatpush1.msra.mxu0 0.0
        %2860 = vmatprep.mubr.f32.mxu0 0.0
        %2861 = vmatmul.mubr.f32.gmra.mrb[0].mxu0 %v2791
        %v2862 = vpop.f32.mrb[0].mxu0
        %v2863 = vadd.f32 0.0, %v2862
        %v2864 = vpop.f32.mrb[0].mxu0
        %v2865 = vadd.f32 0.0, %v2864
        %2866 = vmatprep.mubr.f32.mxu0 0.0
        %2867 = vmatmul.mubr.f32.gmra.mrb[0].mxu0 %v2794
        %v2868 = vpop.f32.mrb[0].mxu0
        %v2869 = vadd.f32 0.0, %v2868
        %v2870 = vpop.f32.mrb[0].mxu0
        %v2871 = vadd.f32 0.0, %v2870
        %2872 = vdwg.mxu0
        %v2873 = vadd.f32 %v2772, %v2863
        %v2874 = vadd.f32 %v2773, %v2865
        %v2875 = vadd.f32 %v2774, %v2869
        %v2876 = vadd.f32 %v2775, %v2871
        %2877 = vrot.lane.b32.xlu0 %v2075, 111
        %v2878 = vpop.permute.xlu0 %2877
        %2879 = vrot.lane.b32.xlu0 %v2076, 111
        %v2880 = vpop.permute.xlu0 %2879
        %v2881 = vsel %vm1833, %v2878, %v2880
        %2884 = vrot.lane.b32.xlu0 %v2075, 47
        %v2885 = vpop.permute.xlu0 %2884
        %v2887 = vsel %vm1840, %v2880, %v2885
        %v2888 = vmul.f32 %v2881, %v1225
        %v2889 = vmul.f32 %v2887, %v1229
        %s2890 = scalar_lea.vmem [#allocation22], 128
        %v2891 = vld [vmem:[%s2890] sm:$0xff]
        %v2892 = vld [vmem:[%s2890 + $0x8] sm:$0xff]
        %v2894 = vsel %vm1033, %v2891, 0
        %v2897 = vsel %vm1033, %v2892, 0
        %2899 = vmatprep.subr.mxu0 %v2889
        %2900 = vmatpush1.msra.mxu0 %v2888
        %2901 = vmatprep.subr.mxu0 0.0
        %2902 = vmatpush1.msra.mxu0 0.0
        %2903 = vmatprep.subr.mxu0 0.0
        %2904 = vmatpush1.msra.mxu0 0.0
        %2905 = vmatprep.subr.mxu0 0.0
        %2906 = vmatpush1.msra.mxu0 0.0
        %2907 = vmatprep.subr.mxu0 0.0
        %2908 = vmatpush1.msra.mxu0 0.0
        %2909 = vmatprep.subr.mxu0 0.0
        %2910 = vmatpush1.msra.mxu0 0.0
        %2911 = vmatprep.subr.mxu0 0.0
        %2912 = vmatpush1.msra.mxu0 0.0
        %2913 = vmatprep.subr.mxu0 0.0
        %2914 = vmatpush1.msra.mxu0 0.0
        %2915 = vmatprep.subr.mxu0 0.0
        %2916 = vmatpush1.msra.mxu0 0.0
        %2917 = vmatprep.subr.mxu0 0.0
        %2918 = vmatpush1.msra.mxu0 0.0
        %2919 = vmatprep.subr.mxu0 0.0
        %2920 = vmatpush1.msra.mxu0 0.0
        %2921 = vmatprep.subr.mxu0 0.0
        %2922 = vmatpush1.msra.mxu0 0.0
        %2923 = vmatprep.subr.mxu0 0.0
        %2924 = vmatpush1.msra.mxu0 0.0
        %2925 = vmatprep.subr.mxu0 0.0
        %2926 = vmatpush1.msra.mxu0 0.0
        %2927 = vmatprep.subr.mxu0 0.0
        %2928 = vmatpush1.msra.mxu0 0.0
        %2929 = vmatprep.subr.mxu0 0.0
        %2930 = vmatpush1.msra.mxu0 0.0
        %2931 = vmatprep.subr.mxu0 0.0
        %2932 = vmatpush1.msra.mxu0 0.0
        %2933 = vmatprep.subr.mxu0 0.0
        %2934 = vmatpush1.msra.mxu0 0.0
        %2935 = vmatprep.subr.mxu0 0.0
        %2936 = vmatpush1.msra.mxu0 0.0
        %2937 = vmatprep.subr.mxu0 0.0
        %2938 = vmatpush1.msra.mxu0 0.0
        %2939 = vmatprep.subr.mxu0 0.0
        %2940 = vmatpush1.msra.mxu0 0.0
        %2941 = vmatprep.subr.mxu0 0.0
        %2942 = vmatpush1.msra.mxu0 0.0
        %2943 = vmatprep.subr.mxu0 0.0
        %2944 = vmatpush1.msra.mxu0 0.0
        %2945 = vmatprep.subr.mxu0 0.0
        %2946 = vmatpush1.msra.mxu0 0.0
        %2947 = vmatprep.subr.mxu0 0.0
        %2948 = vmatpush1.msra.mxu0 0.0
        %2949 = vmatprep.subr.mxu0 0.0
        %2950 = vmatpush1.msra.mxu0 0.0
        %2951 = vmatprep.subr.mxu0 0.0
        %2952 = vmatpush1.msra.mxu0 0.0
        %2953 = vmatprep.subr.mxu0 0.0
        %2954 = vmatpush1.msra.mxu0 0.0
        %2955 = vmatprep.subr.mxu0 0.0
        %2956 = vmatpush1.msra.mxu0 0.0
        %2957 = vmatprep.subr.mxu0 0.0
        %2958 = vmatpush1.msra.mxu0 0.0
        %2959 = vmatprep.subr.mxu0 0.0
        %2960 = vmatpush1.msra.mxu0 0.0
        %2961 = vmatprep.subr.mxu0 0.0
        %2962 = vmatpush1.msra.mxu0 0.0
        %2963 = vmatprep.mubr.f32.mxu0 0.0
        %2964 = vmatmul.mubr.f32.gmra.mrb[0].mxu0 %v2894
        %v2965 = vpop.f32.mrb[0].mxu0
        %v2966 = vadd.f32 0.0, %v2965
        %v2967 = vpop.f32.mrb[0].mxu0
        %v2968 = vadd.f32 0.0, %v2967
        %2969 = vmatprep.mubr.f32.mxu0 0.0
        %2970 = vmatmul.mubr.f32.gmra.mrb[0].mxu0 %v2897
        %v2971 = vpop.f32.mrb[0].mxu0
        %v2972 = vadd.f32 0.0, %v2971
        %v2973 = vpop.f32.mrb[0].mxu0
        %v2974 = vadd.f32 0.0, %v2973
        %2975 = vdwg.mxu0
        %v2976 = vadd.f32 %v2873, %v2966
        %v2977 = vadd.f32 %v2874, %v2968
        %v2978 = vadd.f32 %v2875, %v2972
        %v2979 = vadd.f32 %v2876, %v2974
        %v2980 = vld [vmem:[#allocation23] sm:$0xff]
        %v2981 = vld [vmem:[#allocation23 + $0x8] sm:$0xff]
        %2983 = vset.pattern.permute.xlu0 0
        %2984 = vperm.xlu0 %2983, %v2980
        %v2985 = vpop.permute.xlu0 %2984
        %2988 = vset.pattern.permute.xlu0 0
        %2989 = vperm.xlu0 %2988, %v2981
        %v2990 = vpop.permute.xlu0 %2989
        %v2992 = vmul.f32 %v2976, %v2985
        %v2993 = vmul.f32 %v2977, %v2985
        %v2994 = vmul.f32 %v2978, %v2990
        %v2995 = vmul.f32 %v2979, %v2990
        %v2996 = vld [vmem:[#allocation25] sm:$0xff]
        %v2997 = vld [vmem:[#allocation25 + $0x8] sm:$0xff]
        %2999 = vset.pattern.permute.xlu0 0
        %3000 = vperm.xlu0 %2999, %v2996
        %v3001 = vpop.permute.xlu0 %3000
        %3004 = vset.pattern.permute.xlu0 0
        %3005 = vperm.xlu0 %3004, %v2997
        %v3006 = vpop.permute.xlu0 %3005
        %v3008 = vadd.f32 %v2992, %v3001
        %v3009 = vadd.f32 %v2993, %v3001
        %v3010 = vadd.f32 %v2994, %v3006
        %v3011 = vadd.f32 %v2995, %v3006
        %vm3012 = vcmp.gt.f32.partialorder %v3008, 0.0
        %vm3013 = vcmp.gt.f32.partialorder %v3009, 0.0
        %vm3014 = vcmp.gt.f32.partialorder %v3010, 0.0
        %vm3015 = vcmp.gt.f32.partialorder %v3011, 0.0
        %v3016 = vmul.f32 %v3008, 0.1
        %v3017 = vmul.f32 %v3009, 0.1
        %v3018 = vmul.f32 %v3010, 0.1
        %v3019 = vmul.f32 %v3011, 0.1
        %v3020 = vsel %vm3012, %v3008, %v3016
        %v3021 = vsel %vm3013, %v3009, %v3017
        %v3022 = vsel %vm3014, %v3010, %v3018
        %v3023 = vsel %vm3015, %v3011, %v3019
        %v3024 = vld [vmem:[#allocation26] sm:$0xff]
        %v3026 = vsel %vm1025, %v3024, 0
        %3028 = vmatprep.subr.mxu0 %v3021
        %3029 = vmatpush1.msra.mxu0 %v3020
        %3030 = vmatprep.subr.mxu0 %v3023
        %3031 = vmatpush1.msra.mxu0 %v3022
        %3032 = vmatprep.subr.mxu0 0.0
        %3033 = vmatpush1.msra.mxu0 0.0
        %3034 = vmatprep.subr.mxu0 0.0
        %3035 = vmatpush1.msra.mxu0 0.0
        %3036 = vmatprep.subr.mxu0 0.0
        %3037 = vmatpush1.msra.mxu0 0.0
        %3038 = vmatprep.subr.mxu0 0.0
        %3039 = vmatpush1.msra.mxu0 0.0
        %3040 = vmatprep.subr.mxu0 0.0
        %3041 = vmatpush1.msra.mxu0 0.0
        %3042 = vmatprep.subr.mxu0 0.0
        %3043 = vmatpush1.msra.mxu0 0.0
        %3044 = vmatprep.subr.mxu0 0.0
        %3045 = vmatpush1.msra.mxu0 0.0
        %3046 = vmatprep.subr.mxu0 0.0
        %3047 = vmatpush1.msra.mxu0 0.0
        %3048 = vmatprep.subr.mxu0 0.0
        %3049 = vmatpush1.msra.mxu0 0.0
        %3050 = vmatprep.subr.mxu0 0.0
        %3051 = vmatpush1.msra.mxu0 0.0
        %3052 = vmatprep.subr.mxu0 0.0
        %3053 = vmatpush1.msra.mxu0 0.0
        %3054 = vmatprep.subr.mxu0 0.0
        %3055 = vmatpush1.msra.mxu0 0.0
        %3056 = vmatprep.subr.mxu0 0.0
        %3057 = vmatpush1.msra.mxu0 0.0
        %3058 = vmatprep.subr.mxu0 0.0
        %3059 = vmatpush1.msra.mxu0 0.0
        %3060 = vmatprep.subr.mxu0 0.0
        %3061 = vmatpush1.msra.mxu0 0.0
        %3062 = vmatprep.subr.mxu0 0.0
        %3063 = vmatpush1.msra.mxu0 0.0
        %3064 = vmatprep.subr.mxu0 0.0
        %3065 = vmatpush1.msra.mxu0 0.0
        %3066 = vmatprep.subr.mxu0 0.0
        %3067 = vmatpush1.msra.mxu0 0.0
        %3068 = vmatprep.subr.mxu0 0.0
        %3069 = vmatpush1.msra.mxu0 0.0
        %3070 = vmatprep.subr.mxu0 0.0
        %3071 = vmatpush1.msra.mxu0 0.0
        %3072 = vmatprep.subr.mxu0 0.0
        %3073 = vmatpush1.msra.mxu0 0.0
        %3074 = vmatprep.subr.mxu0 0.0
        %3075 = vmatpush1.msra.mxu0 0.0
        %3076 = vmatprep.subr.mxu0 0.0
        %3077 = vmatpush1.msra.mxu0 0.0
        %3078 = vmatprep.subr.mxu0 0.0
        %3079 = vmatpush1.msra.mxu0 0.0
        %3080 = vmatprep.subr.mxu0 0.0
        %3081 = vmatpush1.msra.mxu0 0.0
        %3082 = vmatprep.subr.mxu0 0.0
        %3083 = vmatpush1.msra.mxu0 0.0
        %3084 = vmatprep.subr.mxu0 0.0
        %3085 = vmatpush1.msra.mxu0 0.0
        %3086 = vmatprep.subr.mxu0 0.0
        %3087 = vmatpush1.msra.mxu0 0.0
        %3088 = vmatprep.subr.mxu0 0.0
        %3089 = vmatpush1.msra.mxu0 0.0
        %3090 = vmatprep.subr.mxu0 0.0
        %3091 = vmatpush1.msra.mxu0 0.0
        %3092 = vmatprep.mubr.f32.mxu0 0.0
        %3093 = vmatmul.mubr.f32.gmra.mrb[0].mxu0 %v3026
        %v3094 = vpop.f32.mrb[0].mxu0
        %v3095 = vadd.f32 0.0, %v3094
        %v3096 = vpop.f32.mrb[0].mxu0
        %v3097 = vadd.f32 0.0, %v3096
        %3098 = vdwg.mxu0
        %v3099 = vld [vmem:[#allocation28] sm:$0xff]
        %3101 = vset.pattern.permute.xlu0 0
        %3102 = vperm.xlu0 %3101, %v3099
        %v3103 = vpop.permute.xlu0 %3102
        %v3105 = vmul.f32 %v3095, %v3103
        %v3106 = vmul.f32 %v3097, %v3103
        %v3107 = vld [vmem:[#allocation29] sm:$0xff]
        %3109 = vset.pattern.permute.xlu0 0
        %3110 = vperm.xlu0 %3109, %v3107
        %v3111 = vpop.permute.xlu0 %3110
        %v3113 = vadd.f32 %v3105, %v3111
        %v3114 = vadd.f32 %v3106, %v3111
        %vm3115 = vcmp.gt.f32.partialorder %v3113, 0.0
        %vm3116 = vcmp.gt.f32.partialorder %v3114, 0.0
        %v3117 = vmul.f32 %v3113, 0.1
        %v3118 = vmul.f32 %v3114, 0.1
        %v3119 = vsel %vm3115, %v3113, %v3117
        %v3120 = vsel %vm3116, %v3114, %v3118
        %3123 = vrot.lane.b32.xlu0 %v3119, 96
        %v3124 = vpop.permute.xlu0 %3123
        %3125 = vrot.lane.b32.xlu0 %v3120, 96
        %v3126 = vpop.permute.xlu0 %3125
        %vm3127 = vcmask 785408
        %v3128 = vsel %vm3127, %v3124, %v3126
        %3130 = vst [vmem:[%s859] sm:$0xff] %v3128
        %s3131 = sand.u32 %s458, 1
        %s3132 = scalar_lea.sflag [#allocation4], %s3131
        %s3133 = sand.u32 %s458, 1
        %s3134 = smul.addr %s3133, 8
        %s3135 = scalar_lea.vmem [#allocation31], %s3134
        // Predicated region
        $region165: #{top_down_forward_nchw.1} parent=91 // pred_check
          %p3136 = pneg %p468
        $region166: #{top_down_forward_nchw.1} parent=91 // pred_check_branch
          %3138 = sbr.rel (%p3136) target = $region168
        $region167: #{top_down_forward_nchw.1} parent=91 // pred_region
          %s3140 = ssub.s32 128, 128
          %3141 = vsyncadd %s3132, %s3140
          %s3142 = smul.addr %s50, 2
          %s3143 = sadd.s32 %s51, %s3142
          %s3144 = smul.addr %s3143, 128
          %s3145 = scalar_lea.hbm %s18, %s3144
          %s3147 = sshll.u32 %s3135, 4
          %s3148 = int_to_ptr.vmem [resolvable:$true] %s3147
          %3150 = dma.vmem_to_hbm [thread:$0]  %s3148, 128, %s3145, %s3132
        $region168: #{top_down_forward_nchw.1} parent=91 // pred_fallthru
          _
      $region92: #{top_down_forward_nchw.1} parent=5 // pred_fallthru
        _
      %p3151 = scmp.le.s32.totalorder 2, %s41
      // Predicated region
      $region169: #{top_down_forward_nchw.1} parent=5 // pred_check
        %p3152 = pneg %p3151
      $region170: #{top_down_forward_nchw.1} parent=5 // pred_check_branch
        %3154 = sbr.rel (%p3152) target = $region172
      $region171: #{top_down_forward_nchw.1} parent=5 // pred_region
        %s3155 = ssub.s32 %s41, 2
        // Predicated region
        $region173: #{top_down_forward_nchw.1} parent=171 // pred_check
          %p3156 = pneg %p474
        $region174: #{top_down_forward_nchw.1} parent=171 // pred_check_branch
          %3158 = sbr.rel (%p3156) target = $region176
        $region175: #{top_down_forward_nchw.1} parent=171 // pred_region
          %s3159 = sand.u32 %s459, 1
          %s3160 = scalar_lea.sflag [#allocation4], %s3159
          %s3161 = sand.u32 %s459, 1
          %s3162 = smul.addr %s3161, 8
          %s3163 = scalar_lea.vmem [#allocation31], %s3162
          %3164 = dma.done %s3160, 128
        $region176: #{top_down_forward_nchw.1} parent=171 // pred_fallthru
          _
      $region172: #{top_down_forward_nchw.1} parent=5 // pred_fallthru
        _
    $region6: #{top_down_forward_nchw.1} parent=1 // loop_footer
      %s45 = sadd.s32 1, %s41
    $region7: #{top_down_forward_nchw.1} parent=1 // loop_footer_branch
      %40 = sbr.rel target = $region3
    $region8: #{top_down_forward_nchw.1} parent=1 // loop_exit
      _
    %3165 = vsyncpa [#allocation3], 1
    %s3166 = scalar_lea.sflag [#allocation3], 1
    %3167 = vsyncpa %s3166, 1
    %3168 = vsyncpa [#allocation6], 1
    %s3169 = scalar_lea.sflag [#allocation6], 1
    %3170 = vsyncpa %s3169, 1
    %3171 = vsyncpa [#allocation9], 1
    %3172 = vsyncpa [#allocation12], 1
    %3173 = vsyncpa [#allocation15], 1
    %3174 = vsyncpa [#allocation18], 1
    %3175 = vsyncpa [#allocation21], 1
    %3176 = vsyncpa [#allocation24], 1
    %3177 = vsyncpa [#allocation27], 1
    %3178 = vsyncpa [#allocation30], 1
    %3179 = vsyncpa [#allocation4], 1
    %s3180 = scalar_lea.sflag [#allocation4], 1
    %3181 = vsyncpa %s3180, 1

</llo_original>
